<compile_context>
chip_gen: v6e
topology: v6e:2x2x1
jax: 0.10.0
libtpu: 0.0.40
codegen_flags: <defaults>
</compile_context>

<pallas_src>
import jax
import jax.numpy as jnp
from jax.experimental import pallas as pl
from jax.experimental.pallas import tpu as pltpu

# --- Module configuration (g = Linear(1536, 128) forces sum(feature_maps) == 1536) ---
N_CH_TOKENS = 50
CH_MAXLEN = 16
CH_EMB_SIZE = 16
CH_FEATURE_MAPS = (256, 256, 512, 512)   # sums to 1536
CH_KERNEL_SIZES = (2, 3, 4, 5)
G_IN = 1536
G_OUT = 128


def _round_up(n, m):
    return ((n + m - 1) // m) * m


K_MAX = max(CH_KERNEL_SIZES)                       # 5
L_EMB = _round_up(CH_MAXLEN + K_MAX - 1, 8)        # 24: widest window reach (20) rounded to sublane mult
KW = K_MAX * CH_EMB_SIZE                           # 80: shared im2col K for all branches
IND_W = 8                                          # indicator lanes (4 used, padded to sublane mult)
K_IN = KW + IND_W                                  # 88: fused-matmul K
VOCAB_PAD = 128                                    # n_ch_tokens (50) padded to a full lane
MASK_BIG = 1e30                                    # finite "minus infinity" routed through the MXU


def charcnn_kernel(tok_ref, emb_ref, w_ref, b_ref, gw_ref, gb_ref, out_ref):
    """One batch tile: fused embedding + single fused conv matmul + max + tanh + linear."""
    bt = out_ref.shape[0]

    # --- Embedding lookup fused as a one-hot matmul (exact: one-hot is 0/1) ---
    tok = tok_ref[...]                                               # (bt, L_EMB) int32
    onehot = (tok[:, :, None] ==
              jax.lax.broadcasted_iota(jnp.int32, (bt, L_EMB, VOCAB_PAD), 2)
              ).astype(jnp.float32)                                  # f32: (bt,24,128)->(bt*24,128) reshape is free
    onehot = onehot.reshape(bt * L_EMB, VOCAB_PAD).astype(jnp.bfloat16)
    x = jnp.dot(onehot, emb_ref[...], preferred_element_type=jnp.float32)
    x = x.reshape(bt, L_EMB, CH_EMB_SIZE)                            # (bt, 24, E) f32

    # --- im2col built ONCE for the widest kernel; lane j*E+e holds x[p+j, e] ---
    pieces = [x[:, j:j + CH_MAXLEN, :] for j in range(K_MAX)]        # 5 x (bt, 16, E)

    # Indicator lanes: ind[:, p, c] = 1.0 iff row p is an invalid window for branch c.
    # The fused weight carries -1e30 on these rows, so the matmul itself applies the
    # max-pool mask (0 * -1e30 == 0, so valid rows are untouched).
    row = jax.lax.broadcasted_iota(jnp.int32, (bt, CH_MAXLEN, IND_W), 1)
    col = jax.lax.broadcasted_iota(jnp.int32, (bt, CH_MAXLEN, IND_W), 2)
    ind = jnp.zeros((bt, CH_MAXLEN, IND_W), jnp.float32)
    for c, ksz in enumerate(CH_KERNEL_SIZES):
        l_red = CH_MAXLEN - ksz + 1
        ind = jnp.where((col == c) & (row >= l_red), 1.0, ind)

    xc = jnp.concatenate(pieces + [ind], axis=-1)                    # (bt, 16, 88) f32
    xc = xc.reshape(bt * CH_MAXLEN, K_IN).astype(jnp.bfloat16)

    # --- One fused conv matmul over all four branches (K=88 is one K-pass) ---
    conv = jnp.dot(xc, w_ref[...], preferred_element_type=jnp.float32)   # (bt*16, 1536) f32
    conv = conv.reshape(bt, CH_MAXLEN, G_IN)

    # --- Max-pool over positions (invalid rows already pushed to -1e30 by the matmul),
    #     then fused bias + tanh (max BEFORE bias/tanh is valid: tanh is monotone) ---
    feat = jnp.max(conv, axis=1)                                     # (bt, 1536)
    feat = jnp.tanh(feat + b_ref[...])                               # (bt, 1536) f32

    # --- Final linear, single fused matmul ---
    out = jnp.dot(feat.astype(jnp.bfloat16), gw_ref[...],
                  preferred_element_type=jnp.float32)                # (bt, 128) f32
    out_ref[...] = out + gb_ref[...]


def _pack_params(params):
    """Host-side packing: fused conv weight (88,1536), fused bias, padded embedding."""
    emb = jnp.zeros((VOCAB_PAD, CH_EMB_SIZE), jnp.float32)
    emb = emb.at[:N_CH_TOKENS].set(params["emb"].astype(jnp.float32)).astype(jnp.bfloat16)

    w_all = jnp.zeros((K_IN, G_IN), jnp.float32)
    b_all = jnp.zeros((1, G_IN), jnp.float32)
    off = 0
    for bi, (k, fm) in enumerate(zip(CH_KERNEL_SIZES, CH_FEATURE_MAPS)):
        w_flat = params["conv_w"][bi].reshape(k * CH_EMB_SIZE, fm).astype(jnp.float32)
        w_all = w_all.at[:k * CH_EMB_SIZE, off:off + fm].set(w_flat)       # zero-padded K rows
        w_all = w_all.at[KW + bi, off:off + fm].set(-MASK_BIG)             # mask row for branch bi
        b_all = b_all.at[:, off:off + fm].set(params["conv_b"][bi].astype(jnp.float32))
        off += fm

    gw = params["g_w"].astype(jnp.bfloat16)          # (1536, 128)
    gb = params["g_b"].astype(jnp.float32)           # (1, 128)
    return emb, w_all.astype(jnp.bfloat16), b_all, gw, gb


def charcnn_forward(x_tokens, params, *, b_tile=256):
    """Wrapper: pads batch/length, packs fused weights, grids over batch."""
    B = x_tokens.shape[0]
    Bp = max(8, _round_up(B, 8))
    if Bp > b_tile:
        bt = b_tile
        Bp = _round_up(Bp, bt)
    elif Bp >= 64:
        # Split medium batches into two grid steps so v7x's two TensorCores both get work.
        Bp = _round_up(Bp, 16)
        bt = Bp // 2
    else:
        bt = Bp

    # Clip token ids so out-of-range inputs can't silently embed to zero via the one-hot.
    tok = jnp.zeros((Bp, L_EMB), jnp.int32)
    tok = tok.at[:B, :CH_MAXLEN].set(
        jnp.clip(x_tokens.astype(jnp.int32), 0, N_CH_TOKENS - 1))

    emb, w_all, b_all, gw, gb = _pack_params(params)

    out = pl.pallas_call(
        charcnn_kernel,
        out_shape=jax.ShapeDtypeStruct((Bp, G_OUT), jnp.float32),
        grid=(Bp // bt,),
        in_specs=[
            pl.BlockSpec((bt, L_EMB), lambda i: (i, 0)),              # tokens (per batch tile)
            pl.BlockSpec((VOCAB_PAD, CH_EMB_SIZE), lambda i: (0, 0)),  # embedding (resident)
            pl.BlockSpec((K_IN, G_IN), lambda i: (0, 0)),              # fused conv weight
            pl.BlockSpec((1, G_IN), lambda i: (0, 0)),                 # fused conv bias
            pl.BlockSpec((G_IN, G_OUT), lambda i: (0, 0)),             # final linear weight
            pl.BlockSpec((1, G_OUT), lambda i: (0, 0)),                # final linear bias
        ],
        out_specs=pl.BlockSpec((bt, G_OUT), lambda i: (i, 0)),
        compiler_params=pltpu.CompilerParams(
            dimension_semantics=("parallel",),
            vmem_limit_bytes=48 * 1024 * 1024,   # fused (bt*16,1536) f32 intermediate; v7x-safe
        ),
    )(tok, emb, w_all, b_all, gw, gb)
    return out[:B]


def init_params(key):
    """Deterministic init mirroring CharCNN.init_ch (uniform emb, xavier conv, zero bias)."""
    keys = jax.random.split(key, 2 + len(CH_FEATURE_MAPS))
    initrange = 0.5 / CH_EMB_SIZE
    emb = jax.random.uniform(keys[0], (N_CH_TOKENS, CH_EMB_SIZE),
                             minval=-initrange, maxval=initrange, dtype=jnp.float32)
    conv_w, conv_b = [], []
    for i, (fm, k) in enumerate(zip(CH_FEATURE_MAPS, CH_KERNEL_SIZES)):
        fan_in = 1 * k * CH_EMB_SIZE
        fan_out = fm * k * CH_EMB_SIZE
        bound = (6.0 / (fan_in + fan_out)) ** 0.5
        conv_w.append(jax.random.uniform(keys[1 + i], (k, CH_EMB_SIZE, fm),
                                         minval=-bound, maxval=bound, dtype=jnp.float32))
        conv_b.append(jnp.zeros((1, fm), jnp.float32))
    gk1, gk2 = jax.random.split(keys[-1])
    gbound = 1.0 / (G_IN ** 0.5)
    g_w = jax.random.uniform(gk1, (G_IN, G_OUT), minval=-gbound, maxval=gbound,
                             dtype=jnp.float32)
    g_b = jax.random.uniform(gk2, (1, G_OUT), minval=-gbound, maxval=gbound,
                             dtype=jnp.float32)
    return dict(emb=emb, conv_w=conv_w, conv_b=conv_b, g_w=g_w, g_b=g_b)


def charcnn_reference(x_tokens, params):
    """Pure-JAX f32 reference (PyTorch semantics) for correctness check."""
    x_embs = jnp.take(params["emb"], x_tokens, axis=0).astype(jnp.float32)
    feats = []
    for i, (fm, k) in enumerate(zip(CH_FEATURE_MAPS, CH_KERNEL_SIZES)):
        l_red = CH_MAXLEN - k + 1
        w = params["conv_w"][i]                        # (k, E, fm)
        s = jnp.zeros((x_tokens.shape[0], l_red, fm), jnp.float32)
        for j in range(k):
            s = s + jnp.einsum("ble,ef->blf", x_embs[:, j:j + l_red, :], w[j])
        s = jnp.tanh(s + params["conv_b"][i][None, :, :])
        feats.append(jnp.max(s, axis=1))
    feat = jnp.concatenate(feats, axis=-1)
    return feat @ params["g_w"] + params["g_b"]


if __name__ == "__main__":
    key = jax.random.PRNGKey(0)
    pkey, xkey = jax.random.split(key)
    params = init_params(pkey)

    B = 2
    x = jax.random.randint(xkey, (B, CH_MAXLEN), 0, N_CH_TOKENS, dtype=jnp.int32)

    out = charcnn_forward(x, params)
    jax.block_until_ready(out)

    assert out.shape == (B, G_OUT), out.shape
    ref = charcnn_reference(x, params)
    err = float(jnp.max(jnp.abs(out - ref)))
    # bf16 MXU operands vs f32 reference -> loosen tolerance slightly.
    assert jnp.allclose(out, ref, atol=1e-2, rtol=1e-2), err

    print("KERNEL_OK")
</pallas_src>

<mosaic_0001>
module attributes {stable_mosaic.version = 11 : i64} {
  func.func @charcnn_kernel(%arg0: i32, %arg1: memref<8x24xi32, #tpu.memory_space<vmem>>, %arg2: memref<128x16xbf16, #tpu.memory_space<vmem>>, %arg3: memref<88x1536xbf16, #tpu.memory_space<vmem>>, %arg4: memref<1x1536xf32, #tpu.memory_space<vmem>>, %arg5: memref<1536x128xbf16, #tpu.memory_space<vmem>>, %arg6: memref<1x128xf32, #tpu.memory_space<vmem>>, %arg7: memref<8x128xf32, #tpu.memory_space<vmem>>) attributes {dimension_semantics = [#tpu.dimension_semantics<parallel>], iteration_bounds = array<i64: 1>, scalar_prefetch = 0 : i64, scratch_operands = 0 : i64, tpu.core_type = #tpu.core_type<tc>, window_params = [{transform_indices = @transform_0, window_bounds = array<i64: 8, 24>}, {pipeline_mode = #tpu.pipeline_mode<synchronous>, transform_indices = @transform_1, window_bounds = array<i64: 128, 16>}, {pipeline_mode = #tpu.pipeline_mode<synchronous>, transform_indices = @transform_2, window_bounds = array<i64: 88, 1536>}, {pipeline_mode = #tpu.pipeline_mode<synchronous>, transform_indices = @transform_3, window_bounds = array<i64: 1, 1536>}, {pipeline_mode = #tpu.pipeline_mode<synchronous>, transform_indices = @transform_4, window_bounds = array<i64: 1536, 128>}, {pipeline_mode = #tpu.pipeline_mode<synchronous>, transform_indices = @transform_5, window_bounds = array<i64: 1, 128>}, {transform_indices = @transform_6, window_bounds = array<i64: 8, 128>}]} {
    %c0 = arith.constant 0 : index
    %c0_0 = arith.constant 0 : index
    %0 = vector.load %arg1[%c0, %c0_0] : memref<8x24xi32, #tpu.memory_space<vmem>>, vector<8x24xi32>
    %1 = vector.shape_cast %0 : vector<8x24xi32> to vector<8x24x1xi32>
    %2 = tpu.iota {dimensions = array<i32: 2>} : vector<8x24x128xi32>
    %3 = vector.broadcast %1 : vector<8x24x1xi32> to vector<8x24x128xi32>
    %4 = arith.cmpi eq, %3, %2 : vector<8x24x128xi32>
    %5 = arith.extui %4 : vector<8x24x128xi1> to vector<8x24x128xi32>
    %6 = arith.sitofp %5 : vector<8x24x128xi32> to vector<8x24x128xf32>
    %7 = vector.shape_cast %6 : vector<8x24x128xf32> to vector<192x128xf32>
    %8 = arith.truncf %7 : vector<192x128xf32> to vector<192x128xbf16>
    %c0_1 = arith.constant 0 : index
    %c0_2 = arith.constant 0 : index
    %9 = vector.load %arg2[%c0_1, %c0_2] : memref<128x16xbf16, #tpu.memory_space<vmem>>, vector<128x16xbf16>
    %cst = arith.constant dense<0.000000e+00> : vector<192x16xf32>
    %10 = tpu.matmul %8, %9, %cst {dimension_numbers = #tpu.dot_dimension_numbers<[1], [0], [0], [1], [0, 0, 1, 1], [], []>} : vector<192x128xbf16>, vector<128x16xbf16>, vector<192x16xf32> -> vector<192x16xf32>
    %11 = vector.shape_cast %10 : vector<192x16xf32> to vector<8x24x16xf32>
    %12 = vector.extract_strided_slice %11 {offsets = [0, 0, 0], sizes = [8, 16, 16], strides = [1, 1, 1]} : vector<8x24x16xf32> to vector<8x16x16xf32>
    %13 = vector.extract_strided_slice %11 {offsets = [0, 1, 0], sizes = [8, 16, 16], strides = [1, 1, 1]} : vector<8x24x16xf32> to vector<8x16x16xf32>
    %14 = vector.extract_strided_slice %11 {offsets = [0, 2, 0], sizes = [8, 16, 16], strides = [1, 1, 1]} : vector<8x24x16xf32> to vector<8x16x16xf32>
    %15 = vector.extract_strided_slice %11 {offsets = [0, 3, 0], sizes = [8, 16, 16], strides = [1, 1, 1]} : vector<8x24x16xf32> to vector<8x16x16xf32>
    %16 = vector.extract_strided_slice %11 {offsets = [0, 4, 0], sizes = [8, 16, 16], strides = [1, 1, 1]} : vector<8x24x16xf32> to vector<8x16x16xf32>
    %17 = tpu.iota {dimensions = array<i32: 1>} : vector<8x16x8xi32>
    %18 = tpu.iota {dimensions = array<i32: 2>} : vector<8x16x8xi32>
    %cst_3 = arith.constant 0.000000e+00 : f32
    %19 = vector.broadcast %cst_3 : f32 to vector<8x16x8xf32>
    %c0_i32 = arith.constant 0 : i32
    %20 = vector.broadcast %c0_i32 : i32 to vector<8x16x8xi32>
    %21 = arith.cmpi eq, %18, %20 : vector<8x16x8xi32>
    %c15_i32 = arith.constant 15 : i32
    %22 = vector.broadcast %c15_i32 : i32 to vector<8x16x8xi32>
    %23 = arith.cmpi sge, %17, %22 : vector<8x16x8xi32>
    %24 = arith.andi %21, %23 : vector<8x16x8xi1>
    %cst_4 = arith.constant 1.000000e+00 : f32
    %25 = vector.broadcast %cst_4 : f32 to vector<8x16x8xf32>
    %26 = arith.select %24, %25, %19 : vector<8x16x8xi1>, vector<8x16x8xf32>
    %c1_i32 = arith.constant 1 : i32
    %27 = vector.broadcast %c1_i32 : i32 to vector<8x16x8xi32>
    %28 = arith.cmpi eq, %18, %27 : vector<8x16x8xi32>
    %c14_i32 = arith.constant 14 : i32
    %29 = vector.broadcast %c14_i32 : i32 to vector<8x16x8xi32>
    %30 = arith.cmpi sge, %17, %29 : vector<8x16x8xi32>
    %31 = arith.andi %28, %30 : vector<8x16x8xi1>
    %cst_5 = arith.constant 1.000000e+00 : f32
    %32 = vector.broadcast %cst_5 : f32 to vector<8x16x8xf32>
    %33 = arith.select %31, %32, %26 : vector<8x16x8xi1>, vector<8x16x8xf32>
    %c2_i32 = arith.constant 2 : i32
    %34 = vector.broadcast %c2_i32 : i32 to vector<8x16x8xi32>
    %35 = arith.cmpi eq, %18, %34 : vector<8x16x8xi32>
    %c13_i32 = arith.constant 13 : i32
    %36 = vector.broadcast %c13_i32 : i32 to vector<8x16x8xi32>
    %37 = arith.cmpi sge, %17, %36 : vector<8x16x8xi32>
    %38 = arith.andi %35, %37 : vector<8x16x8xi1>
    %cst_6 = arith.constant 1.000000e+00 : f32
    %39 = vector.broadcast %cst_6 : f32 to vector<8x16x8xf32>
    %40 = arith.select %38, %39, %33 : vector<8x16x8xi1>, vector<8x16x8xf32>
    %c3_i32 = arith.constant 3 : i32
    %41 = vector.broadcast %c3_i32 : i32 to vector<8x16x8xi32>
    %42 = arith.cmpi eq, %18, %41 : vector<8x16x8xi32>
    %c12_i32 = arith.constant 12 : i32
    %43 = vector.broadcast %c12_i32 : i32 to vector<8x16x8xi32>
    %44 = arith.cmpi sge, %17, %43 : vector<8x16x8xi32>
    %45 = arith.andi %42, %44 : vector<8x16x8xi1>
    %cst_7 = arith.constant 1.000000e+00 : f32
    %46 = vector.broadcast %cst_7 : f32 to vector<8x16x8xf32>
    %47 = arith.select %45, %46, %40 : vector<8x16x8xi1>, vector<8x16x8xf32>
    %48 = tpu.concatenate %12, %13, %14, %15, %16, %47 in 2 : vector<8x16x16xf32>, vector<8x16x16xf32>, vector<8x16x16xf32>, vector<8x16x16xf32>, vector<8x16x16xf32>, vector<8x16x8xf32> -> vector<8x16x88xf32>
    %49 = vector.shape_cast %48 : vector<8x16x88xf32> to vector<128x88xf32>
    %50 = arith.truncf %49 : vector<128x88xf32> to vector<128x88xbf16>
    %c0_8 = arith.constant 0 : index
    %c0_9 = arith.constant 0 : index
    %51 = vector.load %arg3[%c0_8, %c0_9] : memref<88x1536xbf16, #tpu.memory_space<vmem>>, vector<88x1536xbf16>
    %cst_10 = arith.constant dense<0.000000e+00> : vector<128x1536xf32>
    %52 = tpu.matmul %50, %51, %cst_10 {dimension_numbers = #tpu.dot_dimension_numbers<[1], [0], [0], [1], [0, 0, 1, 1], [], []>} : vector<128x88xbf16>, vector<88x1536xbf16>, vector<128x1536xf32> -> vector<128x1536xf32>
    %53 = vector.shape_cast %52 : vector<128x1536xf32> to vector<8x16x1536xf32>
    %cst_11 = arith.constant dense<0xFF800000> : vector<8x1536xf32>
    %54 = vector.multi_reduction <maximumf>, %53, %cst_11 [1] : vector<8x16x1536xf32> to vector<8x1536xf32>
    %c0_12 = arith.constant 0 : index
    %c0_13 = arith.constant 0 : index
    %55 = vector.load %arg4[%c0_12, %c0_13] : memref<1x1536xf32, #tpu.memory_space<vmem>>, vector<1x1536xf32>
    %56 = vector.broadcast %55 : vector<1x1536xf32> to vector<8x1536xf32>
    %57 = arith.addf %54, %56 : vector<8x1536xf32>
    %58 = math.tanh %57 : vector<8x1536xf32>
    %59 = arith.truncf %58 : vector<8x1536xf32> to vector<8x1536xbf16>
    %c0_14 = arith.constant 0 : index
    %c0_15 = arith.constant 0 : index
    %60 = vector.load %arg5[%c0_14, %c0_15] : memref<1536x128xbf16, #tpu.memory_space<vmem>>, vector<1536x128xbf16>
    %cst_16 = arith.constant dense<0.000000e+00> : vector<8x128xf32>
    %61 = tpu.matmul %59, %60, %cst_16 {dimension_numbers = #tpu.dot_dimension_numbers<[1], [0], [0], [1], [0, 0, 1, 1], [], []>} : vector<8x1536xbf16>, vector<1536x128xbf16>, vector<8x128xf32> -> vector<8x128xf32>
    %c0_17 = arith.constant 0 : index
    %c0_18 = arith.constant 0 : index
    %62 = vector.load %arg6[%c0_17, %c0_18] : memref<1x128xf32, #tpu.memory_space<vmem>>, vector<1x128xf32>
    %63 = vector.broadcast %62 : vector<1x128xf32> to vector<8x128xf32>
    %64 = arith.addf %61, %63 : vector<8x128xf32>
    %c0_19 = arith.constant 0 : index
    %c0_20 = arith.constant 0 : index
    %65 = vector.load %arg7[%c0_19, %c0_20] : memref<8x128xf32, #tpu.memory_space<vmem>>, vector<8x128xf32>
    tpu.vector_store %arg7[%c0_19, %c0_20], %64 {strides = array<i32>} : memref<8x128xf32, #tpu.memory_space<vmem>>, vector<8x128xf32>,
    return
  }
  func.func @transform_0(%arg0: i32) -> (i32, i32) {
    %c0_i32 = arith.constant 0 : i32
    %c0_i32_0 = arith.constant 0 : i32
    return %arg0, %c0_i32 : i32, i32
  }
  func.func @transform_1(%arg0: i32) -> (i32, i32) {
    %c0_i32 = arith.constant 0 : i32
    %c0_i32_0 = arith.constant 0 : i32
    %c0_i32_1 = arith.constant 0 : i32
    return %c0_i32, %c0_i32_0 : i32, i32
  }
  func.func @transform_2(%arg0: i32) -> (i32, i32) {
    %c0_i32 = arith.constant 0 : i32
    %c0_i32_0 = arith.constant 0 : i32
    %c0_i32_1 = arith.constant 0 : i32
    return %c0_i32, %c0_i32_0 : i32, i32
  }
  func.func @transform_3(%arg0: i32) -> (i32, i32) {
    %c0_i32 = arith.constant 0 : i32
    %c0_i32_0 = arith.constant 0 : i32
    %c0_i32_1 = arith.constant 0 : i32
    return %c0_i32, %c0_i32_0 : i32, i32
  }
  func.func @transform_4(%arg0: i32) -> (i32, i32) {
    %c0_i32 = arith.constant 0 : i32
    %c0_i32_0 = arith.constant 0 : i32
    %c0_i32_1 = arith.constant 0 : i32
    return %c0_i32, %c0_i32_0 : i32, i32
  }
  func.func @transform_5(%arg0: i32) -> (i32, i32) {
    %c0_i32 = arith.constant 0 : i32
    %c0_i32_0 = arith.constant 0 : i32
    %c0_i32_1 = arith.constant 0 : i32
    return %c0_i32, %c0_i32_0 : i32, i32
  }
  func.func @transform_6(%arg0: i32) -> (i32, i32) {
    %c0_i32 = arith.constant 0 : i32
    %c0_i32_0 = arith.constant 0 : i32
    return %arg0, %c0_i32 : i32, i32
  }
}

</mosaic_0001>

<llo_original>
// kernel: tpu_custom_call.1
$region0: #{tpu_custom_call.1}
  #allocation0 [shape = 'u32[]', space=smem, size = 0x4, offset = 0x4, fixed_abs, tag = 'smem constant byte address 0x4 - core index']
  #allocation1 [shape = 'u32[144,128]{1,0:T(1,128)}', space=vmem, size = 0x12000, scoped, tag = 'internal scratch']
  %s0 = inlined_call_operand.vmem [shape: s32[8,24], index: 0, kind: input, shape index: {}]
  %s1 = inlined_call_operand.vmem [shape: bf16[128,16], index: 1, kind: input, shape index: {}]
  %s2 = inlined_call_operand.hbm [shape: bf16[88,1536], index: 2, kind: input, shape index: {}]
  %s3 = inlined_call_operand.vmem [shape: f32[1,1536], index: 3, kind: input, shape index: {}]
  %s4 = inlined_call_operand.hbm [shape: bf16[1536,128], index: 4, kind: input, shape index: {}]
  %s5 = inlined_call_operand.vmem [shape: f32[1,128], index: 5, kind: input, shape index: {}]
  %s6 = inlined_call_operand.hbm [shape: f32[8,128], index: 6, kind: output, shape index: {}]
  %s7 = sld [smem:[#allocation0]]
  $region42: #{tpu_custom_call.1} parent=0
    _
  %s9 = ssub.s32 1, %s7
  %s10 = scalar_select 0, %s9, %s7
  $region1: #{tpu_custom_call.1} parent=0
    #allocation2 [shape = 'u8[270336]{0}', space=vmem, size = 0x42000, scoped, tag = 'input window, operand 2, single buffered']
    #allocation3 [shape = 's32[1]{0}', space=sflag, size = 0x4, scoped, tag = 'scoped memory for tpu_custom_call.1']
    #allocation4 [shape = 's32[1]{0}', space=sflag, size = 0x4, scoped, tag = 'scoped memory for tpu_custom_call.1']
    #allocation5 [shape = 'u8[393216]{0}', space=vmem, size = 0x60000, scoped, tag = 'input window, operand 4, single buffered']
    #allocation6 [shape = 's32[1]{0}', space=sflag, size = 0x4, scoped, tag = 'scoped memory for tpu_custom_call.1']
    #allocation7 [shape = 'u8[4096]{0}', space=vmem, size = 0x1000, scoped, tag = 'output window, operand 0, single buffered']
    %11 = vsyncpa [#allocation3], 0
    %12 = vsyncpa [#allocation6], 0
    %13 = vsyncpa [#allocation4], 0
    // Predicated region
    $region2: #{tpu_custom_call.1} parent=1 // pred_check
      _
    $region3: #{tpu_custom_call.1} parent=1 // pred_check_branch
      %15 = sbr.rel (0) target = $region5
    $region4: #{tpu_custom_call.1} parent=1 // pred_region
      _
    $region5: #{tpu_custom_call.1} parent=1 // pred_fallthru
      _
    // Predicated region
    $region6: #{tpu_custom_call.1} parent=1 // pred_check
      _
    $region7: #{tpu_custom_call.1} parent=1 // pred_check_branch
      %17 = sbr.rel (0) target = $region9
    $region8: #{tpu_custom_call.1} parent=1 // pred_region
      _
    $region9: #{tpu_custom_call.1} parent=1 // pred_fallthru
      _
    // Predicated region
    $region10: #{tpu_custom_call.1} parent=1 // pred_check
      _
    $region11: #{tpu_custom_call.1} parent=1 // pred_check_branch
      %19 = sbr.rel (0) target = $region13
    $region12: #{tpu_custom_call.1} parent=1 // pred_region
      %s21 = ssub.s32 8448, 8448
      %22 = vsyncadd [#allocation3], %s21
      %s23 = sshll.u32 [#allocation2], 4
      %s24 = int_to_ptr.vmem [resolvable:$true] %s23
      %29 = dma.hbm_to_vmem [thread:$0]  %s2, 8448, %s24, [#allocation3], 768, 768, 48
    $region13: #{tpu_custom_call.1} parent=1 // pred_fallthru
      _
    // Predicated region
    $region14: #{tpu_custom_call.1} parent=1 // pred_check
      _
    $region15: #{tpu_custom_call.1} parent=1 // pred_check_branch
      %31 = sbr.rel (0) target = $region17
    $region16: #{tpu_custom_call.1} parent=1 // pred_region
      _
    $region17: #{tpu_custom_call.1} parent=1 // pred_fallthru
      _
    // Predicated region
    $region18: #{tpu_custom_call.1} parent=1 // pred_check
      _
    $region19: #{tpu_custom_call.1} parent=1 // pred_check_branch
      %33 = sbr.rel (0) target = $region21
    $region20: #{tpu_custom_call.1} parent=1 // pred_region
      %s35 = ssub.s32 12288, 12288
      %36 = vsyncadd [#allocation6], %s35
      %s37 = sshll.u32 [#allocation5], 4
      %s38 = int_to_ptr.vmem [resolvable:$true] %s37
      %43 = dma.hbm_to_vmem [thread:$0]  %s4, 12288, %s38, [#allocation6], 64, 64, 4
    $region21: #{tpu_custom_call.1} parent=1 // pred_fallthru
      _
    // Predicated region
    $region22: #{tpu_custom_call.1} parent=1 // pred_check
      _
    $region23: #{tpu_custom_call.1} parent=1 // pred_check_branch
      %45 = sbr.rel (0) target = $region25
    $region24: #{tpu_custom_call.1} parent=1 // pred_region
      _
    $region25: #{tpu_custom_call.1} parent=1 // pred_fallthru
      _
    // Predicated region
    $region26: #{tpu_custom_call.1} parent=1 // pred_check
      _
    $region27: #{tpu_custom_call.1} parent=1 // pred_check_branch
      %47 = sbr.rel (0) target = $region29
    $region28: #{tpu_custom_call.1} parent=1 // pred_region
      %48 = dma.done [#allocation3], 8448
    $region29: #{tpu_custom_call.1} parent=1 // pred_fallthru
      _
    // Predicated region
    $region30: #{tpu_custom_call.1} parent=1 // pred_check
      _
    $region31: #{tpu_custom_call.1} parent=1 // pred_check_branch
      %50 = sbr.rel (0) target = $region33
    $region32: #{tpu_custom_call.1} parent=1 // pred_region
      %51 = dma.done [#allocation6], 12288
    $region33: #{tpu_custom_call.1} parent=1 // pred_fallthru
      _
    %v53 = vld [vmem:[%s0] sm:$0xff]
    %v54 = vlaneseq
    %v55 = vshrl.u32 %v54, 7
    %v56 = vsub.s32 0, %v55
    %v57 = vrot.slane %v53, %v56
    %59 = vbcast.lane.b32.xlu0 %v57, 256
    %v60 = vpop.permute.xlu0 %59
    %s62 = sor.u32 256, 8
    %63 = vbcast.lane.b32.xlu0 %v57, %s62
    %v64 = vpop.permute.xlu0 %63
    %s66 = sor.u32 256, 16
    %67 = vbcast.lane.b32.xlu0 %v57, %s66
    %v68 = vpop.permute.xlu0 %67
    %v69 = vlaneseq
    %v70 = vshrl.u32 %v69, 7
    %v71 = vsub.s32 1, %v70
    %v72 = vrot.slane %v53, %v71
    %74 = vbcast.lane.b32.xlu0 %v72, 256
    %v75 = vpop.permute.xlu0 %74
    %s77 = sor.u32 256, 8
    %78 = vbcast.lane.b32.xlu0 %v72, %s77
    %v79 = vpop.permute.xlu0 %78
    %s81 = sor.u32 256, 16
    %82 = vbcast.lane.b32.xlu0 %v72, %s81
    %v83 = vpop.permute.xlu0 %82
    %v84 = vlaneseq
    %v85 = vshrl.u32 %v84, 7
    %v86 = vsub.s32 2, %v85
    %v87 = vrot.slane %v53, %v86
    %89 = vbcast.lane.b32.xlu0 %v87, 256
    %v90 = vpop.permute.xlu0 %89
    %s92 = sor.u32 256, 8
    %93 = vbcast.lane.b32.xlu0 %v87, %s92
    %v94 = vpop.permute.xlu0 %93
    %s96 = sor.u32 256, 16
    %97 = vbcast.lane.b32.xlu0 %v87, %s96
    %v98 = vpop.permute.xlu0 %97
    %v99 = vlaneseq
    %v100 = vshrl.u32 %v99, 7
    %v101 = vsub.s32 3, %v100
    %v102 = vrot.slane %v53, %v101
    %104 = vbcast.lane.b32.xlu0 %v102, 256
    %v105 = vpop.permute.xlu0 %104
    %s107 = sor.u32 256, 8
    %108 = vbcast.lane.b32.xlu0 %v102, %s107
    %v109 = vpop.permute.xlu0 %108
    %s111 = sor.u32 256, 16
    %112 = vbcast.lane.b32.xlu0 %v102, %s111
    %v113 = vpop.permute.xlu0 %112
    %v114 = vlaneseq
    %v115 = vshrl.u32 %v114, 7
    %v116 = vsub.s32 4, %v115
    %v117 = vrot.slane %v53, %v116
    %119 = vbcast.lane.b32.xlu0 %v117, 256
    %v120 = vpop.permute.xlu0 %119
    %s122 = sor.u32 256, 8
    %123 = vbcast.lane.b32.xlu0 %v117, %s122
    %v124 = vpop.permute.xlu0 %123
    %s126 = sor.u32 256, 16
    %127 = vbcast.lane.b32.xlu0 %v117, %s126
    %v128 = vpop.permute.xlu0 %127
    %v129 = vlaneseq
    %v130 = vshrl.u32 %v129, 7
    %v131 = vsub.s32 5, %v130
    %v132 = vrot.slane %v53, %v131
    %134 = vbcast.lane.b32.xlu0 %v132, 256
    %v135 = vpop.permute.xlu0 %134
    %s137 = sor.u32 256, 8
    %138 = vbcast.lane.b32.xlu0 %v132, %s137
    %v139 = vpop.permute.xlu0 %138
    %s141 = sor.u32 256, 16
    %142 = vbcast.lane.b32.xlu0 %v132, %s141
    %v143 = vpop.permute.xlu0 %142
    %v144 = vlaneseq
    %v145 = vshrl.u32 %v144, 7
    %v146 = vsub.s32 6, %v145
    %v147 = vrot.slane %v53, %v146
    %149 = vbcast.lane.b32.xlu0 %v147, 256
    %v150 = vpop.permute.xlu0 %149
    %s152 = sor.u32 256, 8
    %153 = vbcast.lane.b32.xlu0 %v147, %s152
    %v154 = vpop.permute.xlu0 %153
    %s156 = sor.u32 256, 16
    %157 = vbcast.lane.b32.xlu0 %v147, %s156
    %v158 = vpop.permute.xlu0 %157
    %v159 = vlaneseq
    %v160 = vshrl.u32 %v159, 7
    %v161 = vsub.s32 7, %v160
    %v162 = vrot.slane %v53, %v161
    %164 = vbcast.lane.b32.xlu0 %v162, 256
    %v165 = vpop.permute.xlu0 %164
    %s167 = sor.u32 256, 8
    %168 = vbcast.lane.b32.xlu0 %v162, %s167
    %v169 = vpop.permute.xlu0 %168
    %s171 = sor.u32 256, 16
    %172 = vbcast.lane.b32.xlu0 %v162, %s171
    %v173 = vpop.permute.xlu0 %172
    %v174 = vlaneseq
    %v175 = vand.u32 %v174, 127
    %vm176 = vcmp.eq.s32.totalorder %v60, %v175
    %vm177 = vcmp.eq.s32.totalorder %v64, %v175
    %vm178 = vcmp.eq.s32.totalorder %v68, %v175
    %vm179 = vcmp.eq.s32.totalorder %v75, %v175
    %vm180 = vcmp.eq.s32.totalorder %v79, %v175
    %vm181 = vcmp.eq.s32.totalorder %v83, %v175
    %vm182 = vcmp.eq.s32.totalorder %v90, %v175
    %vm183 = vcmp.eq.s32.totalorder %v94, %v175
    %vm184 = vcmp.eq.s32.totalorder %v98, %v175
    %vm185 = vcmp.eq.s32.totalorder %v105, %v175
    %vm186 = vcmp.eq.s32.totalorder %v109, %v175
    %vm187 = vcmp.eq.s32.totalorder %v113, %v175
    %vm188 = vcmp.eq.s32.totalorder %v120, %v175
    %vm189 = vcmp.eq.s32.totalorder %v124, %v175
    %vm190 = vcmp.eq.s32.totalorder %v128, %v175
    %vm191 = vcmp.eq.s32.totalorder %v135, %v175
    %vm192 = vcmp.eq.s32.totalorder %v139, %v175
    %vm193 = vcmp.eq.s32.totalorder %v143, %v175
    %vm194 = vcmp.eq.s32.totalorder %v150, %v175
    %vm195 = vcmp.eq.s32.totalorder %v154, %v175
    %vm196 = vcmp.eq.s32.totalorder %v158, %v175
    %vm197 = vcmp.eq.s32.totalorder %v165, %v175
    %vm198 = vcmp.eq.s32.totalorder %v169, %v175
    %vm199 = vcmp.eq.s32.totalorder %v173, %v175
    %v200 = vsel %vm176, 1, 0
    %v201 = vsel %vm177, 1, 0
    %v202 = vsel %vm178, 1, 0
    %v203 = vsel %vm179, 1, 0
    %v204 = vsel %vm180, 1, 0
    %v205 = vsel %vm181, 1, 0
    %v206 = vsel %vm182, 1, 0
    %v207 = vsel %vm183, 1, 0
    %v208 = vsel %vm184, 1, 0
    %v209 = vsel %vm185, 1, 0
    %v210 = vsel %vm186, 1, 0
    %v211 = vsel %vm187, 1, 0
    %v212 = vsel %vm188, 1, 0
    %v213 = vsel %vm189, 1, 0
    %v214 = vsel %vm190, 1, 0
    %v215 = vsel %vm191, 1, 0
    %v216 = vsel %vm192, 1, 0
    %v217 = vsel %vm193, 1, 0
    %v218 = vsel %vm194, 1, 0
    %v219 = vsel %vm195, 1, 0
    %v220 = vsel %vm196, 1, 0
    %v221 = vsel %vm197, 1, 0
    %v222 = vsel %vm198, 1, 0
    %v223 = vsel %vm199, 1, 0
    %v224 = vcvt.s32.f32 %v200
    %v225 = vcvt.s32.f32 %v201
    %v226 = vcvt.s32.f32 %v202
    %v227 = vcvt.s32.f32 %v203
    %v228 = vcvt.s32.f32 %v204
    %v229 = vcvt.s32.f32 %v205
    %v230 = vcvt.s32.f32 %v206
    %v231 = vcvt.s32.f32 %v207
    %v232 = vcvt.s32.f32 %v208
    %v233 = vcvt.s32.f32 %v209
    %v234 = vcvt.s32.f32 %v210
    %v235 = vcvt.s32.f32 %v211
    %v236 = vcvt.s32.f32 %v212
    %v237 = vcvt.s32.f32 %v213
    %v238 = vcvt.s32.f32 %v214
    %v239 = vcvt.s32.f32 %v215
    %v240 = vcvt.s32.f32 %v216
    %v241 = vcvt.s32.f32 %v217
    %v242 = vcvt.s32.f32 %v218
    %v243 = vcvt.s32.f32 %v219
    %v244 = vcvt.s32.f32 %v220
    %v245 = vcvt.s32.f32 %v221
    %v246 = vcvt.s32.f32 %v222
    %v247 = vcvt.s32.f32 %v223
    %v248 = vpack.c.bf16 %v225, %v224
    %v249 = vpack.c.bf16 %v227, %v226
    %v250 = vpack.c.bf16 %v229, %v228
    %v251 = vpack.c.bf16 %v231, %v230
    %v252 = vpack.c.bf16 %v233, %v232
    %v253 = vpack.c.bf16 %v235, %v234
    %v254 = vpack.c.bf16 %v237, %v236
    %v255 = vpack.c.bf16 %v239, %v238
    %v256 = vpack.c.bf16 %v241, %v240
    %v257 = vpack.c.bf16 %v243, %v242
    %v258 = vpack.c.bf16 %v245, %v244
    %v259 = vpack.c.bf16 %v247, %v246
    %v260 = vld [vmem:[%s1] sm:$0xf]
    %v261 = vld [vmem:[%s1 + $0x4] sm:$0xf]
    %v262 = vld [vmem:[%s1 + $0x8] sm:$0xf]
    %v263 = vld [vmem:[%s1 + $0xc] sm:$0xf]
    %v264 = vld [vmem:[%s1 + $0x10] sm:$0xf]
    %v265 = vld [vmem:[%s1 + $0x14] sm:$0xf]
    %v266 = vld [vmem:[%s1 + $0x18] sm:$0xf]
    %v267 = vld [vmem:[%s1 + $0x1c] sm:$0xf]
    %v268 = vld [vmem:[%s1 + $0x20] sm:$0xf]
    %v269 = vld [vmem:[%s1 + $0x24] sm:$0xf]
    %v270 = vld [vmem:[%s1 + $0x28] sm:$0xf]
    %v271 = vld [vmem:[%s1 + $0x2c] sm:$0xf]
    %v272 = vld [vmem:[%s1 + $0x30] sm:$0xf]
    %v273 = vld [vmem:[%s1 + $0x34] sm:$0xf]
    %v274 = vld [vmem:[%s1 + $0x38] sm:$0xf]
    %v275 = vld [vmem:[%s1 + $0x3c] sm:$0xf]
    %v292 = vunpack.c.l.b16 %v260
    %v293 = vunpack.c.l.b16 %v261
    %v294 = vunpack.c.l.b16 %v262
    %v295 = vunpack.c.l.b16 %v263
    %v296 = vunpack.c.l.b16 %v264
    %v297 = vunpack.c.l.b16 %v265
    %v298 = vunpack.c.l.b16 %v266
    %v299 = vunpack.c.l.b16 %v267
    %v300 = vunpack.c.l.b16 %v268
    %v301 = vunpack.c.l.b16 %v269
    %v302 = vunpack.c.l.b16 %v270
    %v303 = vunpack.c.l.b16 %v271
    %v304 = vunpack.c.l.b16 %v272
    %v305 = vunpack.c.l.b16 %v273
    %v306 = vunpack.c.l.b16 %v274
    %v307 = vunpack.c.l.b16 %v275
    %v308 = vpack.c.b16 %v293, %v292
    %v309 = vpack.c.b16 %v295, %v294
    %v310 = vpack.c.b16 %v297, %v296
    %v311 = vpack.c.b16 %v299, %v298
    %v312 = vpack.c.b16 %v301, %v300
    %v313 = vpack.c.b16 %v303, %v302
    %v314 = vpack.c.b16 %v305, %v304
    %v315 = vpack.c.b16 %v307, %v306
    %324 = vmatprep.subr.bf16.mxu0 0
    %325 = vmatpush1.bf16.msra.mxu0 %v315
    %326 = vmatprep.subr.bf16.mxu0 0
    %327 = vmatpush1.bf16.msra.mxu0 %v314
    %328 = vmatprep.subr.bf16.mxu0 0
    %329 = vmatpush1.bf16.msra.mxu0 %v313
    %330 = vmatprep.subr.bf16.mxu0 0
    %331 = vmatpush1.bf16.msra.mxu0 %v312
    %332 = vmatprep.subr.bf16.mxu0 0
    %333 = vmatpush1.bf16.msra.mxu0 %v311
    %334 = vmatprep.subr.bf16.mxu0 0
    %335 = vmatpush1.bf16.msra.mxu0 %v310
    %336 = vmatprep.subr.bf16.mxu0 0
    %337 = vmatpush1.bf16.msra.mxu0 %v309
    %338 = vmatprep.subr.bf16.mxu0 0
    %339 = vmatpush1.bf16.msra.mxu0 %v308
    %340 = vmatprep.subr.bf16.mxu0 0
    %341 = vmatpush2.bf16.msra.mxu0 0
    %342 = vmatprep.subr.bf16.mxu0 0
    %343 = vmatpush2.bf16.msra.mxu0 0
    %344 = vmatprep.subr.bf16.mxu0 0
    %345 = vmatpush2.bf16.msra.mxu0 0
    %346 = vmatprep.subr.bf16.mxu0 0
    %347 = vmatpush2.bf16.msra.mxu0 0
    %348 = vmatprep.subr.bf16.mxu0 0
    %349 = vmatpush2.bf16.msra.mxu0 0
    %350 = vmatprep.subr.bf16.mxu0 0
    %351 = vmatpush2.bf16.msra.mxu0 0
    %352 = vmatprep.subr.bf16.mxu0 0
    %353 = vmatpush2.bf16.msra.mxu0 0
    %354 = vmatprep.subr.bf16.mxu0 0
    %355 = vmatpush2.bf16.msra.mxu0 0
    %356 = vmatprep.mubr.bf16.mxu0 0
    %357 = vmatmul.mubr.bf16.gmra.mxu0 %v248
    %v358 = vpop.f32.mrf.mxu0
    %v359 = vadd.f32 0.0, %v358
    %v360 = vpop.f32.mrf.mxu0
    %v361 = vpop.f32.mrf.mxu0
    %v362 = vadd.f32 0.0, %v361
    %v363 = vpop.f32.mrf.mxu0
    %364 = vmatprep.mubr.bf16.mxu0 0
    %365 = vmatmul.mubr.bf16.gmra.mxu0 %v249
    %v366 = vpop.f32.mrf.mxu0
    %v367 = vadd.f32 0.0, %v366
    %v368 = vpop.f32.mrf.mxu0
    %v369 = vpop.f32.mrf.mxu0
    %v370 = vadd.f32 0.0, %v369
    %v371 = vpop.f32.mrf.mxu0
    %372 = vmatprep.mubr.bf16.mxu0 0
    %373 = vmatmul.mubr.bf16.gmra.mxu0 %v250
    %v374 = vpop.f32.mrf.mxu0
    %v375 = vadd.f32 0.0, %v374
    %v376 = vpop.f32.mrf.mxu0
    %v377 = vpop.f32.mrf.mxu0
    %v378 = vadd.f32 0.0, %v377
    %v379 = vpop.f32.mrf.mxu0
    %380 = vmatprep.mubr.bf16.mxu0 0
    %381 = vmatmul.mubr.bf16.gmra.mxu0 %v251
    %v382 = vpop.f32.mrf.mxu0
    %v383 = vadd.f32 0.0, %v382
    %v384 = vpop.f32.mrf.mxu0
    %v385 = vpop.f32.mrf.mxu0
    %v386 = vadd.f32 0.0, %v385
    %v387 = vpop.f32.mrf.mxu0
    %388 = vmatprep.mubr.bf16.mxu0 0
    %389 = vmatmul.mubr.bf16.gmra.mxu0 %v252
    %v390 = vpop.f32.mrf.mxu0
    %v391 = vadd.f32 0.0, %v390
    %v392 = vpop.f32.mrf.mxu0
    %v393 = vpop.f32.mrf.mxu0
    %v394 = vadd.f32 0.0, %v393
    %v395 = vpop.f32.mrf.mxu0
    %396 = vmatprep.mubr.bf16.mxu0 0
    %397 = vmatmul.mubr.bf16.gmra.mxu0 %v253
    %v398 = vpop.f32.mrf.mxu0
    %v399 = vadd.f32 0.0, %v398
    %v400 = vpop.f32.mrf.mxu0
    %v401 = vpop.f32.mrf.mxu0
    %v402 = vadd.f32 0.0, %v401
    %v403 = vpop.f32.mrf.mxu0
    %404 = vmatprep.mubr.bf16.mxu0 0
    %405 = vmatmul.mubr.bf16.gmra.mxu0 %v254
    %v406 = vpop.f32.mrf.mxu0
    %v407 = vadd.f32 0.0, %v406
    %v408 = vpop.f32.mrf.mxu0
    %v409 = vpop.f32.mrf.mxu0
    %v410 = vadd.f32 0.0, %v409
    %v411 = vpop.f32.mrf.mxu0
    %412 = vmatprep.mubr.bf16.mxu0 0
    %413 = vmatmul.mubr.bf16.gmra.mxu0 %v255
    %v414 = vpop.f32.mrf.mxu0
    %v415 = vadd.f32 0.0, %v414
    %v416 = vpop.f32.mrf.mxu0
    %v417 = vpop.f32.mrf.mxu0
    %v418 = vadd.f32 0.0, %v417
    %v419 = vpop.f32.mrf.mxu0
    %420 = vmatprep.mubr.bf16.mxu0 0
    %421 = vmatmul.mubr.bf16.gmra.mxu0 %v256
    %v422 = vpop.f32.mrf.mxu0
    %v423 = vadd.f32 0.0, %v422
    %v424 = vpop.f32.mrf.mxu0
    %v425 = vpop.f32.mrf.mxu0
    %v426 = vadd.f32 0.0, %v425
    %v427 = vpop.f32.mrf.mxu0
    %428 = vmatprep.mubr.bf16.mxu0 0
    %429 = vmatmul.mubr.bf16.gmra.mxu0 %v257
    %v430 = vpop.f32.mrf.mxu0
    %v431 = vadd.f32 0.0, %v430
    %v432 = vpop.f32.mrf.mxu0
    %v433 = vpop.f32.mrf.mxu0
    %v434 = vadd.f32 0.0, %v433
    %v435 = vpop.f32.mrf.mxu0
    %436 = vmatprep.mubr.bf16.mxu0 0
    %437 = vmatmul.mubr.bf16.gmra.mxu0 %v258
    %v438 = vpop.f32.mrf.mxu0
    %v439 = vadd.f32 0.0, %v438
    %v440 = vpop.f32.mrf.mxu0
    %v441 = vpop.f32.mrf.mxu0
    %v442 = vadd.f32 0.0, %v441
    %v443 = vpop.f32.mrf.mxu0
    %444 = vmatprep.mubr.bf16.mxu0 0
    %445 = vmatmul.mubr.bf16.gmra.mxu0 %v259
    %v446 = vpop.f32.mrf.mxu0
    %v447 = vadd.f32 0.0, %v446
    %v448 = vpop.f32.mrf.mxu0
    %v449 = vpop.f32.mrf.mxu0
    %v450 = vadd.f32 0.0, %v449
    %v451 = vpop.f32.mrf.mxu0
    %452 = vdwg.mxu0
    %v453 = vlaneseq
    %v454 = vshrl.u32 %v453, 7
    %v455 = vadd.s32 %v454, 8
    %vm456 = vcmp.eq.s32.totalorder %v175, 0
    %vm457 = vcmp.ge.s32.totalorder %v454, 15
    %vm458 = vcmp.ge.s32.totalorder %v455, 15
    %vm459 = vmand %vm456, %vm457
    %vm460 = vmand %vm456, %vm458
    %v461 = vsel %vm459, 1.0, 0.0
    %v462 = vsel %vm460, 1.0, 0.0
    %vm463 = vcmp.eq.s32.totalorder %v175, 1
    %vm464 = vcmp.ge.s32.totalorder %v454, 14
    %vm465 = vcmp.ge.s32.totalorder %v455, 14
    %vm466 = vmand %vm463, %vm464
    %vm467 = vmand %vm463, %vm465
    %v468 = vsel %vm466, 1.0, %v461
    %v469 = vsel %vm467, 1.0, %v462
    %vm470 = vcmp.eq.s32.totalorder %v175, 2
    %vm471 = vcmp.ge.s32.totalorder %v454, 13
    %vm472 = vcmp.ge.s32.totalorder %v455, 13
    %vm473 = vmand %vm470, %vm471
    %vm474 = vmand %vm470, %vm472
    %v475 = vsel %vm473, 1.0, %v468
    %v476 = vsel %vm474, 1.0, %v469
    %vm477 = vcmp.eq.s32.totalorder %v175, 3
    %vm478 = vcmp.ge.s32.totalorder %v454, 12
    %vm479 = vcmp.ge.s32.totalorder %v455, 12
    %vm480 = vmand %vm477, %vm478
    %vm481 = vmand %vm477, %vm479
    %v482 = vsel %vm480, 1.0, %v475
    %v483 = vsel %vm481, 1.0, %v476
    %vm508 = vcmask 1046528
    %v509 = vrot.slane %v359, 1
    %v510 = vrot.slane %v362, 1
    %v511 = vsel %vm508, %v509, %v510
    %v512 = vrot.slane %v367, 1
    %v513 = vsel %vm508, %v510, %v512
    %v514 = vrot.slane %v370, 1
    %v515 = vrot.slane %v375, 1
    %v516 = vsel %vm508, %v514, %v515
    %v517 = vrot.slane %v378, 1
    %v518 = vsel %vm508, %v515, %v517
    %v519 = vrot.slane %v383, 1
    %v520 = vrot.slane %v386, 1
    %v521 = vsel %vm508, %v519, %v520
    %v522 = vrot.slane %v391, 1
    %v523 = vsel %vm508, %v520, %v522
    %v524 = vrot.slane %v394, 1
    %v525 = vrot.slane %v399, 1
    %v526 = vsel %vm508, %v524, %v525
    %v527 = vrot.slane %v402, 1
    %v528 = vsel %vm508, %v525, %v527
    %v529 = vrot.slane %v407, 1
    %v530 = vrot.slane %v410, 1
    %v531 = vsel %vm508, %v529, %v530
    %v532 = vrot.slane %v415, 1
    %v533 = vsel %vm508, %v530, %v532
    %v534 = vrot.slane %v418, 1
    %v535 = vrot.slane %v423, 1
    %v536 = vsel %vm508, %v534, %v535
    %v537 = vrot.slane %v426, 1
    %v538 = vsel %vm508, %v535, %v537
    %v539 = vrot.slane %v431, 1
    %v540 = vrot.slane %v434, 1
    %v541 = vsel %vm508, %v539, %v540
    %v542 = vrot.slane %v439, 1
    %v543 = vsel %vm508, %v540, %v542
    %v544 = vrot.slane %v442, 1
    %v545 = vrot.slane %v447, 1
    %v546 = vsel %vm508, %v544, %v545
    %v547 = vrot.slane %v450, 1
    %v548 = vsel %vm508, %v545, %v547
    %549 = vrot.lane.b32.xlu0 %v511, 16
    %v550 = vpop.permute.xlu0 %549
    %551 = vrot.lane.b32.xlu0 %v513, 16
    %v552 = vpop.permute.xlu0 %551
    %553 = vrot.lane.b32.xlu0 %v516, 16
    %v554 = vpop.permute.xlu0 %553
    %555 = vrot.lane.b32.xlu0 %v518, 16
    %v556 = vpop.permute.xlu0 %555
    %557 = vrot.lane.b32.xlu0 %v521, 16
    %v558 = vpop.permute.xlu0 %557
    %559 = vrot.lane.b32.xlu0 %v523, 16
    %v560 = vpop.permute.xlu0 %559
    %561 = vrot.lane.b32.xlu0 %v526, 16
    %v562 = vpop.permute.xlu0 %561
    %563 = vrot.lane.b32.xlu0 %v528, 16
    %v564 = vpop.permute.xlu0 %563
    %565 = vrot.lane.b32.xlu0 %v531, 16
    %v566 = vpop.permute.xlu0 %565
    %567 = vrot.lane.b32.xlu0 %v533, 16
    %v568 = vpop.permute.xlu0 %567
    %569 = vrot.lane.b32.xlu0 %v536, 16
    %v570 = vpop.permute.xlu0 %569
    %571 = vrot.lane.b32.xlu0 %v538, 16
    %v572 = vpop.permute.xlu0 %571
    %573 = vrot.lane.b32.xlu0 %v541, 16
    %v574 = vpop.permute.xlu0 %573
    %575 = vrot.lane.b32.xlu0 %v543, 16
    %v576 = vpop.permute.xlu0 %575
    %577 = vrot.lane.b32.xlu0 %v546, 16
    %v578 = vpop.permute.xlu0 %577
    %579 = vrot.lane.b32.xlu0 %v548, 16
    %v580 = vpop.permute.xlu0 %579
    %vm597 = vcmask 1045504
    %v598 = vrot.slane %v359, 2
    %v599 = vrot.slane %v362, 2
    %v600 = vsel %vm597, %v598, %v599
    %v601 = vrot.slane %v367, 2
    %v602 = vsel %vm597, %v599, %v601
    %v603 = vrot.slane %v370, 2
    %v604 = vrot.slane %v375, 2
    %v605 = vsel %vm597, %v603, %v604
    %v606 = vrot.slane %v378, 2
    %v607 = vsel %vm597, %v604, %v606
    %v608 = vrot.slane %v383, 2
    %v609 = vrot.slane %v386, 2
    %v610 = vsel %vm597, %v608, %v609
    %v611 = vrot.slane %v391, 2
    %v612 = vsel %vm597, %v609, %v611
    %v613 = vrot.slane %v394, 2
    %v614 = vrot.slane %v399, 2
    %v615 = vsel %vm597, %v613, %v614
    %v616 = vrot.slane %v402, 2
    %v617 = vsel %vm597, %v614, %v616
    %v618 = vrot.slane %v407, 2
    %v619 = vrot.slane %v410, 2
    %v620 = vsel %vm597, %v618, %v619
    %v621 = vrot.slane %v415, 2
    %v622 = vsel %vm597, %v619, %v621
    %v623 = vrot.slane %v418, 2
    %v624 = vrot.slane %v423, 2
    %v625 = vsel %vm597, %v623, %v624
    %v626 = vrot.slane %v426, 2
    %v627 = vsel %vm597, %v624, %v626
    %v628 = vrot.slane %v431, 2
    %v629 = vrot.slane %v434, 2
    %v630 = vsel %vm597, %v628, %v629
    %v631 = vrot.slane %v439, 2
    %v632 = vsel %vm597, %v629, %v631
    %v633 = vrot.slane %v442, 2
    %v634 = vrot.slane %v447, 2
    %v635 = vsel %vm597, %v633, %v634
    %v636 = vrot.slane %v450, 2
    %v637 = vsel %vm597, %v634, %v636
    %638 = vrot.lane.b32.xlu0 %v600, 32
    %v639 = vpop.permute.xlu0 %638
    %640 = vrot.lane.b32.xlu0 %v602, 32
    %v641 = vpop.permute.xlu0 %640
    %642 = vrot.lane.b32.xlu0 %v605, 32
    %v643 = vpop.permute.xlu0 %642
    %644 = vrot.lane.b32.xlu0 %v607, 32
    %v645 = vpop.permute.xlu0 %644
    %646 = vrot.lane.b32.xlu0 %v610, 32
    %v647 = vpop.permute.xlu0 %646
    %648 = vrot.lane.b32.xlu0 %v612, 32
    %v649 = vpop.permute.xlu0 %648
    %650 = vrot.lane.b32.xlu0 %v615, 32
    %v651 = vpop.permute.xlu0 %650
    %652 = vrot.lane.b32.xlu0 %v617, 32
    %v653 = vpop.permute.xlu0 %652
    %654 = vrot.lane.b32.xlu0 %v620, 32
    %v655 = vpop.permute.xlu0 %654
    %656 = vrot.lane.b32.xlu0 %v622, 32
    %v657 = vpop.permute.xlu0 %656
    %658 = vrot.lane.b32.xlu0 %v625, 32
    %v659 = vpop.permute.xlu0 %658
    %660 = vrot.lane.b32.xlu0 %v627, 32
    %v661 = vpop.permute.xlu0 %660
    %662 = vrot.lane.b32.xlu0 %v630, 32
    %v663 = vpop.permute.xlu0 %662
    %664 = vrot.lane.b32.xlu0 %v632, 32
    %v665 = vpop.permute.xlu0 %664
    %666 = vrot.lane.b32.xlu0 %v635, 32
    %v667 = vpop.permute.xlu0 %666
    %668 = vrot.lane.b32.xlu0 %v637, 32
    %v669 = vpop.permute.xlu0 %668
    %vm686 = vcmask 1044480
    %v687 = vrot.slane %v359, 3
    %v688 = vrot.slane %v362, 3
    %v689 = vsel %vm686, %v687, %v688
    %v690 = vrot.slane %v367, 3
    %v691 = vsel %vm686, %v688, %v690
    %v692 = vrot.slane %v370, 3
    %v693 = vrot.slane %v375, 3
    %v694 = vsel %vm686, %v692, %v693
    %v695 = vrot.slane %v378, 3
    %v696 = vsel %vm686, %v693, %v695
    %v697 = vrot.slane %v383, 3
    %v698 = vrot.slane %v386, 3
    %v699 = vsel %vm686, %v697, %v698
    %v700 = vrot.slane %v391, 3
    %v701 = vsel %vm686, %v698, %v700
    %v702 = vrot.slane %v394, 3
    %v703 = vrot.slane %v399, 3
    %v704 = vsel %vm686, %v702, %v703
    %v705 = vrot.slane %v402, 3
    %v706 = vsel %vm686, %v703, %v705
    %v707 = vrot.slane %v407, 3
    %v708 = vrot.slane %v410, 3
    %v709 = vsel %vm686, %v707, %v708
    %v710 = vrot.slane %v415, 3
    %v711 = vsel %vm686, %v708, %v710
    %v712 = vrot.slane %v418, 3
    %v713 = vrot.slane %v423, 3
    %v714 = vsel %vm686, %v712, %v713
    %v715 = vrot.slane %v426, 3
    %v716 = vsel %vm686, %v713, %v715
    %v717 = vrot.slane %v431, 3
    %v718 = vrot.slane %v434, 3
    %v719 = vsel %vm686, %v717, %v718
    %v720 = vrot.slane %v439, 3
    %v721 = vsel %vm686, %v718, %v720
    %v722 = vrot.slane %v442, 3
    %v723 = vrot.slane %v447, 3
    %v724 = vsel %vm686, %v722, %v723
    %v725 = vrot.slane %v450, 3
    %v726 = vsel %vm686, %v723, %v725
    %727 = vrot.lane.b32.xlu0 %v689, 48
    %v728 = vpop.permute.xlu0 %727
    %729 = vrot.lane.b32.xlu0 %v691, 48
    %v730 = vpop.permute.xlu0 %729
    %731 = vrot.lane.b32.xlu0 %v694, 48
    %v732 = vpop.permute.xlu0 %731
    %733 = vrot.lane.b32.xlu0 %v696, 48
    %v734 = vpop.permute.xlu0 %733
    %735 = vrot.lane.b32.xlu0 %v699, 48
    %v736 = vpop.permute.xlu0 %735
    %737 = vrot.lane.b32.xlu0 %v701, 48
    %v738 = vpop.permute.xlu0 %737
    %739 = vrot.lane.b32.xlu0 %v704, 48
    %v740 = vpop.permute.xlu0 %739
    %741 = vrot.lane.b32.xlu0 %v706, 48
    %v742 = vpop.permute.xlu0 %741
    %743 = vrot.lane.b32.xlu0 %v709, 48
    %v744 = vpop.permute.xlu0 %743
    %745 = vrot.lane.b32.xlu0 %v711, 48
    %v746 = vpop.permute.xlu0 %745
    %747 = vrot.lane.b32.xlu0 %v714, 48
    %v748 = vpop.permute.xlu0 %747
    %749 = vrot.lane.b32.xlu0 %v716, 48
    %v750 = vpop.permute.xlu0 %749
    %751 = vrot.lane.b32.xlu0 %v719, 48
    %v752 = vpop.permute.xlu0 %751
    %753 = vrot.lane.b32.xlu0 %v721, 48
    %v754 = vpop.permute.xlu0 %753
    %755 = vrot.lane.b32.xlu0 %v724, 48
    %v756 = vpop.permute.xlu0 %755
    %757 = vrot.lane.b32.xlu0 %v726, 48
    %v758 = vpop.permute.xlu0 %757
    %vm775 = vcmask 1043456
    %v776 = vrot.slane %v359, 4
    %v777 = vrot.slane %v362, 4
    %v778 = vsel %vm775, %v776, %v777
    %v779 = vrot.slane %v367, 4
    %v780 = vsel %vm775, %v777, %v779
    %v781 = vrot.slane %v370, 4
    %v782 = vrot.slane %v375, 4
    %v783 = vsel %vm775, %v781, %v782
    %v784 = vrot.slane %v378, 4
    %v785 = vsel %vm775, %v782, %v784
    %v786 = vrot.slane %v383, 4
    %v787 = vrot.slane %v386, 4
    %v788 = vsel %vm775, %v786, %v787
    %v789 = vrot.slane %v391, 4
    %v790 = vsel %vm775, %v787, %v789
    %v791 = vrot.slane %v394, 4
    %v792 = vrot.slane %v399, 4
    %v793 = vsel %vm775, %v791, %v792
    %v794 = vrot.slane %v402, 4
    %v795 = vsel %vm775, %v792, %v794
    %v796 = vrot.slane %v407, 4
    %v797 = vrot.slane %v410, 4
    %v798 = vsel %vm775, %v796, %v797
    %v799 = vrot.slane %v415, 4
    %v800 = vsel %vm775, %v797, %v799
    %v801 = vrot.slane %v418, 4
    %v802 = vrot.slane %v423, 4
    %v803 = vsel %vm775, %v801, %v802
    %v804 = vrot.slane %v426, 4
    %v805 = vsel %vm775, %v802, %v804
    %v806 = vrot.slane %v431, 4
    %v807 = vrot.slane %v434, 4
    %v808 = vsel %vm775, %v806, %v807
    %v809 = vrot.slane %v439, 4
    %v810 = vsel %vm775, %v807, %v809
    %v811 = vrot.slane %v442, 4
    %v812 = vrot.slane %v447, 4
    %v813 = vsel %vm775, %v811, %v812
    %v814 = vrot.slane %v450, 4
    %v815 = vsel %vm775, %v812, %v814
    %816 = vrot.lane.b32.xlu0 %v778, 64
    %v817 = vpop.permute.xlu0 %816
    %818 = vrot.lane.b32.xlu0 %v780, 64
    %v819 = vpop.permute.xlu0 %818
    %820 = vrot.lane.b32.xlu0 %v783, 64
    %v821 = vpop.permute.xlu0 %820
    %822 = vrot.lane.b32.xlu0 %v785, 64
    %v823 = vpop.permute.xlu0 %822
    %824 = vrot.lane.b32.xlu0 %v788, 64
    %v825 = vpop.permute.xlu0 %824
    %826 = vrot.lane.b32.xlu0 %v790, 64
    %v827 = vpop.permute.xlu0 %826
    %828 = vrot.lane.b32.xlu0 %v793, 64
    %v829 = vpop.permute.xlu0 %828
    %830 = vrot.lane.b32.xlu0 %v795, 64
    %v831 = vpop.permute.xlu0 %830
    %832 = vrot.lane.b32.xlu0 %v798, 64
    %v833 = vpop.permute.xlu0 %832
    %834 = vrot.lane.b32.xlu0 %v800, 64
    %v835 = vpop.permute.xlu0 %834
    %836 = vrot.lane.b32.xlu0 %v803, 64
    %v837 = vpop.permute.xlu0 %836
    %838 = vrot.lane.b32.xlu0 %v805, 64
    %v839 = vpop.permute.xlu0 %838
    %840 = vrot.lane.b32.xlu0 %v808, 64
    %v841 = vpop.permute.xlu0 %840
    %842 = vrot.lane.b32.xlu0 %v810, 64
    %v843 = vpop.permute.xlu0 %842
    %844 = vrot.lane.b32.xlu0 %v813, 64
    %v845 = vpop.permute.xlu0 %844
    %846 = vrot.lane.b32.xlu0 %v815, 64
    %v847 = vpop.permute.xlu0 %846
    %866 = vrot.lane.b32.xlu0 %v482, 80
    %v867 = vpop.permute.xlu0 %866
    %868 = vrot.lane.b32.xlu0 %v483, 80
    %v869 = vpop.permute.xlu0 %868
    %vm872 = vcmask 130048
    %v873 = vsel %vm872, %v359, %v550
    %v874 = vsel %vm872, %v362, %v552
    %v875 = vsel %vm872, %v370, %v554
    %v876 = vsel %vm872, %v375, %v556
    %v877 = vsel %vm872, %v383, %v558
    %v878 = vsel %vm872, %v386, %v560
    %v879 = vsel %vm872, %v394, %v562
    %v880 = vsel %vm872, %v399, %v564
    %v881 = vsel %vm872, %v407, %v566
    %v882 = vsel %vm872, %v410, %v568
    %v883 = vsel %vm872, %v418, %v570
    %v884 = vsel %vm872, %v423, %v572
    %v885 = vsel %vm872, %v431, %v574
    %v886 = vsel %vm872, %v434, %v576
    %v887 = vsel %vm872, %v442, %v578
    %v888 = vsel %vm872, %v447, %v580
    %vm889 = vcmask 261120
    %v890 = vsel %vm889, %v873, %v639
    %v891 = vsel %vm889, %v874, %v641
    %v892 = vsel %vm889, %v875, %v643
    %v893 = vsel %vm889, %v876, %v645
    %v894 = vsel %vm889, %v877, %v647
    %v895 = vsel %vm889, %v878, %v649
    %v896 = vsel %vm889, %v879, %v651
    %v897 = vsel %vm889, %v880, %v653
    %v898 = vsel %vm889, %v881, %v655
    %v899 = vsel %vm889, %v882, %v657
    %v900 = vsel %vm889, %v883, %v659
    %v901 = vsel %vm889, %v884, %v661
    %v902 = vsel %vm889, %v885, %v663
    %v903 = vsel %vm889, %v886, %v665
    %v904 = vsel %vm889, %v887, %v667
    %v905 = vsel %vm889, %v888, %v669
    %vm906 = vcmask 392192
    %v907 = vsel %vm906, %v890, %v728
    %v908 = vsel %vm906, %v891, %v730
    %v909 = vsel %vm906, %v892, %v732
    %v910 = vsel %vm906, %v893, %v734
    %v911 = vsel %vm906, %v894, %v736
    %v912 = vsel %vm906, %v895, %v738
    %v913 = vsel %vm906, %v896, %v740
    %v914 = vsel %vm906, %v897, %v742
    %v915 = vsel %vm906, %v898, %v744
    %v916 = vsel %vm906, %v899, %v746
    %v917 = vsel %vm906, %v900, %v748
    %v918 = vsel %vm906, %v901, %v750
    %v919 = vsel %vm906, %v902, %v752
    %v920 = vsel %vm906, %v903, %v754
    %v921 = vsel %vm906, %v904, %v756
    %v922 = vsel %vm906, %v905, %v758
    %vm923 = vcmask 523264
    %v924 = vsel %vm923, %v907, %v817
    %v925 = vsel %vm923, %v908, %v819
    %v926 = vsel %vm923, %v909, %v821
    %v927 = vsel %vm923, %v910, %v823
    %v928 = vsel %vm923, %v911, %v825
    %v929 = vsel %vm923, %v912, %v827
    %v930 = vsel %vm923, %v913, %v829
    %v931 = vsel %vm923, %v914, %v831
    %v932 = vsel %vm923, %v915, %v833
    %v933 = vsel %vm923, %v916, %v835
    %v934 = vsel %vm923, %v917, %v837
    %v935 = vsel %vm923, %v918, %v839
    %v936 = vsel %vm923, %v919, %v841
    %v937 = vsel %vm923, %v920, %v843
    %v938 = vsel %vm923, %v921, %v845
    %v939 = vsel %vm923, %v922, %v847
    %vm940 = vcmask 654336
    %v941 = vsel %vm940, %v924, %v867
    %v942 = vsel %vm940, %v925, %v869
    %v943 = vsel %vm940, %v926, %v867
    %v944 = vsel %vm940, %v927, %v869
    %v945 = vsel %vm940, %v928, %v867
    %v946 = vsel %vm940, %v929, %v869
    %v947 = vsel %vm940, %v930, %v867
    %v948 = vsel %vm940, %v931, %v869
    %v949 = vsel %vm940, %v932, %v867
    %v950 = vsel %vm940, %v933, %v869
    %v951 = vsel %vm940, %v934, %v867
    %v952 = vsel %vm940, %v935, %v869
    %v953 = vsel %vm940, %v936, %v867
    %v954 = vsel %vm940, %v937, %v869
    %v955 = vsel %vm940, %v938, %v867
    %v956 = vsel %vm940, %v939, %v869
    %v957 = vpack.c.bf16 %v942, %v941
    %v958 = vpack.c.bf16 %v944, %v943
    %v959 = vpack.c.bf16 %v946, %v945
    %v960 = vpack.c.bf16 %v948, %v947
    %v961 = vpack.c.bf16 %v950, %v949
    %v962 = vpack.c.bf16 %v952, %v951
    %v963 = vpack.c.bf16 %v954, %v953
    %v964 = vpack.c.bf16 %v956, %v955
    %v965 = vld [vmem:[#allocation2] sm:$0xff]
    %v966 = vld [vmem:[#allocation2 + $0x8] sm:$0xff]
    %v967 = vld [vmem:[#allocation2 + $0x10] sm:$0xff]
    %v968 = vld [vmem:[#allocation2 + $0x18] sm:$0xff]
    %v969 = vld [vmem:[#allocation2 + $0x20] sm:$0xff]
    %v970 = vld [vmem:[#allocation2 + $0x28] sm:$0xff]
    %v971 = vld [vmem:[#allocation2 + $0x30] sm:$0xff]
    %v972 = vld [vmem:[#allocation2 + $0x38] sm:$0xff]
    %v973 = vld [vmem:[#allocation2 + $0x40] sm:$0xff]
    %v974 = vld [vmem:[#allocation2 + $0x48] sm:$0xff]
    %v975 = vld [vmem:[#allocation2 + $0x50] sm:$0xff]
    %v976 = vld [vmem:[#allocation2 + $0x58] sm:$0xff]
    %v977 = vld [vmem:[#allocation2 + $0x60] sm:$0xff]
    %v978 = vld [vmem:[#allocation2 + $0x68] sm:$0xff]
    %v979 = vld [vmem:[#allocation2 + $0x70] sm:$0xff]
    %v980 = vld [vmem:[#allocation2 + $0x78] sm:$0xff]
    %v981 = vld [vmem:[#allocation2 + $0x80] sm:$0xff]
    %v982 = vld [vmem:[#allocation2 + $0x88] sm:$0xff]
    %v983 = vld [vmem:[#allocation2 + $0x90] sm:$0xff]
    %v984 = vld [vmem:[#allocation2 + $0x98] sm:$0xff]
    %v985 = vld [vmem:[#allocation2 + $0xa0] sm:$0xff]
    %v986 = vld [vmem:[#allocation2 + $0xa8] sm:$0xff]
    %v987 = vld [vmem:[#allocation2 + $0xb0] sm:$0xff]
    %v988 = vld [vmem:[#allocation2 + $0xb8] sm:$0xff]
    %v989 = vld [vmem:[#allocation2 + $0xc0] sm:$0xff]
    %v990 = vld [vmem:[#allocation2 + $0xc8] sm:$0xff]
    %v991 = vld [vmem:[#allocation2 + $0xd0] sm:$0xff]
    %v992 = vld [vmem:[#allocation2 + $0xd8] sm:$0xff]
    %v993 = vld [vmem:[#allocation2 + $0xe0] sm:$0xff]
    %v994 = vld [vmem:[#allocation2 + $0xe8] sm:$0xff]
    %v995 = vld [vmem:[#allocation2 + $0xf0] sm:$0xff]
    %v996 = vld [vmem:[#allocation2 + $0xf8] sm:$0xff]
    %v997 = vld [vmem:[#allocation2 + $0x100] sm:$0xff]
    %v998 = vld [vmem:[#allocation2 + $0x108] sm:$0xff]
    %v999 = vld [vmem:[#allocation2 + $0x110] sm:$0xff]
    %v1000 = vld [vmem:[#allocation2 + $0x118] sm:$0xff]
    %v1001 = vld [vmem:[#allocation2 + $0x120] sm:$0xff]
    %v1002 = vld [vmem:[#allocation2 + $0x128] sm:$0xff]
    %v1003 = vld [vmem:[#allocation2 + $0x130] sm:$0xff]
    %v1004 = vld [vmem:[#allocation2 + $0x138] sm:$0xff]
    %v1005 = vld [vmem:[#allocation2 + $0x140] sm:$0xff]
    %v1006 = vld [vmem:[#allocation2 + $0x148] sm:$0xff]
    %v1007 = vld [vmem:[#allocation2 + $0x150] sm:$0xff]
    %v1008 = vld [vmem:[#allocation2 + $0x158] sm:$0xff]
    %v1009 = vld [vmem:[#allocation2 + $0x160] sm:$0xff]
    %v1010 = vld [vmem:[#allocation2 + $0x168] sm:$0xff]
    %v1011 = vld [vmem:[#allocation2 + $0x170] sm:$0xff]
    %v1012 = vld [vmem:[#allocation2 + $0x178] sm:$0xff]
    %v1013 = vld [vmem:[#allocation2 + $0x180] sm:$0xff]
    %v1014 = vld [vmem:[#allocation2 + $0x188] sm:$0xff]
    %v1015 = vld [vmem:[#allocation2 + $0x190] sm:$0xff]
    %v1016 = vld [vmem:[#allocation2 + $0x198] sm:$0xff]
    %v1017 = vld [vmem:[#allocation2 + $0x1a0] sm:$0xff]
    %v1018 = vld [vmem:[#allocation2 + $0x1a8] sm:$0xff]
    %v1019 = vld [vmem:[#allocation2 + $0x1b0] sm:$0xff]
    %v1020 = vld [vmem:[#allocation2 + $0x1b8] sm:$0xff]
    %v1021 = vld [vmem:[#allocation2 + $0x1c0] sm:$0xff]
    %v1022 = vld [vmem:[#allocation2 + $0x1c8] sm:$0xff]
    %v1023 = vld [vmem:[#allocation2 + $0x1d0] sm:$0xff]
    %v1024 = vld [vmem:[#allocation2 + $0x1d8] sm:$0xff]
    %v1025 = vld [vmem:[#allocation2 + $0x1e0] sm:$0xff]
    %v1026 = vld [vmem:[#allocation2 + $0x1e8] sm:$0xff]
    %v1027 = vld [vmem:[#allocation2 + $0x1f0] sm:$0xff]
    %v1028 = vld [vmem:[#allocation2 + $0x1f8] sm:$0xff]
    %v1029 = vld [vmem:[#allocation2 + $0x200] sm:$0xff]
    %v1030 = vld [vmem:[#allocation2 + $0x208] sm:$0xff]
    %v1097 = vunpack.c.l.b16 %v965
    %v1098 = vunpack.c.h.b16 %v965
    %v1099 = vunpack.c.l.b16 %v966
    %v1100 = vunpack.c.h.b16 %v966
    %v1101 = vunpack.c.l.b16 %v967
    %v1102 = vunpack.c.h.b16 %v967
    %v1103 = vunpack.c.l.b16 %v968
    %v1104 = vunpack.c.h.b16 %v968
    %v1105 = vunpack.c.l.b16 %v969
    %v1106 = vunpack.c.h.b16 %v969
    %v1107 = vunpack.c.l.b16 %v970
    %v1108 = vunpack.c.h.b16 %v970
    %v1109 = vunpack.c.l.b16 %v971
    %v1110 = vunpack.c.h.b16 %v971
    %v1111 = vunpack.c.l.b16 %v972
    %v1112 = vunpack.c.h.b16 %v972
    %v1113 = vunpack.c.l.b16 %v973
    %v1114 = vunpack.c.h.b16 %v973
    %v1115 = vunpack.c.l.b16 %v974
    %v1116 = vunpack.c.h.b16 %v974
    %v1117 = vunpack.c.l.b16 %v975
    %v1118 = vunpack.c.h.b16 %v975
    %v1119 = vunpack.c.l.b16 %v976
    %v1120 = vunpack.c.h.b16 %v976
    %v1121 = vunpack.c.l.b16 %v977
    %v1122 = vunpack.c.h.b16 %v977
    %v1123 = vunpack.c.l.b16 %v978
    %v1124 = vunpack.c.h.b16 %v978
    %v1125 = vunpack.c.l.b16 %v979
    %v1126 = vunpack.c.h.b16 %v979
    %v1127 = vunpack.c.l.b16 %v980
    %v1128 = vunpack.c.h.b16 %v980
    %v1129 = vunpack.c.l.b16 %v981
    %v1130 = vunpack.c.h.b16 %v981
    %v1131 = vunpack.c.l.b16 %v982
    %v1132 = vunpack.c.h.b16 %v982
    %v1133 = vunpack.c.l.b16 %v983
    %v1134 = vunpack.c.h.b16 %v983
    %v1135 = vunpack.c.l.b16 %v984
    %v1136 = vunpack.c.h.b16 %v984
    %v1137 = vunpack.c.l.b16 %v985
    %v1138 = vunpack.c.h.b16 %v985
    %v1139 = vunpack.c.l.b16 %v986
    %v1140 = vunpack.c.h.b16 %v986
    %v1141 = vunpack.c.l.b16 %v987
    %v1142 = vunpack.c.h.b16 %v987
    %v1143 = vunpack.c.l.b16 %v988
    %v1144 = vunpack.c.h.b16 %v988
    %v1145 = vunpack.c.l.b16 %v989
    %v1146 = vunpack.c.h.b16 %v989
    %v1147 = vunpack.c.l.b16 %v990
    %v1148 = vunpack.c.h.b16 %v990
    %v1149 = vunpack.c.l.b16 %v991
    %v1150 = vunpack.c.h.b16 %v991
    %v1151 = vunpack.c.l.b16 %v992
    %v1152 = vunpack.c.h.b16 %v992
    %v1153 = vunpack.c.l.b16 %v993
    %v1154 = vunpack.c.h.b16 %v993
    %v1155 = vunpack.c.l.b16 %v994
    %v1156 = vunpack.c.h.b16 %v994
    %v1157 = vunpack.c.l.b16 %v995
    %v1158 = vunpack.c.h.b16 %v995
    %v1159 = vunpack.c.l.b16 %v996
    %v1160 = vunpack.c.h.b16 %v996
    %v1161 = vunpack.c.l.b16 %v997
    %v1162 = vunpack.c.h.b16 %v997
    %v1163 = vunpack.c.l.b16 %v998
    %v1164 = vunpack.c.h.b16 %v998
    %v1165 = vunpack.c.l.b16 %v999
    %v1166 = vunpack.c.h.b16 %v999
    %v1167 = vunpack.c.l.b16 %v1000
    %v1168 = vunpack.c.h.b16 %v1000
    %v1169 = vunpack.c.l.b16 %v1001
    %v1170 = vunpack.c.h.b16 %v1001
    %v1171 = vunpack.c.l.b16 %v1002
    %v1172 = vunpack.c.h.b16 %v1002
    %v1173 = vunpack.c.l.b16 %v1003
    %v1174 = vunpack.c.h.b16 %v1003
    %v1175 = vunpack.c.l.b16 %v1004
    %v1176 = vunpack.c.h.b16 %v1004
    %v1177 = vunpack.c.l.b16 %v1005
    %v1178 = vunpack.c.h.b16 %v1005
    %v1179 = vunpack.c.l.b16 %v1006
    %v1180 = vunpack.c.h.b16 %v1006
    %v1181 = vunpack.c.l.b16 %v1007
    %v1182 = vunpack.c.h.b16 %v1007
    %v1183 = vunpack.c.l.b16 %v1008
    %v1184 = vunpack.c.h.b16 %v1008
    %v1185 = vunpack.c.l.b16 %v1009
    %v1186 = vunpack.c.h.b16 %v1009
    %v1187 = vunpack.c.l.b16 %v1010
    %v1188 = vunpack.c.h.b16 %v1010
    %v1189 = vunpack.c.l.b16 %v1011
    %v1190 = vunpack.c.h.b16 %v1011
    %v1191 = vunpack.c.l.b16 %v1012
    %v1192 = vunpack.c.h.b16 %v1012
    %v1193 = vunpack.c.l.b16 %v1013
    %v1194 = vunpack.c.h.b16 %v1013
    %v1195 = vunpack.c.l.b16 %v1014
    %v1196 = vunpack.c.h.b16 %v1014
    %v1197 = vunpack.c.l.b16 %v1015
    %v1198 = vunpack.c.h.b16 %v1015
    %v1199 = vunpack.c.l.b16 %v1016
    %v1200 = vunpack.c.h.b16 %v1016
    %v1201 = vunpack.c.l.b16 %v1017
    %v1202 = vunpack.c.h.b16 %v1017
    %v1203 = vunpack.c.l.b16 %v1018
    %v1204 = vunpack.c.h.b16 %v1018
    %v1205 = vunpack.c.l.b16 %v1019
    %v1206 = vunpack.c.h.b16 %v1019
    %v1207 = vunpack.c.l.b16 %v1020
    %v1208 = vunpack.c.h.b16 %v1020
    %v1209 = vunpack.c.l.b16 %v1021
    %v1210 = vunpack.c.h.b16 %v1021
    %v1211 = vunpack.c.l.b16 %v1022
    %v1212 = vunpack.c.h.b16 %v1022
    %v1213 = vunpack.c.l.b16 %v1023
    %v1214 = vunpack.c.h.b16 %v1023
    %v1215 = vunpack.c.l.b16 %v1024
    %v1216 = vunpack.c.h.b16 %v1024
    %v1217 = vunpack.c.l.b16 %v1025
    %v1218 = vunpack.c.h.b16 %v1025
    %v1219 = vunpack.c.l.b16 %v1026
    %v1220 = vunpack.c.h.b16 %v1026
    %v1221 = vunpack.c.l.b16 %v1027
    %v1222 = vunpack.c.h.b16 %v1027
    %v1223 = vunpack.c.l.b16 %v1028
    %v1224 = vunpack.c.h.b16 %v1028
    %v1225 = vunpack.c.l.b16 %v1029
    %v1226 = vunpack.c.h.b16 %v1029
    %v1227 = vunpack.c.l.b16 %v1030
    %v1228 = vunpack.c.h.b16 %v1030
    %v1229 = vpack.c.b16 %v1109, %v1097
    %v1230 = vpack.c.b16 %v1110, %v1098
    %v1231 = vpack.c.b16 %v1111, %v1099
    %v1232 = vpack.c.b16 %v1112, %v1100
    %v1233 = vpack.c.b16 %v1113, %v1101
    %v1234 = vpack.c.b16 %v1114, %v1102
    %v1235 = vpack.c.b16 %v1115, %v1103
    %v1236 = vpack.c.b16 %v1116, %v1104
    %v1237 = vpack.c.b16 %v1117, %v1105
    %v1238 = vpack.c.b16 %v1118, %v1106
    %v1239 = vpack.c.b16 %v1119, %v1107
    %v1240 = vpack.c.b16 %v1120, %v1108
    %v1241 = vpack.c.b16 %v1133, %v1121
    %v1242 = vpack.c.b16 %v1134, %v1122
    %v1243 = vpack.c.b16 %v1135, %v1123
    %v1244 = vpack.c.b16 %v1136, %v1124
    %v1245 = vpack.c.b16 %v1137, %v1125
    %v1246 = vpack.c.b16 %v1138, %v1126
    %v1247 = vpack.c.b16 %v1139, %v1127
    %v1248 = vpack.c.b16 %v1140, %v1128
    %v1249 = vpack.c.b16 %v1141, %v1129
    %v1250 = vpack.c.b16 %v1142, %v1130
    %v1251 = vpack.c.b16 %v1143, %v1131
    %v1252 = vpack.c.b16 %v1144, %v1132
    %v1253 = vpack.c.b16 %v1157, %v1145
    %v1254 = vpack.c.b16 %v1158, %v1146
    %v1255 = vpack.c.b16 %v1159, %v1147
    %v1256 = vpack.c.b16 %v1160, %v1148
    %v1257 = vpack.c.b16 %v1161, %v1149
    %v1258 = vpack.c.b16 %v1162, %v1150
    %v1259 = vpack.c.b16 %v1163, %v1151
    %v1260 = vpack.c.b16 %v1164, %v1152
    %v1261 = vpack.c.b16 %v1165, %v1153
    %v1262 = vpack.c.b16 %v1166, %v1154
    %v1263 = vpack.c.b16 %v1167, %v1155
    %v1264 = vpack.c.b16 %v1168, %v1156
    %v1265 = vpack.c.b16 %v1181, %v1169
    %v1266 = vpack.c.b16 %v1182, %v1170
    %v1267 = vpack.c.b16 %v1183, %v1171
    %v1268 = vpack.c.b16 %v1184, %v1172
    %v1269 = vpack.c.b16 %v1185, %v1173
    %v1270 = vpack.c.b16 %v1186, %v1174
    %v1271 = vpack.c.b16 %v1187, %v1175
    %v1272 = vpack.c.b16 %v1188, %v1176
    %v1273 = vpack.c.b16 %v1189, %v1177
    %v1274 = vpack.c.b16 %v1190, %v1178
    %v1275 = vpack.c.b16 %v1191, %v1179
    %v1276 = vpack.c.b16 %v1192, %v1180
    %v1277 = vpack.c.b16 %v1205, %v1193
    %v1278 = vpack.c.b16 %v1206, %v1194
    %v1279 = vpack.c.b16 %v1207, %v1195
    %v1280 = vpack.c.b16 %v1208, %v1196
    %v1281 = vpack.c.b16 %v1209, %v1197
    %v1282 = vpack.c.b16 %v1210, %v1198
    %v1283 = vpack.c.b16 %v1211, %v1199
    %v1284 = vpack.c.b16 %v1212, %v1200
    %v1285 = vpack.c.b16 %v1213, %v1201
    %v1286 = vpack.c.b16 %v1214, %v1202
    %v1287 = vpack.c.b16 %v1215, %v1203
    %v1288 = vpack.c.b16 %v1216, %v1204
    %v1289 = vpack.c.b16 %v1217, %v1217
    %v1290 = vpack.c.b16 %v1218, %v1218
    %v1291 = vpack.c.b16 %v1219, %v1219
    %v1292 = vpack.c.b16 %v1220, %v1220
    %v1293 = vpack.c.b16 %v1221, %v1221
    %v1294 = vpack.c.b16 %v1222, %v1222
    %v1295 = vpack.c.b16 %v1223, %v1223
    %v1296 = vpack.c.b16 %v1224, %v1224
    %v1297 = vpack.c.b16 %v1225, %v1225
    %v1298 = vpack.c.b16 %v1226, %v1226
    %v1299 = vpack.c.b16 %v1227, %v1227
    %v1300 = vpack.c.b16 %v1228, %v1228
    %vm1361 = vcmask 719872
    %v1363 = vsel %vm1361, %v957, 0
    %v1366 = vsel %vm1361, %v958, 0
    %v1369 = vsel %vm1361, %v959, 0
    %v1372 = vsel %vm1361, %v960, 0
    %v1375 = vsel %vm1361, %v961, 0
    %v1378 = vsel %vm1361, %v962, 0
    %v1381 = vsel %vm1361, %v963, 0
    %v1384 = vsel %vm1361, %v964, 0
    %v1387 = vsel %vm775, %v1289, 0
    %v1390 = vsel %vm775, %v1290, 0
    %v1393 = vsel %vm775, %v1291, 0
    %v1396 = vsel %vm775, %v1292, 0
    %v1399 = vsel %vm775, %v1293, 0
    %v1402 = vsel %vm775, %v1294, 0
    %v1405 = vsel %vm775, %v1295, 0
    %v1408 = vsel %vm775, %v1296, 0
    %v1411 = vsel %vm775, %v1297, 0
    %v1414 = vsel %vm775, %v1298, 0
    %v1417 = vsel %vm775, %v1299, 0
    %v1420 = vsel %vm775, %v1300, 0
    %1422 = vmatprep.subr.bf16.mxu0 0
    %1423 = vmatpush1.bf16.msra.mxu0 0
    %1424 = vmatprep.subr.bf16.mxu0 0
    %1425 = vmatpush1.bf16.msra.mxu0 0
    %1426 = vmatprep.subr.bf16.mxu0 %v1390
    %1427 = vmatpush1.bf16.msra.mxu0 %v1387
    %1428 = vmatprep.subr.bf16.mxu0 %v1278
    %1429 = vmatpush1.bf16.msra.mxu0 %v1277
    %1430 = vmatprep.subr.bf16.mxu0 %v1266
    %1431 = vmatpush1.bf16.msra.mxu0 %v1265
    %1432 = vmatprep.subr.bf16.mxu0 %v1254
    %1433 = vmatpush1.bf16.msra.mxu0 %v1253
    %1434 = vmatprep.subr.bf16.mxu0 %v1242
    %1435 = vmatpush1.bf16.msra.mxu0 %v1241
    %1436 = vmatprep.subr.bf16.mxu0 %v1230
    %1437 = vmatpush1.bf16.msra.mxu0 %v1229
    %1438 = vmatprep.subr.bf16.mxu0 0
    %1439 = vmatpush2.bf16.msra.mxu0 0
    %1440 = vmatprep.subr.bf16.mxu0 0
    %1441 = vmatpush2.bf16.msra.mxu0 0
    %1442 = vmatprep.subr.bf16.mxu0 0
    %1443 = vmatpush2.bf16.msra.mxu0 0
    %1444 = vmatprep.subr.bf16.mxu0 0
    %1445 = vmatpush2.bf16.msra.mxu0 0
    %1446 = vmatprep.subr.bf16.mxu0 0
    %1447 = vmatpush2.bf16.msra.mxu0 0
    %1448 = vmatprep.subr.bf16.mxu0 0
    %1449 = vmatpush2.bf16.msra.mxu0 0
    %1450 = vmatprep.subr.bf16.mxu0 0
    %1451 = vmatpush2.bf16.msra.mxu0 0
    %1452 = vmatprep.subr.bf16.mxu0 0
    %1453 = vmatpush2.bf16.msra.mxu0 0
    %1454 = vmatprep.mubr.bf16.mxu0 0
    %1455 = vmatmul.mubr.bf16.gmra.mxu0 %v1363
    %v1456 = vpop.f32.mrf.mxu0
    %v1457 = vadd.f32 0.0, %v1456
    %v1458 = vpop.f32.mrf.mxu0
    %v1459 = vadd.f32 0.0, %v1458
    %v1460 = vpop.f32.mrf.mxu0
    %v1461 = vadd.f32 0.0, %v1460
    %v1462 = vpop.f32.mrf.mxu0
    %v1463 = vadd.f32 0.0, %v1462
    %1464 = vmatprep.mubr.bf16.mxu0 0
    %1465 = vmatmul.mubr.bf16.gmra.mxu0 %v1366
    %v1466 = vpop.f32.mrf.mxu0
    %v1467 = vadd.f32 0.0, %v1466
    %v1468 = vpop.f32.mrf.mxu0
    %v1469 = vadd.f32 0.0, %v1468
    %v1470 = vpop.f32.mrf.mxu0
    %v1471 = vadd.f32 0.0, %v1470
    %v1472 = vpop.f32.mrf.mxu0
    %v1473 = vadd.f32 0.0, %v1472
    %1474 = vmatprep.mubr.bf16.mxu0 0
    %1475 = vmatmul.mubr.bf16.gmra.mxu0 %v1369
    %v1476 = vpop.f32.mrf.mxu0
    %v1477 = vadd.f32 0.0, %v1476
    %v1478 = vpop.f32.mrf.mxu0
    %v1479 = vadd.f32 0.0, %v1478
    %v1480 = vpop.f32.mrf.mxu0
    %v1481 = vadd.f32 0.0, %v1480
    %v1482 = vpop.f32.mrf.mxu0
    %v1483 = vadd.f32 0.0, %v1482
    %1484 = vmatprep.mubr.bf16.mxu0 0
    %1485 = vmatmul.mubr.bf16.gmra.mxu0 %v1372
    %v1486 = vpop.f32.mrf.mxu0
    %v1487 = vadd.f32 0.0, %v1486
    %v1488 = vpop.f32.mrf.mxu0
    %v1489 = vadd.f32 0.0, %v1488
    %v1490 = vpop.f32.mrf.mxu0
    %v1491 = vadd.f32 0.0, %v1490
    %v1492 = vpop.f32.mrf.mxu0
    %v1493 = vadd.f32 0.0, %v1492
    %1494 = vmatprep.mubr.bf16.mxu0 0
    %1495 = vmatmul.mubr.bf16.gmra.mxu0 %v1375
    %v1496 = vpop.f32.mrf.mxu0
    %v1497 = vadd.f32 0.0, %v1496
    %v1498 = vpop.f32.mrf.mxu0
    %v1499 = vadd.f32 0.0, %v1498
    %v1500 = vpop.f32.mrf.mxu0
    %v1501 = vadd.f32 0.0, %v1500
    %v1502 = vpop.f32.mrf.mxu0
    %v1503 = vadd.f32 0.0, %v1502
    %1504 = vmatprep.mubr.bf16.mxu0 0
    %1505 = vmatmul.mubr.bf16.gmra.mxu0 %v1378
    %v1506 = vpop.f32.mrf.mxu0
    %v1507 = vadd.f32 0.0, %v1506
    %v1508 = vpop.f32.mrf.mxu0
    %v1509 = vadd.f32 0.0, %v1508
    %v1510 = vpop.f32.mrf.mxu0
    %v1511 = vadd.f32 0.0, %v1510
    %v1512 = vpop.f32.mrf.mxu0
    %v1513 = vadd.f32 0.0, %v1512
    %1514 = vmatprep.mubr.bf16.mxu0 0
    %1515 = vmatmul.mubr.bf16.gmra.mxu0 %v1381
    %v1516 = vpop.f32.mrf.mxu0
    %v1517 = vadd.f32 0.0, %v1516
    %v1518 = vpop.f32.mrf.mxu0
    %v1519 = vadd.f32 0.0, %v1518
    %v1520 = vpop.f32.mrf.mxu0
    %v1521 = vadd.f32 0.0, %v1520
    %v1522 = vpop.f32.mrf.mxu0
    %v1523 = vadd.f32 0.0, %v1522
    %1524 = vmatprep.mubr.bf16.mxu0 0
    %1525 = vmatmul.mubr.bf16.gmra.mxu0 %v1384
    %v1526 = vpop.f32.mrf.mxu0
    %v1527 = vadd.f32 0.0, %v1526
    %v1528 = vpop.f32.mrf.mxu0
    %v1529 = vadd.f32 0.0, %v1528
    %v1530 = vpop.f32.mrf.mxu0
    %v1531 = vadd.f32 0.0, %v1530
    %v1532 = vpop.f32.mrf.mxu0
    %v1533 = vadd.f32 0.0, %v1532
    %1534 = vdwg.mxu0
    %1535 = vmatprep.subr.bf16.mxu0 0
    %1536 = vmatpush1.bf16.msra.mxu0 0
    %1537 = vmatprep.subr.bf16.mxu0 0
    %1538 = vmatpush1.bf16.msra.mxu0 0
    %1539 = vmatprep.subr.bf16.mxu0 %v1396
    %1540 = vmatpush1.bf16.msra.mxu0 %v1393
    %1541 = vmatprep.subr.bf16.mxu0 %v1280
    %1542 = vmatpush1.bf16.msra.mxu0 %v1279
    %1543 = vmatprep.subr.bf16.mxu0 %v1268
    %1544 = vmatpush1.bf16.msra.mxu0 %v1267
    %1545 = vmatprep.subr.bf16.mxu0 %v1256
    %1546 = vmatpush1.bf16.msra.mxu0 %v1255
    %1547 = vmatprep.subr.bf16.mxu0 %v1244
    %1548 = vmatpush1.bf16.msra.mxu0 %v1243
    %1549 = vmatprep.subr.bf16.mxu0 %v1232
    %1550 = vmatpush1.bf16.msra.mxu0 %v1231
    %1551 = vmatprep.subr.bf16.mxu0 0
    %1552 = vmatpush2.bf16.msra.mxu0 0
    %1553 = vmatprep.subr.bf16.mxu0 0
    %1554 = vmatpush2.bf16.msra.mxu0 0
    %1555 = vmatprep.subr.bf16.mxu0 0
    %1556 = vmatpush2.bf16.msra.mxu0 0
    %1557 = vmatprep.subr.bf16.mxu0 0
    %1558 = vmatpush2.bf16.msra.mxu0 0
    %1559 = vmatprep.subr.bf16.mxu0 0
    %1560 = vmatpush2.bf16.msra.mxu0 0
    %1561 = vmatprep.subr.bf16.mxu0 0
    %1562 = vmatpush2.bf16.msra.mxu0 0
    %1563 = vmatprep.subr.bf16.mxu0 0
    %1564 = vmatpush2.bf16.msra.mxu0 0
    %1565 = vmatprep.subr.bf16.mxu0 0
    %1566 = vmatpush2.bf16.msra.mxu0 0
    %1567 = vmatprep.mubr.bf16.mxu0 0
    %1568 = vmatmul.mubr.bf16.gmra.mxu0 %v1363
    %v1569 = vpop.f32.mrf.mxu0
    %v1570 = vadd.f32 0.0, %v1569
    %v1571 = vpop.f32.mrf.mxu0
    %v1572 = vadd.f32 0.0, %v1571
    %v1573 = vpop.f32.mrf.mxu0
    %v1574 = vadd.f32 0.0, %v1573
    %v1575 = vpop.f32.mrf.mxu0
    %v1576 = vadd.f32 0.0, %v1575
    %1577 = vmatprep.mubr.bf16.mxu0 0
    %1578 = vmatmul.mubr.bf16.gmra.mxu0 %v1366
    %v1579 = vpop.f32.mrf.mxu0
    %v1580 = vadd.f32 0.0, %v1579
    %v1581 = vpop.f32.mrf.mxu0
    %v1582 = vadd.f32 0.0, %v1581
    %v1583 = vpop.f32.mrf.mxu0
    %v1584 = vadd.f32 0.0, %v1583
    %v1585 = vpop.f32.mrf.mxu0
    %v1586 = vadd.f32 0.0, %v1585
    %1587 = vmatprep.mubr.bf16.mxu0 0
    %1588 = vmatmul.mubr.bf16.gmra.mxu0 %v1369
    %v1589 = vpop.f32.mrf.mxu0
    %v1590 = vadd.f32 0.0, %v1589
    %v1591 = vpop.f32.mrf.mxu0
    %v1592 = vadd.f32 0.0, %v1591
    %v1593 = vpop.f32.mrf.mxu0
    %v1594 = vadd.f32 0.0, %v1593
    %v1595 = vpop.f32.mrf.mxu0
    %v1596 = vadd.f32 0.0, %v1595
    %1597 = vmatprep.mubr.bf16.mxu0 0
    %1598 = vmatmul.mubr.bf16.gmra.mxu0 %v1372
    %v1599 = vpop.f32.mrf.mxu0
    %v1600 = vadd.f32 0.0, %v1599
    %v1601 = vpop.f32.mrf.mxu0
    %v1602 = vadd.f32 0.0, %v1601
    %v1603 = vpop.f32.mrf.mxu0
    %v1604 = vadd.f32 0.0, %v1603
    %v1605 = vpop.f32.mrf.mxu0
    %v1606 = vadd.f32 0.0, %v1605
    %1607 = vmatprep.mubr.bf16.mxu0 0
    %1608 = vmatmul.mubr.bf16.gmra.mxu0 %v1375
    %v1609 = vpop.f32.mrf.mxu0
    %v1610 = vadd.f32 0.0, %v1609
    %v1611 = vpop.f32.mrf.mxu0
    %v1612 = vadd.f32 0.0, %v1611
    %v1613 = vpop.f32.mrf.mxu0
    %v1614 = vadd.f32 0.0, %v1613
    %v1615 = vpop.f32.mrf.mxu0
    %v1616 = vadd.f32 0.0, %v1615
    %1617 = vmatprep.mubr.bf16.mxu0 0
    %1618 = vmatmul.mubr.bf16.gmra.mxu0 %v1378
    %v1619 = vpop.f32.mrf.mxu0
    %v1620 = vadd.f32 0.0, %v1619
    %v1621 = vpop.f32.mrf.mxu0
    %v1622 = vadd.f32 0.0, %v1621
    %v1623 = vpop.f32.mrf.mxu0
    %v1624 = vadd.f32 0.0, %v1623
    %v1625 = vpop.f32.mrf.mxu0
    %v1626 = vadd.f32 0.0, %v1625
    %1627 = vmatprep.mubr.bf16.mxu0 0
    %1628 = vmatmul.mubr.bf16.gmra.mxu0 %v1381
    %v1629 = vpop.f32.mrf.mxu0
    %v1630 = vadd.f32 0.0, %v1629
    %v1631 = vpop.f32.mrf.mxu0
    %v1632 = vadd.f32 0.0, %v1631
    %v1633 = vpop.f32.mrf.mxu0
    %v1634 = vadd.f32 0.0, %v1633
    %v1635 = vpop.f32.mrf.mxu0
    %v1636 = vadd.f32 0.0, %v1635
    %1637 = vmatprep.mubr.bf16.mxu0 0
    %1638 = vmatmul.mubr.bf16.gmra.mxu0 %v1384
    %v1639 = vpop.f32.mrf.mxu0
    %v1640 = vadd.f32 0.0, %v1639
    %v1641 = vpop.f32.mrf.mxu0
    %v1642 = vadd.f32 0.0, %v1641
    %v1643 = vpop.f32.mrf.mxu0
    %v1644 = vadd.f32 0.0, %v1643
    %v1645 = vpop.f32.mrf.mxu0
    %v1646 = vadd.f32 0.0, %v1645
    %1647 = vdwg.mxu0
    %1648 = vmatprep.subr.bf16.mxu0 0
    %1649 = vmatpush1.bf16.msra.mxu0 0
    %1650 = vmatprep.subr.bf16.mxu0 0
    %1651 = vmatpush1.bf16.msra.mxu0 0
    %1652 = vmatprep.subr.bf16.mxu0 %v1402
    %1653 = vmatpush1.bf16.msra.mxu0 %v1399
    %1654 = vmatprep.subr.bf16.mxu0 %v1282
    %1655 = vmatpush1.bf16.msra.mxu0 %v1281
    %1656 = vmatprep.subr.bf16.mxu0 %v1270
    %1657 = vmatpush1.bf16.msra.mxu0 %v1269
    %1658 = vmatprep.subr.bf16.mxu0 %v1258
    %1659 = vmatpush1.bf16.msra.mxu0 %v1257
    %1660 = vmatprep.subr.bf16.mxu0 %v1246
    %1661 = vmatpush1.bf16.msra.mxu0 %v1245
    %1662 = vmatprep.subr.bf16.mxu0 %v1234
    %1663 = vmatpush1.bf16.msra.mxu0 %v1233
    %1664 = vmatprep.subr.bf16.mxu0 0
    %1665 = vmatpush2.bf16.msra.mxu0 0
    %1666 = vmatprep.subr.bf16.mxu0 0
    %1667 = vmatpush2.bf16.msra.mxu0 0
    %1668 = vmatprep.subr.bf16.mxu0 0
    %1669 = vmatpush2.bf16.msra.mxu0 0
    %1670 = vmatprep.subr.bf16.mxu0 0
    %1671 = vmatpush2.bf16.msra.mxu0 0
    %1672 = vmatprep.subr.bf16.mxu0 0
    %1673 = vmatpush2.bf16.msra.mxu0 0
    %1674 = vmatprep.subr.bf16.mxu0 0
    %1675 = vmatpush2.bf16.msra.mxu0 0
    %1676 = vmatprep.subr.bf16.mxu0 0
    %1677 = vmatpush2.bf16.msra.mxu0 0
    %1678 = vmatprep.subr.bf16.mxu0 0
    %1679 = vmatpush2.bf16.msra.mxu0 0
    %1680 = vmatprep.mubr.bf16.mxu0 0
    %1681 = vmatmul.mubr.bf16.gmra.mxu0 %v1363
    %v1682 = vpop.f32.mrf.mxu0
    %v1683 = vadd.f32 0.0, %v1682
    %v1684 = vpop.f32.mrf.mxu0
    %v1685 = vadd.f32 0.0, %v1684
    %v1686 = vpop.f32.mrf.mxu0
    %v1687 = vadd.f32 0.0, %v1686
    %v1688 = vpop.f32.mrf.mxu0
    %v1689 = vadd.f32 0.0, %v1688
    %1690 = vmatprep.mubr.bf16.mxu0 0
    %1691 = vmatmul.mubr.bf16.gmra.mxu0 %v1366
    %v1692 = vpop.f32.mrf.mxu0
    %v1693 = vadd.f32 0.0, %v1692
    %v1694 = vpop.f32.mrf.mxu0
    %v1695 = vadd.f32 0.0, %v1694
    %v1696 = vpop.f32.mrf.mxu0
    %v1697 = vadd.f32 0.0, %v1696
    %v1698 = vpop.f32.mrf.mxu0
    %v1699 = vadd.f32 0.0, %v1698
    %1700 = vmatprep.mubr.bf16.mxu0 0
    %1701 = vmatmul.mubr.bf16.gmra.mxu0 %v1369
    %v1702 = vpop.f32.mrf.mxu0
    %v1703 = vadd.f32 0.0, %v1702
    %v1704 = vpop.f32.mrf.mxu0
    %v1705 = vadd.f32 0.0, %v1704
    %v1706 = vpop.f32.mrf.mxu0
    %v1707 = vadd.f32 0.0, %v1706
    %v1708 = vpop.f32.mrf.mxu0
    %v1709 = vadd.f32 0.0, %v1708
    %1710 = vmatprep.mubr.bf16.mxu0 0
    %1711 = vmatmul.mubr.bf16.gmra.mxu0 %v1372
    %v1712 = vpop.f32.mrf.mxu0
    %v1713 = vadd.f32 0.0, %v1712
    %v1714 = vpop.f32.mrf.mxu0
    %v1715 = vadd.f32 0.0, %v1714
    %v1716 = vpop.f32.mrf.mxu0
    %v1717 = vadd.f32 0.0, %v1716
    %v1718 = vpop.f32.mrf.mxu0
    %v1719 = vadd.f32 0.0, %v1718
    %1720 = vmatprep.mubr.bf16.mxu0 0
    %1721 = vmatmul.mubr.bf16.gmra.mxu0 %v1375
    %v1722 = vpop.f32.mrf.mxu0
    %v1723 = vadd.f32 0.0, %v1722
    %v1724 = vpop.f32.mrf.mxu0
    %v1725 = vadd.f32 0.0, %v1724
    %v1726 = vpop.f32.mrf.mxu0
    %v1727 = vadd.f32 0.0, %v1726
    %v1728 = vpop.f32.mrf.mxu0
    %v1729 = vadd.f32 0.0, %v1728
    %1730 = vmatprep.mubr.bf16.mxu0 0
    %1731 = vmatmul.mubr.bf16.gmra.mxu0 %v1378
    %v1732 = vpop.f32.mrf.mxu0
    %v1733 = vadd.f32 0.0, %v1732
    %v1734 = vpop.f32.mrf.mxu0
    %v1735 = vadd.f32 0.0, %v1734
    %v1736 = vpop.f32.mrf.mxu0
    %v1737 = vadd.f32 0.0, %v1736
    %v1738 = vpop.f32.mrf.mxu0
    %v1739 = vadd.f32 0.0, %v1738
    %1740 = vmatprep.mubr.bf16.mxu0 0
    %1741 = vmatmul.mubr.bf16.gmra.mxu0 %v1381
    %v1742 = vpop.f32.mrf.mxu0
    %v1743 = vadd.f32 0.0, %v1742
    %v1744 = vpop.f32.mrf.mxu0
    %v1745 = vadd.f32 0.0, %v1744
    %v1746 = vpop.f32.mrf.mxu0
    %v1747 = vadd.f32 0.0, %v1746
    %v1748 = vpop.f32.mrf.mxu0
    %v1749 = vadd.f32 0.0, %v1748
    %1750 = vmatprep.mubr.bf16.mxu0 0
    %1751 = vmatmul.mubr.bf16.gmra.mxu0 %v1384
    %v1752 = vpop.f32.mrf.mxu0
    %v1753 = vadd.f32 0.0, %v1752
    %v1754 = vpop.f32.mrf.mxu0
    %v1755 = vadd.f32 0.0, %v1754
    %v1756 = vpop.f32.mrf.mxu0
    %v1757 = vadd.f32 0.0, %v1756
    %v1758 = vpop.f32.mrf.mxu0
    %v1759 = vadd.f32 0.0, %v1758
    %1760 = vdwg.mxu0
    %1761 = vmatprep.subr.bf16.mxu0 0
    %1762 = vmatpush1.bf16.msra.mxu0 0
    %1763 = vmatprep.subr.bf16.mxu0 0
    %1764 = vmatpush1.bf16.msra.mxu0 0
    %1765 = vmatprep.subr.bf16.mxu0 %v1408
    %1766 = vmatpush1.bf16.msra.mxu0 %v1405
    %1767 = vmatprep.subr.bf16.mxu0 %v1284
    %1768 = vmatpush1.bf16.msra.mxu0 %v1283
    %1769 = vmatprep.subr.bf16.mxu0 %v1272
    %1770 = vmatpush1.bf16.msra.mxu0 %v1271
    %1771 = vmatprep.subr.bf16.mxu0 %v1260
    %1772 = vmatpush1.bf16.msra.mxu0 %v1259
    %1773 = vmatprep.subr.bf16.mxu0 %v1248
    %1774 = vmatpush1.bf16.msra.mxu0 %v1247
    %1775 = vmatprep.subr.bf16.mxu0 %v1236
    %1776 = vmatpush1.bf16.msra.mxu0 %v1235
    %1777 = vmatprep.subr.bf16.mxu0 0
    %1778 = vmatpush2.bf16.msra.mxu0 0
    %1779 = vmatprep.subr.bf16.mxu0 0
    %1780 = vmatpush2.bf16.msra.mxu0 0
    %1781 = vmatprep.subr.bf16.mxu0 0
    %1782 = vmatpush2.bf16.msra.mxu0 0
    %1783 = vmatprep.subr.bf16.mxu0 0
    %1784 = vmatpush2.bf16.msra.mxu0 0
    %1785 = vmatprep.subr.bf16.mxu0 0
    %1786 = vmatpush2.bf16.msra.mxu0 0
    %1787 = vmatprep.subr.bf16.mxu0 0
    %1788 = vmatpush2.bf16.msra.mxu0 0
    %1789 = vmatprep.subr.bf16.mxu0 0
    %1790 = vmatpush2.bf16.msra.mxu0 0
    %1791 = vmatprep.subr.bf16.mxu0 0
    %1792 = vmatpush2.bf16.msra.mxu0 0
    %1793 = vmatprep.mubr.bf16.mxu0 0
    %1794 = vmatmul.mubr.bf16.gmra.mxu0 %v1363
    %v1795 = vpop.f32.mrf.mxu0
    %v1796 = vadd.f32 0.0, %v1795
    %v1797 = vpop.f32.mrf.mxu0
    %v1798 = vadd.f32 0.0, %v1797
    %v1799 = vpop.f32.mrf.mxu0
    %v1800 = vadd.f32 0.0, %v1799
    %v1801 = vpop.f32.mrf.mxu0
    %v1802 = vadd.f32 0.0, %v1801
    %1803 = vmatprep.mubr.bf16.mxu0 0
    %1804 = vmatmul.mubr.bf16.gmra.mxu0 %v1366
    %v1805 = vpop.f32.mrf.mxu0
    %v1806 = vadd.f32 0.0, %v1805
    %v1807 = vpop.f32.mrf.mxu0
    %v1808 = vadd.f32 0.0, %v1807
    %v1809 = vpop.f32.mrf.mxu0
    %v1810 = vadd.f32 0.0, %v1809
    %v1811 = vpop.f32.mrf.mxu0
    %v1812 = vadd.f32 0.0, %v1811
    %1813 = vmatprep.mubr.bf16.mxu0 0
    %1814 = vmatmul.mubr.bf16.gmra.mxu0 %v1369
    %v1815 = vpop.f32.mrf.mxu0
    %v1816 = vadd.f32 0.0, %v1815
    %v1817 = vpop.f32.mrf.mxu0
    %v1818 = vadd.f32 0.0, %v1817
    %v1819 = vpop.f32.mrf.mxu0
    %v1820 = vadd.f32 0.0, %v1819
    %v1821 = vpop.f32.mrf.mxu0
    %v1822 = vadd.f32 0.0, %v1821
    %1823 = vmatprep.mubr.bf16.mxu0 0
    %1824 = vmatmul.mubr.bf16.gmra.mxu0 %v1372
    %v1825 = vpop.f32.mrf.mxu0
    %v1826 = vadd.f32 0.0, %v1825
    %v1827 = vpop.f32.mrf.mxu0
    %v1828 = vadd.f32 0.0, %v1827
    %v1829 = vpop.f32.mrf.mxu0
    %v1830 = vadd.f32 0.0, %v1829
    %v1831 = vpop.f32.mrf.mxu0
    %v1832 = vadd.f32 0.0, %v1831
    %1833 = vmatprep.mubr.bf16.mxu0 0
    %1834 = vmatmul.mubr.bf16.gmra.mxu0 %v1375
    %v1835 = vpop.f32.mrf.mxu0
    %v1836 = vadd.f32 0.0, %v1835
    %v1837 = vpop.f32.mrf.mxu0
    %v1838 = vadd.f32 0.0, %v1837
    %v1839 = vpop.f32.mrf.mxu0
    %v1840 = vadd.f32 0.0, %v1839
    %v1841 = vpop.f32.mrf.mxu0
    %v1842 = vadd.f32 0.0, %v1841
    %1843 = vmatprep.mubr.bf16.mxu0 0
    %1844 = vmatmul.mubr.bf16.gmra.mxu0 %v1378
    %v1845 = vpop.f32.mrf.mxu0
    %v1846 = vadd.f32 0.0, %v1845
    %v1847 = vpop.f32.mrf.mxu0
    %v1848 = vadd.f32 0.0, %v1847
    %v1849 = vpop.f32.mrf.mxu0
    %v1850 = vadd.f32 0.0, %v1849
    %v1851 = vpop.f32.mrf.mxu0
    %v1852 = vadd.f32 0.0, %v1851
    %1853 = vmatprep.mubr.bf16.mxu0 0
    %1854 = vmatmul.mubr.bf16.gmra.mxu0 %v1381
    %v1855 = vpop.f32.mrf.mxu0
    %v1856 = vadd.f32 0.0, %v1855
    %v1857 = vpop.f32.mrf.mxu0
    %v1858 = vadd.f32 0.0, %v1857
    %v1859 = vpop.f32.mrf.mxu0
    %v1860 = vadd.f32 0.0, %v1859
    %v1861 = vpop.f32.mrf.mxu0
    %v1862 = vadd.f32 0.0, %v1861
    %1863 = vmatprep.mubr.bf16.mxu0 0
    %1864 = vmatmul.mubr.bf16.gmra.mxu0 %v1384
    %v1865 = vpop.f32.mrf.mxu0
    %v1866 = vadd.f32 0.0, %v1865
    %v1867 = vpop.f32.mrf.mxu0
    %v1868 = vadd.f32 0.0, %v1867
    %v1869 = vpop.f32.mrf.mxu0
    %v1870 = vadd.f32 0.0, %v1869
    %v1871 = vpop.f32.mrf.mxu0
    %v1872 = vadd.f32 0.0, %v1871
    %1873 = vdwg.mxu0
    %1874 = vmatprep.subr.bf16.mxu0 0
    %1875 = vmatpush1.bf16.msra.mxu0 0
    %1876 = vmatprep.subr.bf16.mxu0 0
    %1877 = vmatpush1.bf16.msra.mxu0 0
    %1878 = vmatprep.subr.bf16.mxu0 %v1414
    %1879 = vmatpush1.bf16.msra.mxu0 %v1411
    %1880 = vmatprep.subr.bf16.mxu0 %v1286
    %1881 = vmatpush1.bf16.msra.mxu0 %v1285
    %1882 = vmatprep.subr.bf16.mxu0 %v1274
    %1883 = vmatpush1.bf16.msra.mxu0 %v1273
    %1884 = vmatprep.subr.bf16.mxu0 %v1262
    %1885 = vmatpush1.bf16.msra.mxu0 %v1261
    %1886 = vmatprep.subr.bf16.mxu0 %v1250
    %1887 = vmatpush1.bf16.msra.mxu0 %v1249
    %1888 = vmatprep.subr.bf16.mxu0 %v1238
    %1889 = vmatpush1.bf16.msra.mxu0 %v1237
    %1890 = vmatprep.subr.bf16.mxu0 0
    %1891 = vmatpush2.bf16.msra.mxu0 0
    %1892 = vmatprep.subr.bf16.mxu0 0
    %1893 = vmatpush2.bf16.msra.mxu0 0
    %1894 = vmatprep.subr.bf16.mxu0 0
    %1895 = vmatpush2.bf16.msra.mxu0 0
    %1896 = vmatprep.subr.bf16.mxu0 0
    %1897 = vmatpush2.bf16.msra.mxu0 0
    %1898 = vmatprep.subr.bf16.mxu0 0
    %1899 = vmatpush2.bf16.msra.mxu0 0
    %1900 = vmatprep.subr.bf16.mxu0 0
    %1901 = vmatpush2.bf16.msra.mxu0 0
    %1902 = vmatprep.subr.bf16.mxu0 0
    %1903 = vmatpush2.bf16.msra.mxu0 0
    %1904 = vmatprep.subr.bf16.mxu0 0
    %1905 = vmatpush2.bf16.msra.mxu0 0
    %1906 = vmatprep.mubr.bf16.mxu0 0
    %1907 = vmatmul.mubr.bf16.gmra.mxu0 %v1363
    %v1908 = vpop.f32.mrf.mxu0
    %v1909 = vadd.f32 0.0, %v1908
    %v1910 = vpop.f32.mrf.mxu0
    %v1911 = vadd.f32 0.0, %v1910
    %v1912 = vpop.f32.mrf.mxu0
    %v1913 = vadd.f32 0.0, %v1912
    %v1914 = vpop.f32.mrf.mxu0
    %v1915 = vadd.f32 0.0, %v1914
    %1916 = vmatprep.mubr.bf16.mxu0 0
    %1917 = vmatmul.mubr.bf16.gmra.mxu0 %v1366
    %v1918 = vpop.f32.mrf.mxu0
    %v1919 = vadd.f32 0.0, %v1918
    %v1920 = vpop.f32.mrf.mxu0
    %v1921 = vadd.f32 0.0, %v1920
    %v1922 = vpop.f32.mrf.mxu0
    %v1923 = vadd.f32 0.0, %v1922
    %v1924 = vpop.f32.mrf.mxu0
    %v1925 = vadd.f32 0.0, %v1924
    %1926 = vmatprep.mubr.bf16.mxu0 0
    %1927 = vmatmul.mubr.bf16.gmra.mxu0 %v1369
    %v1928 = vpop.f32.mrf.mxu0
    %v1929 = vadd.f32 0.0, %v1928
    %v1930 = vpop.f32.mrf.mxu0
    %v1931 = vadd.f32 0.0, %v1930
    %v1932 = vpop.f32.mrf.mxu0
    %v1933 = vadd.f32 0.0, %v1932
    %v1934 = vpop.f32.mrf.mxu0
    %v1935 = vadd.f32 0.0, %v1934
    %1936 = vmatprep.mubr.bf16.mxu0 0
    %1937 = vmatmul.mubr.bf16.gmra.mxu0 %v1372
    %v1938 = vpop.f32.mrf.mxu0
    %v1939 = vadd.f32 0.0, %v1938
    %v1940 = vpop.f32.mrf.mxu0
    %v1941 = vadd.f32 0.0, %v1940
    %v1942 = vpop.f32.mrf.mxu0
    %v1943 = vadd.f32 0.0, %v1942
    %v1944 = vpop.f32.mrf.mxu0
    %v1945 = vadd.f32 0.0, %v1944
    %1946 = vmatprep.mubr.bf16.mxu0 0
    %1947 = vmatmul.mubr.bf16.gmra.mxu0 %v1375
    %v1948 = vpop.f32.mrf.mxu0
    %v1949 = vadd.f32 0.0, %v1948
    %v1950 = vpop.f32.mrf.mxu0
    %v1951 = vadd.f32 0.0, %v1950
    %v1952 = vpop.f32.mrf.mxu0
    %v1953 = vadd.f32 0.0, %v1952
    %v1954 = vpop.f32.mrf.mxu0
    %v1955 = vadd.f32 0.0, %v1954
    %1956 = vmatprep.mubr.bf16.mxu0 0
    %1957 = vmatmul.mubr.bf16.gmra.mxu0 %v1378
    %v1958 = vpop.f32.mrf.mxu0
    %v1959 = vadd.f32 0.0, %v1958
    %v1960 = vpop.f32.mrf.mxu0
    %v1961 = vadd.f32 0.0, %v1960
    %v1962 = vpop.f32.mrf.mxu0
    %v1963 = vadd.f32 0.0, %v1962
    %v1964 = vpop.f32.mrf.mxu0
    %v1965 = vadd.f32 0.0, %v1964
    %1966 = vmatprep.mubr.bf16.mxu0 0
    %1967 = vmatmul.mubr.bf16.gmra.mxu0 %v1381
    %v1968 = vpop.f32.mrf.mxu0
    %v1969 = vadd.f32 0.0, %v1968
    %v1970 = vpop.f32.mrf.mxu0
    %v1971 = vadd.f32 0.0, %v1970
    %v1972 = vpop.f32.mrf.mxu0
    %v1973 = vadd.f32 0.0, %v1972
    %v1974 = vpop.f32.mrf.mxu0
    %v1975 = vadd.f32 0.0, %v1974
    %1976 = vmatprep.mubr.bf16.mxu0 0
    %1977 = vmatmul.mubr.bf16.gmra.mxu0 %v1384
    %v1978 = vpop.f32.mrf.mxu0
    %v1979 = vadd.f32 0.0, %v1978
    %v1980 = vpop.f32.mrf.mxu0
    %v1981 = vadd.f32 0.0, %v1980
    %v1982 = vpop.f32.mrf.mxu0
    %v1983 = vadd.f32 0.0, %v1982
    %v1984 = vpop.f32.mrf.mxu0
    %v1985 = vadd.f32 0.0, %v1984
    %1986 = vdwg.mxu0
    %1987 = vmatprep.subr.bf16.mxu0 0
    %1988 = vmatpush1.bf16.msra.mxu0 0
    %1989 = vmatprep.subr.bf16.mxu0 0
    %1990 = vmatpush1.bf16.msra.mxu0 0
    %1991 = vmatprep.subr.bf16.mxu0 %v1420
    %1992 = vmatpush1.bf16.msra.mxu0 %v1417
    %1993 = vmatprep.subr.bf16.mxu0 %v1288
    %1994 = vmatpush1.bf16.msra.mxu0 %v1287
    %1995 = vmatprep.subr.bf16.mxu0 %v1276
    %1996 = vmatpush1.bf16.msra.mxu0 %v1275
    %1997 = vmatprep.subr.bf16.mxu0 %v1264
    %1998 = vmatpush1.bf16.msra.mxu0 %v1263
    %1999 = vmatprep.subr.bf16.mxu0 %v1252
    %2000 = vmatpush1.bf16.msra.mxu0 %v1251
    %2001 = vmatprep.subr.bf16.mxu0 %v1240
    %2002 = vmatpush1.bf16.msra.mxu0 %v1239
    %2003 = vmatprep.subr.bf16.mxu0 0
    %2004 = vmatpush2.bf16.msra.mxu0 0
    %2005 = vmatprep.subr.bf16.mxu0 0
    %2006 = vmatpush2.bf16.msra.mxu0 0
    %2007 = vmatprep.subr.bf16.mxu0 0
    %2008 = vmatpush2.bf16.msra.mxu0 0
    %2009 = vmatprep.subr.bf16.mxu0 0
    %2010 = vmatpush2.bf16.msra.mxu0 0
    %2011 = vmatprep.subr.bf16.mxu0 0
    %2012 = vmatpush2.bf16.msra.mxu0 0
    %2013 = vmatprep.subr.bf16.mxu0 0
    %2014 = vmatpush2.bf16.msra.mxu0 0
    %2015 = vmatprep.subr.bf16.mxu0 0
    %2016 = vmatpush2.bf16.msra.mxu0 0
    %2017 = vmatprep.subr.bf16.mxu0 0
    %2018 = vmatpush2.bf16.msra.mxu0 0
    %2019 = vmatprep.mubr.bf16.mxu0 0
    %2020 = vmatmul.mubr.bf16.gmra.mxu0 %v1363
    %v2021 = vpop.f32.mrf.mxu0
    %v2022 = vadd.f32 0.0, %v2021
    %v2023 = vpop.f32.mrf.mxu0
    %v2024 = vadd.f32 0.0, %v2023
    %v2025 = vpop.f32.mrf.mxu0
    %v2026 = vadd.f32 0.0, %v2025
    %v2027 = vpop.f32.mrf.mxu0
    %v2028 = vadd.f32 0.0, %v2027
    %2029 = vmatprep.mubr.bf16.mxu0 0
    %2030 = vmatmul.mubr.bf16.gmra.mxu0 %v1366
    %v2031 = vpop.f32.mrf.mxu0
    %v2032 = vadd.f32 0.0, %v2031
    %v2033 = vpop.f32.mrf.mxu0
    %v2034 = vadd.f32 0.0, %v2033
    %v2035 = vpop.f32.mrf.mxu0
    %v2036 = vadd.f32 0.0, %v2035
    %v2037 = vpop.f32.mrf.mxu0
    %v2038 = vadd.f32 0.0, %v2037
    %2039 = vmatprep.mubr.bf16.mxu0 0
    %2040 = vmatmul.mubr.bf16.gmra.mxu0 %v1369
    %v2041 = vpop.f32.mrf.mxu0
    %v2042 = vadd.f32 0.0, %v2041
    %v2043 = vpop.f32.mrf.mxu0
    %v2044 = vadd.f32 0.0, %v2043
    %v2045 = vpop.f32.mrf.mxu0
    %v2046 = vadd.f32 0.0, %v2045
    %v2047 = vpop.f32.mrf.mxu0
    %v2048 = vadd.f32 0.0, %v2047
    %2049 = vmatprep.mubr.bf16.mxu0 0
    %2050 = vmatmul.mubr.bf16.gmra.mxu0 %v1372
    %v2051 = vpop.f32.mrf.mxu0
    %v2052 = vadd.f32 0.0, %v2051
    %v2053 = vpop.f32.mrf.mxu0
    %v2054 = vadd.f32 0.0, %v2053
    %v2055 = vpop.f32.mrf.mxu0
    %v2056 = vadd.f32 0.0, %v2055
    %v2057 = vpop.f32.mrf.mxu0
    %v2058 = vadd.f32 0.0, %v2057
    %2059 = vmatprep.mubr.bf16.mxu0 0
    %2060 = vmatmul.mubr.bf16.gmra.mxu0 %v1375
    %v2061 = vpop.f32.mrf.mxu0
    %v2062 = vadd.f32 0.0, %v2061
    %v2063 = vpop.f32.mrf.mxu0
    %v2064 = vadd.f32 0.0, %v2063
    %v2065 = vpop.f32.mrf.mxu0
    %v2066 = vadd.f32 0.0, %v2065
    %v2067 = vpop.f32.mrf.mxu0
    %v2068 = vadd.f32 0.0, %v2067
    %2069 = vmatprep.mubr.bf16.mxu0 0
    %2070 = vmatmul.mubr.bf16.gmra.mxu0 %v1378
    %v2071 = vpop.f32.mrf.mxu0
    %v2072 = vadd.f32 0.0, %v2071
    %v2073 = vpop.f32.mrf.mxu0
    %v2074 = vadd.f32 0.0, %v2073
    %v2075 = vpop.f32.mrf.mxu0
    %v2076 = vadd.f32 0.0, %v2075
    %v2077 = vpop.f32.mrf.mxu0
    %v2078 = vadd.f32 0.0, %v2077
    %2079 = vmatprep.mubr.bf16.mxu0 0
    %2080 = vmatmul.mubr.bf16.gmra.mxu0 %v1381
    %v2081 = vpop.f32.mrf.mxu0
    %v2082 = vadd.f32 0.0, %v2081
    %v2083 = vpop.f32.mrf.mxu0
    %v2084 = vadd.f32 0.0, %v2083
    %v2085 = vpop.f32.mrf.mxu0
    %v2086 = vadd.f32 0.0, %v2085
    %v2087 = vpop.f32.mrf.mxu0
    %v2088 = vadd.f32 0.0, %v2087
    %2089 = vmatprep.mubr.bf16.mxu0 0
    %2090 = vmatmul.mubr.bf16.gmra.mxu0 %v1384
    %v2091 = vpop.f32.mrf.mxu0
    %v2092 = vadd.f32 0.0, %v2091
    %v2093 = vpop.f32.mrf.mxu0
    %v2094 = vadd.f32 0.0, %v2093
    %v2095 = vpop.f32.mrf.mxu0
    %v2096 = vadd.f32 0.0, %v2095
    %v2097 = vpop.f32.mrf.mxu0
    %v2098 = vadd.f32 0.0, %v2097
    %2099 = vdwg.mxu0
    %v2100 = vmax.f32 %v1457, %v1461
    %v2101 = vrot.slane %v2100, 4
    %v2102 = vmax.f32 %v2100, %v2101
    %v2103 = vrot.slane %v2102, 2
    %v2104 = vmax.f32 %v2102, %v2103
    %v2105 = vrot.slane %v2104, 1
    %v2106 = vmax.f32 %v2104, %v2105
    %v2107 = vmax.f32 %v1459, %v1463
    %v2108 = vrot.slane %v2107, 4
    %v2109 = vmax.f32 %v2107, %v2108
    %v2110 = vrot.slane %v2109, 2
    %v2111 = vmax.f32 %v2109, %v2110
    %v2112 = vrot.slane %v2111, 1
    %v2113 = vmax.f32 %v2111, %v2112
    %v2114 = vmax.f32 %v1570, %v1574
    %v2115 = vrot.slane %v2114, 4
    %v2116 = vmax.f32 %v2114, %v2115
    %v2117 = vrot.slane %v2116, 2
    %v2118 = vmax.f32 %v2116, %v2117
    %v2119 = vrot.slane %v2118, 1
    %v2120 = vmax.f32 %v2118, %v2119
    %v2121 = vmax.f32 %v1572, %v1576
    %v2122 = vrot.slane %v2121, 4
    %v2123 = vmax.f32 %v2121, %v2122
    %v2124 = vrot.slane %v2123, 2
    %v2125 = vmax.f32 %v2123, %v2124
    %v2126 = vrot.slane %v2125, 1
    %v2127 = vmax.f32 %v2125, %v2126
    %v2128 = vmax.f32 %v1683, %v1687
    %v2129 = vrot.slane %v2128, 4
    %v2130 = vmax.f32 %v2128, %v2129
    %v2131 = vrot.slane %v2130, 2
    %v2132 = vmax.f32 %v2130, %v2131
    %v2133 = vrot.slane %v2132, 1
    %v2134 = vmax.f32 %v2132, %v2133
    %v2135 = vmax.f32 %v1685, %v1689
    %v2136 = vrot.slane %v2135, 4
    %v2137 = vmax.f32 %v2135, %v2136
    %v2138 = vrot.slane %v2137, 2
    %v2139 = vmax.f32 %v2137, %v2138
    %v2140 = vrot.slane %v2139, 1
    %v2141 = vmax.f32 %v2139, %v2140
    %v2142 = vmax.f32 %v1796, %v1800
    %v2143 = vrot.slane %v2142, 4
    %v2144 = vmax.f32 %v2142, %v2143
    %v2145 = vrot.slane %v2144, 2
    %v2146 = vmax.f32 %v2144, %v2145
    %v2147 = vrot.slane %v2146, 1
    %v2148 = vmax.f32 %v2146, %v2147
    %v2149 = vmax.f32 %v1798, %v1802
    %v2150 = vrot.slane %v2149, 4
    %v2151 = vmax.f32 %v2149, %v2150
    %v2152 = vrot.slane %v2151, 2
    %v2153 = vmax.f32 %v2151, %v2152
    %v2154 = vrot.slane %v2153, 1
    %v2155 = vmax.f32 %v2153, %v2154
    %v2156 = vmax.f32 %v1909, %v1913
    %v2157 = vrot.slane %v2156, 4
    %v2158 = vmax.f32 %v2156, %v2157
    %v2159 = vrot.slane %v2158, 2
    %v2160 = vmax.f32 %v2158, %v2159
    %v2161 = vrot.slane %v2160, 1
    %v2162 = vmax.f32 %v2160, %v2161
    %v2163 = vmax.f32 %v1911, %v1915
    %v2164 = vrot.slane %v2163, 4
    %v2165 = vmax.f32 %v2163, %v2164
    %v2166 = vrot.slane %v2165, 2
    %v2167 = vmax.f32 %v2165, %v2166
    %v2168 = vrot.slane %v2167, 1
    %v2169 = vmax.f32 %v2167, %v2168
    %v2170 = vmax.f32 %v2022, %v2026
    %v2171 = vrot.slane %v2170, 4
    %v2172 = vmax.f32 %v2170, %v2171
    %v2173 = vrot.slane %v2172, 2
    %v2174 = vmax.f32 %v2172, %v2173
    %v2175 = vrot.slane %v2174, 1
    %v2176 = vmax.f32 %v2174, %v2175
    %v2177 = vmax.f32 %v2024, %v2028
    %v2178 = vrot.slane %v2177, 4
    %v2179 = vmax.f32 %v2177, %v2178
    %v2180 = vrot.slane %v2179, 2
    %v2181 = vmax.f32 %v2179, %v2180
    %v2182 = vrot.slane %v2181, 1
    %v2183 = vmax.f32 %v2181, %v2182
    %v2184 = vmax.f32 %v1467, %v1471
    %v2185 = vrot.slane %v2184, 4
    %v2186 = vmax.f32 %v2184, %v2185
    %v2187 = vrot.slane %v2186, 2
    %v2188 = vmax.f32 %v2186, %v2187
    %v2189 = vrot.slane %v2188, 1
    %v2190 = vmax.f32 %v2188, %v2189
    %v2191 = vmax.f32 %v1469, %v1473
    %v2192 = vrot.slane %v2191, 4
    %v2193 = vmax.f32 %v2191, %v2192
    %v2194 = vrot.slane %v2193, 2
    %v2195 = vmax.f32 %v2193, %v2194
    %v2196 = vrot.slane %v2195, 1
    %v2197 = vmax.f32 %v2195, %v2196
    %v2198 = vmax.f32 %v1580, %v1584
    %v2199 = vrot.slane %v2198, 4
    %v2200 = vmax.f32 %v2198, %v2199
    %v2201 = vrot.slane %v2200, 2
    %v2202 = vmax.f32 %v2200, %v2201
    %v2203 = vrot.slane %v2202, 1
    %v2204 = vmax.f32 %v2202, %v2203
    %v2205 = vmax.f32 %v1582, %v1586
    %v2206 = vrot.slane %v2205, 4
    %v2207 = vmax.f32 %v2205, %v2206
    %v2208 = vrot.slane %v2207, 2
    %v2209 = vmax.f32 %v2207, %v2208
    %v2210 = vrot.slane %v2209, 1
    %v2211 = vmax.f32 %v2209, %v2210
    %v2212 = vmax.f32 %v1693, %v1697
    %v2213 = vrot.slane %v2212, 4
    %v2214 = vmax.f32 %v2212, %v2213
    %v2215 = vrot.slane %v2214, 2
    %v2216 = vmax.f32 %v2214, %v2215
    %v2217 = vrot.slane %v2216, 1
    %v2218 = vmax.f32 %v2216, %v2217
    %v2219 = vmax.f32 %v1695, %v1699
    %v2220 = vrot.slane %v2219, 4
    %v2221 = vmax.f32 %v2219, %v2220
    %v2222 = vrot.slane %v2221, 2
    %v2223 = vmax.f32 %v2221, %v2222
    %v2224 = vrot.slane %v2223, 1
    %v2225 = vmax.f32 %v2223, %v2224
    %v2226 = vmax.f32 %v1806, %v1810
    %v2227 = vrot.slane %v2226, 4
    %v2228 = vmax.f32 %v2226, %v2227
    %v2229 = vrot.slane %v2228, 2
    %v2230 = vmax.f32 %v2228, %v2229
    %v2231 = vrot.slane %v2230, 1
    %v2232 = vmax.f32 %v2230, %v2231
    %v2233 = vmax.f32 %v1808, %v1812
    %v2234 = vrot.slane %v2233, 4
    %v2235 = vmax.f32 %v2233, %v2234
    %v2236 = vrot.slane %v2235, 2
    %v2237 = vmax.f32 %v2235, %v2236
    %v2238 = vrot.slane %v2237, 1
    %v2239 = vmax.f32 %v2237, %v2238
    %v2240 = vmax.f32 %v1919, %v1923
    %v2241 = vrot.slane %v2240, 4
    %v2242 = vmax.f32 %v2240, %v2241
    %v2243 = vrot.slane %v2242, 2
    %v2244 = vmax.f32 %v2242, %v2243
    %v2245 = vrot.slane %v2244, 1
    %v2246 = vmax.f32 %v2244, %v2245
    %v2247 = vmax.f32 %v1921, %v1925
    %v2248 = vrot.slane %v2247, 4
    %v2249 = vmax.f32 %v2247, %v2248
    %v2250 = vrot.slane %v2249, 2
    %v2251 = vmax.f32 %v2249, %v2250
    %v2252 = vrot.slane %v2251, 1
    %v2253 = vmax.f32 %v2251, %v2252
    %v2254 = vmax.f32 %v2032, %v2036
    %v2255 = vrot.slane %v2254, 4
    %v2256 = vmax.f32 %v2254, %v2255
    %v2257 = vrot.slane %v2256, 2
    %v2258 = vmax.f32 %v2256, %v2257
    %v2259 = vrot.slane %v2258, 1
    %v2260 = vmax.f32 %v2258, %v2259
    %v2261 = vmax.f32 %v2034, %v2038
    %v2262 = vrot.slane %v2261, 4
    %v2263 = vmax.f32 %v2261, %v2262
    %v2264 = vrot.slane %v2263, 2
    %v2265 = vmax.f32 %v2263, %v2264
    %v2266 = vrot.slane %v2265, 1
    %v2267 = vmax.f32 %v2265, %v2266
    %v2268 = vmax.f32 %v1477, %v1481
    %v2269 = vrot.slane %v2268, 4
    %v2270 = vmax.f32 %v2268, %v2269
    %v2271 = vrot.slane %v2270, 2
    %v2272 = vmax.f32 %v2270, %v2271
    %v2273 = vrot.slane %v2272, 1
    %v2274 = vmax.f32 %v2272, %v2273
    %v2275 = vmax.f32 %v1479, %v1483
    %v2276 = vrot.slane %v2275, 4
    %v2277 = vmax.f32 %v2275, %v2276
    %v2278 = vrot.slane %v2277, 2
    %v2279 = vmax.f32 %v2277, %v2278
    %v2280 = vrot.slane %v2279, 1
    %v2281 = vmax.f32 %v2279, %v2280
    %v2282 = vmax.f32 %v1590, %v1594
    %v2283 = vrot.slane %v2282, 4
    %v2284 = vmax.f32 %v2282, %v2283
    %v2285 = vrot.slane %v2284, 2
    %v2286 = vmax.f32 %v2284, %v2285
    %v2287 = vrot.slane %v2286, 1
    %v2288 = vmax.f32 %v2286, %v2287
    %v2289 = vmax.f32 %v1592, %v1596
    %v2290 = vrot.slane %v2289, 4
    %v2291 = vmax.f32 %v2289, %v2290
    %v2292 = vrot.slane %v2291, 2
    %v2293 = vmax.f32 %v2291, %v2292
    %v2294 = vrot.slane %v2293, 1
    %v2295 = vmax.f32 %v2293, %v2294
    %v2296 = vmax.f32 %v1703, %v1707
    %v2297 = vrot.slane %v2296, 4
    %v2298 = vmax.f32 %v2296, %v2297
    %v2299 = vrot.slane %v2298, 2
    %v2300 = vmax.f32 %v2298, %v2299
    %v2301 = vrot.slane %v2300, 1
    %v2302 = vmax.f32 %v2300, %v2301
    %v2303 = vmax.f32 %v1705, %v1709
    %v2304 = vrot.slane %v2303, 4
    %v2305 = vmax.f32 %v2303, %v2304
    %v2306 = vrot.slane %v2305, 2
    %v2307 = vmax.f32 %v2305, %v2306
    %v2308 = vrot.slane %v2307, 1
    %v2309 = vmax.f32 %v2307, %v2308
    %v2310 = vmax.f32 %v1816, %v1820
    %v2311 = vrot.slane %v2310, 4
    %v2312 = vmax.f32 %v2310, %v2311
    %v2313 = vrot.slane %v2312, 2
    %v2314 = vmax.f32 %v2312, %v2313
    %v2315 = vrot.slane %v2314, 1
    %v2316 = vmax.f32 %v2314, %v2315
    %v2317 = vmax.f32 %v1818, %v1822
    %v2318 = vrot.slane %v2317, 4
    %v2319 = vmax.f32 %v2317, %v2318
    %v2320 = vrot.slane %v2319, 2
    %v2321 = vmax.f32 %v2319, %v2320
    %v2322 = vrot.slane %v2321, 1
    %v2323 = vmax.f32 %v2321, %v2322
    %v2324 = vmax.f32 %v1929, %v1933
    %v2325 = vrot.slane %v2324, 4
    %v2326 = vmax.f32 %v2324, %v2325
    %v2327 = vrot.slane %v2326, 2
    %v2328 = vmax.f32 %v2326, %v2327
    %v2329 = vrot.slane %v2328, 1
    %v2330 = vmax.f32 %v2328, %v2329
    %v2331 = vmax.f32 %v1931, %v1935
    %v2332 = vrot.slane %v2331, 4
    %v2333 = vmax.f32 %v2331, %v2332
    %v2334 = vrot.slane %v2333, 2
    %v2335 = vmax.f32 %v2333, %v2334
    %v2336 = vrot.slane %v2335, 1
    %v2337 = vmax.f32 %v2335, %v2336
    %v2338 = vmax.f32 %v2042, %v2046
    %v2339 = vrot.slane %v2338, 4
    %v2340 = vmax.f32 %v2338, %v2339
    %v2341 = vrot.slane %v2340, 2
    %v2342 = vmax.f32 %v2340, %v2341
    %v2343 = vrot.slane %v2342, 1
    %v2344 = vmax.f32 %v2342, %v2343
    %v2345 = vmax.f32 %v2044, %v2048
    %v2346 = vrot.slane %v2345, 4
    %v2347 = vmax.f32 %v2345, %v2346
    %v2348 = vrot.slane %v2347, 2
    %v2349 = vmax.f32 %v2347, %v2348
    %v2350 = vrot.slane %v2349, 1
    %v2351 = vmax.f32 %v2349, %v2350
    %v2352 = vmax.f32 %v1487, %v1491
    %v2353 = vrot.slane %v2352, 4
    %v2354 = vmax.f32 %v2352, %v2353
    %v2355 = vrot.slane %v2354, 2
    %v2356 = vmax.f32 %v2354, %v2355
    %v2357 = vrot.slane %v2356, 1
    %v2358 = vmax.f32 %v2356, %v2357
    %v2359 = vmax.f32 %v1489, %v1493
    %v2360 = vrot.slane %v2359, 4
    %v2361 = vmax.f32 %v2359, %v2360
    %v2362 = vrot.slane %v2361, 2
    %v2363 = vmax.f32 %v2361, %v2362
    %v2364 = vrot.slane %v2363, 1
    %v2365 = vmax.f32 %v2363, %v2364
    %v2366 = vmax.f32 %v1600, %v1604
    %v2367 = vrot.slane %v2366, 4
    %v2368 = vmax.f32 %v2366, %v2367
    %v2369 = vrot.slane %v2368, 2
    %v2370 = vmax.f32 %v2368, %v2369
    %v2371 = vrot.slane %v2370, 1
    %v2372 = vmax.f32 %v2370, %v2371
    %v2373 = vmax.f32 %v1602, %v1606
    %v2374 = vrot.slane %v2373, 4
    %v2375 = vmax.f32 %v2373, %v2374
    %v2376 = vrot.slane %v2375, 2
    %v2377 = vmax.f32 %v2375, %v2376
    %v2378 = vrot.slane %v2377, 1
    %v2379 = vmax.f32 %v2377, %v2378
    %v2380 = vmax.f32 %v1713, %v1717
    %v2381 = vrot.slane %v2380, 4
    %v2382 = vmax.f32 %v2380, %v2381
    %v2383 = vrot.slane %v2382, 2
    %v2384 = vmax.f32 %v2382, %v2383
    %v2385 = vrot.slane %v2384, 1
    %v2386 = vmax.f32 %v2384, %v2385
    %v2387 = vmax.f32 %v1715, %v1719
    %v2388 = vrot.slane %v2387, 4
    %v2389 = vmax.f32 %v2387, %v2388
    %v2390 = vrot.slane %v2389, 2
    %v2391 = vmax.f32 %v2389, %v2390
    %v2392 = vrot.slane %v2391, 1
    %v2393 = vmax.f32 %v2391, %v2392
    %v2394 = vmax.f32 %v1826, %v1830
    %v2395 = vrot.slane %v2394, 4
    %v2396 = vmax.f32 %v2394, %v2395
    %v2397 = vrot.slane %v2396, 2
    %v2398 = vmax.f32 %v2396, %v2397
    %v2399 = vrot.slane %v2398, 1
    %v2400 = vmax.f32 %v2398, %v2399
    %v2401 = vmax.f32 %v1828, %v1832
    %v2402 = vrot.slane %v2401, 4
    %v2403 = vmax.f32 %v2401, %v2402
    %v2404 = vrot.slane %v2403, 2
    %v2405 = vmax.f32 %v2403, %v2404
    %v2406 = vrot.slane %v2405, 1
    %v2407 = vmax.f32 %v2405, %v2406
    %v2408 = vmax.f32 %v1939, %v1943
    %v2409 = vrot.slane %v2408, 4
    %v2410 = vmax.f32 %v2408, %v2409
    %v2411 = vrot.slane %v2410, 2
    %v2412 = vmax.f32 %v2410, %v2411
    %v2413 = vrot.slane %v2412, 1
    %v2414 = vmax.f32 %v2412, %v2413
    %v2415 = vmax.f32 %v1941, %v1945
    %v2416 = vrot.slane %v2415, 4
    %v2417 = vmax.f32 %v2415, %v2416
    %v2418 = vrot.slane %v2417, 2
    %v2419 = vmax.f32 %v2417, %v2418
    %v2420 = vrot.slane %v2419, 1
    %v2421 = vmax.f32 %v2419, %v2420
    %v2422 = vmax.f32 %v2052, %v2056
    %v2423 = vrot.slane %v2422, 4
    %v2424 = vmax.f32 %v2422, %v2423
    %v2425 = vrot.slane %v2424, 2
    %v2426 = vmax.f32 %v2424, %v2425
    %v2427 = vrot.slane %v2426, 1
    %v2428 = vmax.f32 %v2426, %v2427
    %v2429 = vmax.f32 %v2054, %v2058
    %v2430 = vrot.slane %v2429, 4
    %v2431 = vmax.f32 %v2429, %v2430
    %v2432 = vrot.slane %v2431, 2
    %v2433 = vmax.f32 %v2431, %v2432
    %v2434 = vrot.slane %v2433, 1
    %v2435 = vmax.f32 %v2433, %v2434
    %v2436 = vmax.f32 %v1497, %v1501
    %v2437 = vrot.slane %v2436, 4
    %v2438 = vmax.f32 %v2436, %v2437
    %v2439 = vrot.slane %v2438, 2
    %v2440 = vmax.f32 %v2438, %v2439
    %v2441 = vrot.slane %v2440, 1
    %v2442 = vmax.f32 %v2440, %v2441
    %v2443 = vmax.f32 %v1499, %v1503
    %v2444 = vrot.slane %v2443, 4
    %v2445 = vmax.f32 %v2443, %v2444
    %v2446 = vrot.slane %v2445, 2
    %v2447 = vmax.f32 %v2445, %v2446
    %v2448 = vrot.slane %v2447, 1
    %v2449 = vmax.f32 %v2447, %v2448
    %v2450 = vmax.f32 %v1610, %v1614
    %v2451 = vrot.slane %v2450, 4
    %v2452 = vmax.f32 %v2450, %v2451
    %v2453 = vrot.slane %v2452, 2
    %v2454 = vmax.f32 %v2452, %v2453
    %v2455 = vrot.slane %v2454, 1
    %v2456 = vmax.f32 %v2454, %v2455
    %v2457 = vmax.f32 %v1612, %v1616
    %v2458 = vrot.slane %v2457, 4
    %v2459 = vmax.f32 %v2457, %v2458
    %v2460 = vrot.slane %v2459, 2
    %v2461 = vmax.f32 %v2459, %v2460
    %v2462 = vrot.slane %v2461, 1
    %v2463 = vmax.f32 %v2461, %v2462
    %v2464 = vmax.f32 %v1723, %v1727
    %v2465 = vrot.slane %v2464, 4
    %v2466 = vmax.f32 %v2464, %v2465
    %v2467 = vrot.slane %v2466, 2
    %v2468 = vmax.f32 %v2466, %v2467
    %v2469 = vrot.slane %v2468, 1
    %v2470 = vmax.f32 %v2468, %v2469
    %v2471 = vmax.f32 %v1725, %v1729
    %v2472 = vrot.slane %v2471, 4
    %v2473 = vmax.f32 %v2471, %v2472
    %v2474 = vrot.slane %v2473, 2
    %v2475 = vmax.f32 %v2473, %v2474
    %v2476 = vrot.slane %v2475, 1
    %v2477 = vmax.f32 %v2475, %v2476
    %v2478 = vmax.f32 %v1836, %v1840
    %v2479 = vrot.slane %v2478, 4
    %v2480 = vmax.f32 %v2478, %v2479
    %v2481 = vrot.slane %v2480, 2
    %v2482 = vmax.f32 %v2480, %v2481
    %v2483 = vrot.slane %v2482, 1
    %v2484 = vmax.f32 %v2482, %v2483
    %v2485 = vmax.f32 %v1838, %v1842
    %v2486 = vrot.slane %v2485, 4
    %v2487 = vmax.f32 %v2485, %v2486
    %v2488 = vrot.slane %v2487, 2
    %v2489 = vmax.f32 %v2487, %v2488
    %v2490 = vrot.slane %v2489, 1
    %v2491 = vmax.f32 %v2489, %v2490
    %v2492 = vmax.f32 %v1949, %v1953
    %v2493 = vrot.slane %v2492, 4
    %v2494 = vmax.f32 %v2492, %v2493
    %v2495 = vrot.slane %v2494, 2
    %v2496 = vmax.f32 %v2494, %v2495
    %v2497 = vrot.slane %v2496, 1
    %v2498 = vmax.f32 %v2496, %v2497
    %v2499 = vmax.f32 %v1951, %v1955
    %v2500 = vrot.slane %v2499, 4
    %v2501 = vmax.f32 %v2499, %v2500
    %v2502 = vrot.slane %v2501, 2
    %v2503 = vmax.f32 %v2501, %v2502
    %v2504 = vrot.slane %v2503, 1
    %v2505 = vmax.f32 %v2503, %v2504
    %v2506 = vmax.f32 %v2062, %v2066
    %v2507 = vrot.slane %v2506, 4
    %v2508 = vmax.f32 %v2506, %v2507
    %v2509 = vrot.slane %v2508, 2
    %v2510 = vmax.f32 %v2508, %v2509
    %v2511 = vrot.slane %v2510, 1
    %v2512 = vmax.f32 %v2510, %v2511
    %v2513 = vmax.f32 %v2064, %v2068
    %v2514 = vrot.slane %v2513, 4
    %v2515 = vmax.f32 %v2513, %v2514
    %v2516 = vrot.slane %v2515, 2
    %v2517 = vmax.f32 %v2515, %v2516
    %v2518 = vrot.slane %v2517, 1
    %v2519 = vmax.f32 %v2517, %v2518
    %v2520 = vmax.f32 %v1507, %v1511
    %v2521 = vrot.slane %v2520, 4
    %v2522 = vmax.f32 %v2520, %v2521
    %v2523 = vrot.slane %v2522, 2
    %v2524 = vmax.f32 %v2522, %v2523
    %v2525 = vrot.slane %v2524, 1
    %v2526 = vmax.f32 %v2524, %v2525
    %v2527 = vmax.f32 %v1509, %v1513
    %v2528 = vrot.slane %v2527, 4
    %v2529 = vmax.f32 %v2527, %v2528
    %v2530 = vrot.slane %v2529, 2
    %v2531 = vmax.f32 %v2529, %v2530
    %v2532 = vrot.slane %v2531, 1
    %v2533 = vmax.f32 %v2531, %v2532
    %v2534 = vmax.f32 %v1620, %v1624
    %v2535 = vrot.slane %v2534, 4
    %v2536 = vmax.f32 %v2534, %v2535
    %v2537 = vrot.slane %v2536, 2
    %v2538 = vmax.f32 %v2536, %v2537
    %v2539 = vrot.slane %v2538, 1
    %v2540 = vmax.f32 %v2538, %v2539
    %v2541 = vmax.f32 %v1622, %v1626
    %v2542 = vrot.slane %v2541, 4
    %v2543 = vmax.f32 %v2541, %v2542
    %v2544 = vrot.slane %v2543, 2
    %v2545 = vmax.f32 %v2543, %v2544
    %v2546 = vrot.slane %v2545, 1
    %v2547 = vmax.f32 %v2545, %v2546
    %v2548 = vmax.f32 %v1733, %v1737
    %v2549 = vrot.slane %v2548, 4
    %v2550 = vmax.f32 %v2548, %v2549
    %v2551 = vrot.slane %v2550, 2
    %v2552 = vmax.f32 %v2550, %v2551
    %v2553 = vrot.slane %v2552, 1
    %v2554 = vmax.f32 %v2552, %v2553
    %v2555 = vmax.f32 %v1735, %v1739
    %v2556 = vrot.slane %v2555, 4
    %v2557 = vmax.f32 %v2555, %v2556
    %v2558 = vrot.slane %v2557, 2
    %v2559 = vmax.f32 %v2557, %v2558
    %v2560 = vrot.slane %v2559, 1
    %v2561 = vmax.f32 %v2559, %v2560
    %v2562 = vmax.f32 %v1846, %v1850
    %v2563 = vrot.slane %v2562, 4
    %v2564 = vmax.f32 %v2562, %v2563
    %v2565 = vrot.slane %v2564, 2
    %v2566 = vmax.f32 %v2564, %v2565
    %v2567 = vrot.slane %v2566, 1
    %v2568 = vmax.f32 %v2566, %v2567
    %v2569 = vmax.f32 %v1848, %v1852
    %v2570 = vrot.slane %v2569, 4
    %v2571 = vmax.f32 %v2569, %v2570
    %v2572 = vrot.slane %v2571, 2
    %v2573 = vmax.f32 %v2571, %v2572
    %v2574 = vrot.slane %v2573, 1
    %v2575 = vmax.f32 %v2573, %v2574
    %v2576 = vmax.f32 %v1959, %v1963
    %v2577 = vrot.slane %v2576, 4
    %v2578 = vmax.f32 %v2576, %v2577
    %v2579 = vrot.slane %v2578, 2
    %v2580 = vmax.f32 %v2578, %v2579
    %v2581 = vrot.slane %v2580, 1
    %v2582 = vmax.f32 %v2580, %v2581
    %v2583 = vmax.f32 %v1961, %v1965
    %v2584 = vrot.slane %v2583, 4
    %v2585 = vmax.f32 %v2583, %v2584
    %v2586 = vrot.slane %v2585, 2
    %v2587 = vmax.f32 %v2585, %v2586
    %v2588 = vrot.slane %v2587, 1
    %v2589 = vmax.f32 %v2587, %v2588
    %v2590 = vmax.f32 %v2072, %v2076
    %v2591 = vrot.slane %v2590, 4
    %v2592 = vmax.f32 %v2590, %v2591
    %v2593 = vrot.slane %v2592, 2
    %v2594 = vmax.f32 %v2592, %v2593
    %v2595 = vrot.slane %v2594, 1
    %v2596 = vmax.f32 %v2594, %v2595
    %v2597 = vmax.f32 %v2074, %v2078
    %v2598 = vrot.slane %v2597, 4
    %v2599 = vmax.f32 %v2597, %v2598
    %v2600 = vrot.slane %v2599, 2
    %v2601 = vmax.f32 %v2599, %v2600
    %v2602 = vrot.slane %v2601, 1
    %v2603 = vmax.f32 %v2601, %v2602
    %v2604 = vmax.f32 %v1517, %v1521
    %v2605 = vrot.slane %v2604, 4
    %v2606 = vmax.f32 %v2604, %v2605
    %v2607 = vrot.slane %v2606, 2
    %v2608 = vmax.f32 %v2606, %v2607
    %v2609 = vrot.slane %v2608, 1
    %v2610 = vmax.f32 %v2608, %v2609
    %v2611 = vmax.f32 %v1519, %v1523
    %v2612 = vrot.slane %v2611, 4
    %v2613 = vmax.f32 %v2611, %v2612
    %v2614 = vrot.slane %v2613, 2
    %v2615 = vmax.f32 %v2613, %v2614
    %v2616 = vrot.slane %v2615, 1
    %v2617 = vmax.f32 %v2615, %v2616
    %v2618 = vmax.f32 %v1630, %v1634
    %v2619 = vrot.slane %v2618, 4
    %v2620 = vmax.f32 %v2618, %v2619
    %v2621 = vrot.slane %v2620, 2
    %v2622 = vmax.f32 %v2620, %v2621
    %v2623 = vrot.slane %v2622, 1
    %v2624 = vmax.f32 %v2622, %v2623
    %v2625 = vmax.f32 %v1632, %v1636
    %v2626 = vrot.slane %v2625, 4
    %v2627 = vmax.f32 %v2625, %v2626
    %v2628 = vrot.slane %v2627, 2
    %v2629 = vmax.f32 %v2627, %v2628
    %v2630 = vrot.slane %v2629, 1
    %v2631 = vmax.f32 %v2629, %v2630
    %v2632 = vmax.f32 %v1743, %v1747
    %v2633 = vrot.slane %v2632, 4
    %v2634 = vmax.f32 %v2632, %v2633
    %v2635 = vrot.slane %v2634, 2
    %v2636 = vmax.f32 %v2634, %v2635
    %v2637 = vrot.slane %v2636, 1
    %v2638 = vmax.f32 %v2636, %v2637
    %v2639 = vmax.f32 %v1745, %v1749
    %v2640 = vrot.slane %v2639, 4
    %v2641 = vmax.f32 %v2639, %v2640
    %v2642 = vrot.slane %v2641, 2
    %v2643 = vmax.f32 %v2641, %v2642
    %v2644 = vrot.slane %v2643, 1
    %v2645 = vmax.f32 %v2643, %v2644
    %v2646 = vmax.f32 %v1856, %v1860
    %v2647 = vrot.slane %v2646, 4
    %v2648 = vmax.f32 %v2646, %v2647
    %v2649 = vrot.slane %v2648, 2
    %v2650 = vmax.f32 %v2648, %v2649
    %v2651 = vrot.slane %v2650, 1
    %v2652 = vmax.f32 %v2650, %v2651
    %v2653 = vmax.f32 %v1858, %v1862
    %v2654 = vrot.slane %v2653, 4
    %v2655 = vmax.f32 %v2653, %v2654
    %v2656 = vrot.slane %v2655, 2
    %v2657 = vmax.f32 %v2655, %v2656
    %v2658 = vrot.slane %v2657, 1
    %v2659 = vmax.f32 %v2657, %v2658
    %v2660 = vmax.f32 %v1969, %v1973
    %v2661 = vrot.slane %v2660, 4
    %v2662 = vmax.f32 %v2660, %v2661
    %v2663 = vrot.slane %v2662, 2
    %v2664 = vmax.f32 %v2662, %v2663
    %v2665 = vrot.slane %v2664, 1
    %v2666 = vmax.f32 %v2664, %v2665
    %v2667 = vmax.f32 %v1971, %v1975
    %v2668 = vrot.slane %v2667, 4
    %v2669 = vmax.f32 %v2667, %v2668
    %v2670 = vrot.slane %v2669, 2
    %v2671 = vmax.f32 %v2669, %v2670
    %v2672 = vrot.slane %v2671, 1
    %v2673 = vmax.f32 %v2671, %v2672
    %v2674 = vmax.f32 %v2082, %v2086
    %v2675 = vrot.slane %v2674, 4
    %v2676 = vmax.f32 %v2674, %v2675
    %v2677 = vrot.slane %v2676, 2
    %v2678 = vmax.f32 %v2676, %v2677
    %v2679 = vrot.slane %v2678, 1
    %v2680 = vmax.f32 %v2678, %v2679
    %v2681 = vmax.f32 %v2084, %v2088
    %v2682 = vrot.slane %v2681, 4
    %v2683 = vmax.f32 %v2681, %v2682
    %v2684 = vrot.slane %v2683, 2
    %v2685 = vmax.f32 %v2683, %v2684
    %v2686 = vrot.slane %v2685, 1
    %v2687 = vmax.f32 %v2685, %v2686
    %v2688 = vmax.f32 %v1527, %v1531
    %v2689 = vrot.slane %v2688, 4
    %v2690 = vmax.f32 %v2688, %v2689
    %v2691 = vrot.slane %v2690, 2
    %v2692 = vmax.f32 %v2690, %v2691
    %v2693 = vrot.slane %v2692, 1
    %v2694 = vmax.f32 %v2692, %v2693
    %v2695 = vmax.f32 %v1529, %v1533
    %v2696 = vrot.slane %v2695, 4
    %v2697 = vmax.f32 %v2695, %v2696
    %v2698 = vrot.slane %v2697, 2
    %v2699 = vmax.f32 %v2697, %v2698
    %v2700 = vrot.slane %v2699, 1
    %v2701 = vmax.f32 %v2699, %v2700
    %v2702 = vmax.f32 %v1640, %v1644
    %v2703 = vrot.slane %v2702, 4
    %v2704 = vmax.f32 %v2702, %v2703
    %v2705 = vrot.slane %v2704, 2
    %v2706 = vmax.f32 %v2704, %v2705
    %v2707 = vrot.slane %v2706, 1
    %v2708 = vmax.f32 %v2706, %v2707
    %v2709 = vmax.f32 %v1642, %v1646
    %v2710 = vrot.slane %v2709, 4
    %v2711 = vmax.f32 %v2709, %v2710
    %v2712 = vrot.slane %v2711, 2
    %v2713 = vmax.f32 %v2711, %v2712
    %v2714 = vrot.slane %v2713, 1
    %v2715 = vmax.f32 %v2713, %v2714
    %v2716 = vmax.f32 %v1753, %v1757
    %v2717 = vrot.slane %v2716, 4
    %v2718 = vmax.f32 %v2716, %v2717
    %v2719 = vrot.slane %v2718, 2
    %v2720 = vmax.f32 %v2718, %v2719
    %v2721 = vrot.slane %v2720, 1
    %v2722 = vmax.f32 %v2720, %v2721
    %v2723 = vmax.f32 %v1755, %v1759
    %v2724 = vrot.slane %v2723, 4
    %v2725 = vmax.f32 %v2723, %v2724
    %v2726 = vrot.slane %v2725, 2
    %v2727 = vmax.f32 %v2725, %v2726
    %v2728 = vrot.slane %v2727, 1
    %v2729 = vmax.f32 %v2727, %v2728
    %v2730 = vmax.f32 %v1866, %v1870
    %v2731 = vrot.slane %v2730, 4
    %v2732 = vmax.f32 %v2730, %v2731
    %v2733 = vrot.slane %v2732, 2
    %v2734 = vmax.f32 %v2732, %v2733
    %v2735 = vrot.slane %v2734, 1
    %v2736 = vmax.f32 %v2734, %v2735
    %v2737 = vmax.f32 %v1868, %v1872
    %v2738 = vrot.slane %v2737, 4
    %v2739 = vmax.f32 %v2737, %v2738
    %v2740 = vrot.slane %v2739, 2
    %v2741 = vmax.f32 %v2739, %v2740
    %v2742 = vrot.slane %v2741, 1
    %v2743 = vmax.f32 %v2741, %v2742
    %v2744 = vmax.f32 %v1979, %v1983
    %v2745 = vrot.slane %v2744, 4
    %v2746 = vmax.f32 %v2744, %v2745
    %v2747 = vrot.slane %v2746, 2
    %v2748 = vmax.f32 %v2746, %v2747
    %v2749 = vrot.slane %v2748, 1
    %v2750 = vmax.f32 %v2748, %v2749
    %v2751 = vmax.f32 %v1981, %v1985
    %v2752 = vrot.slane %v2751, 4
    %v2753 = vmax.f32 %v2751, %v2752
    %v2754 = vrot.slane %v2753, 2
    %v2755 = vmax.f32 %v2753, %v2754
    %v2756 = vrot.slane %v2755, 1
    %v2757 = vmax.f32 %v2755, %v2756
    %v2758 = vmax.f32 %v2092, %v2096
    %v2759 = vrot.slane %v2758, 4
    %v2760 = vmax.f32 %v2758, %v2759
    %v2761 = vrot.slane %v2760, 2
    %v2762 = vmax.f32 %v2760, %v2761
    %v2763 = vrot.slane %v2762, 1
    %v2764 = vmax.f32 %v2762, %v2763
    %v2765 = vmax.f32 %v2094, %v2098
    %v2766 = vrot.slane %v2765, 4
    %v2767 = vmax.f32 %v2765, %v2766
    %v2768 = vrot.slane %v2767, 2
    %v2769 = vmax.f32 %v2767, %v2768
    %v2770 = vrot.slane %v2769, 1
    %v2771 = vmax.f32 %v2769, %v2770
    %v2772 = vld [vmem:[%s3] sm:$0xff]
    %v2773 = vld [vmem:[%s3 + $0x8] sm:$0xf]
    %v2776 = vlaneseq
    %v2777 = vshrl.u32 %v2776, 7
    %v2778 = vsub.s32 0, %v2777
    %v2779 = vrot.slane %v2772, %v2778
    %v2780 = vlaneseq
    %v2781 = vshrl.u32 %v2780, 7
    %v2782 = vsub.s32 1, %v2781
    %v2783 = vrot.slane %v2772, %v2782
    %v2784 = vlaneseq
    %v2785 = vshrl.u32 %v2784, 7
    %v2786 = vsub.s32 2, %v2785
    %v2787 = vrot.slane %v2772, %v2786
    %v2788 = vlaneseq
    %v2789 = vshrl.u32 %v2788, 7
    %v2790 = vsub.s32 3, %v2789
    %v2791 = vrot.slane %v2772, %v2790
    %v2792 = vlaneseq
    %v2793 = vshrl.u32 %v2792, 7
    %v2794 = vsub.s32 4, %v2793
    %v2795 = vrot.slane %v2772, %v2794
    %v2796 = vlaneseq
    %v2797 = vshrl.u32 %v2796, 7
    %v2798 = vsub.s32 5, %v2797
    %v2799 = vrot.slane %v2772, %v2798
    %v2800 = vlaneseq
    %v2801 = vshrl.u32 %v2800, 7
    %v2802 = vsub.s32 6, %v2801
    %v2803 = vrot.slane %v2772, %v2802
    %v2804 = vlaneseq
    %v2805 = vshrl.u32 %v2804, 7
    %v2806 = vsub.s32 7, %v2805
    %v2807 = vrot.slane %v2772, %v2806
    %v2808 = vlaneseq
    %v2809 = vshrl.u32 %v2808, 7
    %v2810 = vsub.s32 0, %v2809
    %v2811 = vrot.slane %v2773, %v2810
    %v2812 = vlaneseq
    %v2813 = vshrl.u32 %v2812, 7
    %v2814 = vsub.s32 1, %v2813
    %v2815 = vrot.slane %v2773, %v2814
    %v2816 = vlaneseq
    %v2817 = vshrl.u32 %v2816, 7
    %v2818 = vsub.s32 2, %v2817
    %v2819 = vrot.slane %v2773, %v2818
    %v2820 = vlaneseq
    %v2821 = vshrl.u32 %v2820, 7
    %v2822 = vsub.s32 3, %v2821
    %v2823 = vrot.slane %v2773, %v2822
    %v2836 = vadd.f32 %v2106, %v2779
    %v2837 = vadd.f32 %v2113, %v2783
    %v2838 = vadd.f32 %v2120, %v2787
    %v2839 = vadd.f32 %v2127, %v2791
    %v2840 = vadd.f32 %v2134, %v2795
    %v2841 = vadd.f32 %v2141, %v2799
    %v2842 = vadd.f32 %v2148, %v2803
    %v2843 = vadd.f32 %v2155, %v2807
    %v2844 = vadd.f32 %v2162, %v2811
    %v2845 = vadd.f32 %v2169, %v2815
    %v2846 = vadd.f32 %v2176, %v2819
    %v2847 = vadd.f32 %v2183, %v2823
    %v2848 = vadd.f32 %v2190, %v2779
    %v2849 = vadd.f32 %v2197, %v2783
    %v2850 = vadd.f32 %v2204, %v2787
    %v2851 = vadd.f32 %v2211, %v2791
    %v2852 = vadd.f32 %v2218, %v2795
    %v2853 = vadd.f32 %v2225, %v2799
    %v2854 = vadd.f32 %v2232, %v2803
    %v2855 = vadd.f32 %v2239, %v2807
    %v2856 = vadd.f32 %v2246, %v2811
    %v2857 = vadd.f32 %v2253, %v2815
    %v2858 = vadd.f32 %v2260, %v2819
    %v2859 = vadd.f32 %v2267, %v2823
    %v2860 = vadd.f32 %v2274, %v2779
    %v2861 = vadd.f32 %v2281, %v2783
    %v2862 = vadd.f32 %v2288, %v2787
    %v2863 = vadd.f32 %v2295, %v2791
    %v2864 = vadd.f32 %v2302, %v2795
    %v2865 = vadd.f32 %v2309, %v2799
    %v2866 = vadd.f32 %v2316, %v2803
    %v2867 = vadd.f32 %v2323, %v2807
    %v2868 = vadd.f32 %v2330, %v2811
    %v2869 = vadd.f32 %v2337, %v2815
    %v2870 = vadd.f32 %v2344, %v2819
    %v2871 = vadd.f32 %v2351, %v2823
    %v2872 = vadd.f32 %v2358, %v2779
    %v2873 = vadd.f32 %v2365, %v2783
    %v2874 = vadd.f32 %v2372, %v2787
    %v2875 = vadd.f32 %v2379, %v2791
    %v2876 = vadd.f32 %v2386, %v2795
    %v2877 = vadd.f32 %v2393, %v2799
    %v2878 = vadd.f32 %v2400, %v2803
    %v2879 = vadd.f32 %v2407, %v2807
    %v2880 = vadd.f32 %v2414, %v2811
    %v2881 = vadd.f32 %v2421, %v2815
    %v2882 = vadd.f32 %v2428, %v2819
    %v2883 = vadd.f32 %v2435, %v2823
    %v2884 = vadd.f32 %v2442, %v2779
    %v2885 = vadd.f32 %v2449, %v2783
    %v2886 = vadd.f32 %v2456, %v2787
    %v2887 = vadd.f32 %v2463, %v2791
    %v2888 = vadd.f32 %v2470, %v2795
    %v2889 = vadd.f32 %v2477, %v2799
    %v2890 = vadd.f32 %v2484, %v2803
    %v2891 = vadd.f32 %v2491, %v2807
    %v2892 = vadd.f32 %v2498, %v2811
    %v2893 = vadd.f32 %v2505, %v2815
    %v2894 = vadd.f32 %v2512, %v2819
    %v2895 = vadd.f32 %v2519, %v2823
    %v2896 = vadd.f32 %v2526, %v2779
    %v2897 = vadd.f32 %v2533, %v2783
    %v2898 = vadd.f32 %v2540, %v2787
    %v2899 = vadd.f32 %v2547, %v2791
    %v2900 = vadd.f32 %v2554, %v2795
    %v2901 = vadd.f32 %v2561, %v2799
    %v2902 = vadd.f32 %v2568, %v2803
    %v2903 = vadd.f32 %v2575, %v2807
    %v2904 = vadd.f32 %v2582, %v2811
    %v2905 = vadd.f32 %v2589, %v2815
    %v2906 = vadd.f32 %v2596, %v2819
    %v2907 = vadd.f32 %v2603, %v2823
    %v2908 = vadd.f32 %v2610, %v2779
    %v2909 = vadd.f32 %v2617, %v2783
    %v2910 = vadd.f32 %v2624, %v2787
    %v2911 = vadd.f32 %v2631, %v2791
    %v2912 = vadd.f32 %v2638, %v2795
    %v2913 = vadd.f32 %v2645, %v2799
    %v2914 = vadd.f32 %v2652, %v2803
    %v2915 = vadd.f32 %v2659, %v2807
    %v2916 = vadd.f32 %v2666, %v2811
    %v2917 = vadd.f32 %v2673, %v2815
    %v2918 = vadd.f32 %v2680, %v2819
    %v2919 = vadd.f32 %v2687, %v2823
    %v2920 = vadd.f32 %v2694, %v2779
    %v2921 = vadd.f32 %v2701, %v2783
    %v2922 = vadd.f32 %v2708, %v2787
    %v2923 = vadd.f32 %v2715, %v2791
    %v2924 = vadd.f32 %v2722, %v2795
    %v2925 = vadd.f32 %v2729, %v2799
    %v2926 = vadd.f32 %v2736, %v2803
    %v2927 = vadd.f32 %v2743, %v2807
    %v2928 = vadd.f32 %v2750, %v2811
    %v2929 = vadd.f32 %v2757, %v2815
    %v2930 = vadd.f32 %v2764, %v2819
    %v2931 = vadd.f32 %v2771, %v2823
    %v2932 = vtanh.pop %v2836
    %v2933 = vtanh.pop %v2837
    %v2934 = vtanh.pop %v2838
    %v2935 = vtanh.pop %v2839
    %v2936 = vtanh.pop %v2840
    %v2937 = vtanh.pop %v2841
    %v2938 = vtanh.pop %v2842
    %v2939 = vtanh.pop %v2843
    %v2940 = vtanh.pop %v2844
    %v2941 = vtanh.pop %v2845
    %v2942 = vtanh.pop %v2846
    %v2943 = vtanh.pop %v2847
    %v2944 = vtanh.pop %v2848
    %v2945 = vtanh.pop %v2849
    %v2946 = vtanh.pop %v2850
    %v2947 = vtanh.pop %v2851
    %v2948 = vtanh.pop %v2852
    %v2949 = vtanh.pop %v2853
    %v2950 = vtanh.pop %v2854
    %v2951 = vtanh.pop %v2855
    %v2952 = vtanh.pop %v2856
    %v2953 = vtanh.pop %v2857
    %v2954 = vtanh.pop %v2858
    %v2955 = vtanh.pop %v2859
    %v2956 = vtanh.pop %v2860
    %v2957 = vtanh.pop %v2861
    %v2958 = vtanh.pop %v2862
    %v2959 = vtanh.pop %v2863
    %v2960 = vtanh.pop %v2864
    %v2961 = vtanh.pop %v2865
    %v2962 = vtanh.pop %v2866
    %v2963 = vtanh.pop %v2867
    %v2964 = vtanh.pop %v2868
    %v2965 = vtanh.pop %v2869
    %v2966 = vtanh.pop %v2870
    %v2967 = vtanh.pop %v2871
    %v2968 = vtanh.pop %v2872
    %v2969 = vtanh.pop %v2873
    %v2970 = vtanh.pop %v2874
    %v2971 = vtanh.pop %v2875
    %v2972 = vtanh.pop %v2876
    %v2973 = vtanh.pop %v2877
    %v2974 = vtanh.pop %v2878
    %v2975 = vtanh.pop %v2879
    %v2976 = vtanh.pop %v2880
    %v2977 = vtanh.pop %v2881
    %v2978 = vtanh.pop %v2882
    %v2979 = vtanh.pop %v2883
    %v2980 = vtanh.pop %v2884
    %v2981 = vtanh.pop %v2885
    %v2982 = vtanh.pop %v2886
    %v2983 = vtanh.pop %v2887
    %v2984 = vtanh.pop %v2888
    %v2985 = vtanh.pop %v2889
    %v2986 = vtanh.pop %v2890
    %v2987 = vtanh.pop %v2891
    %v2988 = vtanh.pop %v2892
    %v2989 = vtanh.pop %v2893
    %v2990 = vtanh.pop %v2894
    %v2991 = vtanh.pop %v2895
    %v2992 = vtanh.pop %v2896
    %v2993 = vtanh.pop %v2897
    %v2994 = vtanh.pop %v2898
    %v2995 = vtanh.pop %v2899
    %v2996 = vtanh.pop %v2900
    %v2997 = vtanh.pop %v2901
    %v2998 = vtanh.pop %v2902
    %v2999 = vtanh.pop %v2903
    %v3000 = vtanh.pop %v2904
    %v3001 = vtanh.pop %v2905
    %v3002 = vtanh.pop %v2906
    %v3003 = vtanh.pop %v2907
    %v3004 = vtanh.pop %v2908
    %v3005 = vtanh.pop %v2909
    %v3006 = vtanh.pop %v2910
    %v3007 = vtanh.pop %v2911
    %v3008 = vtanh.pop %v2912
    %v3009 = vtanh.pop %v2913
    %v3010 = vtanh.pop %v2914
    %v3011 = vtanh.pop %v2915
    %v3012 = vtanh.pop %v2916
    %v3013 = vtanh.pop %v2917
    %v3014 = vtanh.pop %v2918
    %v3015 = vtanh.pop %v2919
    %v3016 = vtanh.pop %v2920
    %v3017 = vtanh.pop %v2921
    %v3018 = vtanh.pop %v2922
    %v3019 = vtanh.pop %v2923
    %v3020 = vtanh.pop %v2924
    %v3021 = vtanh.pop %v2925
    %v3022 = vtanh.pop %v2926
    %v3023 = vtanh.pop %v2927
    %v3024 = vtanh.pop %v2928
    %v3025 = vtanh.pop %v2929
    %v3026 = vtanh.pop %v2930
    %v3027 = vtanh.pop %v2931
    %v3028 = vpack.c.bf16 %v2932, %v2932
    %v3029 = vpack.c.bf16 %v2933, %v2933
    %v3030 = vpack.c.bf16 %v2934, %v2934
    %v3031 = vpack.c.bf16 %v2935, %v2935
    %v3032 = vpack.c.bf16 %v2936, %v2936
    %v3033 = vpack.c.bf16 %v2937, %v2937
    %v3034 = vpack.c.bf16 %v2938, %v2938
    %v3035 = vpack.c.bf16 %v2939, %v2939
    %v3036 = vpack.c.bf16 %v2940, %v2940
    %v3037 = vpack.c.bf16 %v2941, %v2941
    %v3038 = vpack.c.bf16 %v2942, %v2942
    %v3039 = vpack.c.bf16 %v2943, %v2943
    %v3040 = vpack.c.bf16 %v2944, %v2944
    %v3041 = vpack.c.bf16 %v2945, %v2945
    %v3042 = vpack.c.bf16 %v2946, %v2946
    %v3043 = vpack.c.bf16 %v2947, %v2947
    %v3044 = vpack.c.bf16 %v2948, %v2948
    %v3045 = vpack.c.bf16 %v2949, %v2949
    %v3046 = vpack.c.bf16 %v2950, %v2950
    %v3047 = vpack.c.bf16 %v2951, %v2951
    %v3048 = vpack.c.bf16 %v2952, %v2952
    %v3049 = vpack.c.bf16 %v2953, %v2953
    %v3050 = vpack.c.bf16 %v2954, %v2954
    %v3051 = vpack.c.bf16 %v2955, %v2955
    %v3052 = vpack.c.bf16 %v2956, %v2956
    %v3053 = vpack.c.bf16 %v2957, %v2957
    %v3054 = vpack.c.bf16 %v2958, %v2958
    %v3055 = vpack.c.bf16 %v2959, %v2959
    %v3056 = vpack.c.bf16 %v2960, %v2960
    %v3057 = vpack.c.bf16 %v2961, %v2961
    %v3058 = vpack.c.bf16 %v2962, %v2962
    %v3059 = vpack.c.bf16 %v2963, %v2963
    %v3060 = vpack.c.bf16 %v2964, %v2964
    %v3061 = vpack.c.bf16 %v2965, %v2965
    %v3062 = vpack.c.bf16 %v2966, %v2966
    %v3063 = vpack.c.bf16 %v2967, %v2967
    %v3064 = vpack.c.bf16 %v2968, %v2968
    %v3065 = vpack.c.bf16 %v2969, %v2969
    %v3066 = vpack.c.bf16 %v2970, %v2970
    %v3067 = vpack.c.bf16 %v2971, %v2971
    %v3068 = vpack.c.bf16 %v2972, %v2972
    %v3069 = vpack.c.bf16 %v2973, %v2973
    %v3070 = vpack.c.bf16 %v2974, %v2974
    %v3071 = vpack.c.bf16 %v2975, %v2975
    %v3072 = vpack.c.bf16 %v2976, %v2976
    %v3073 = vpack.c.bf16 %v2977, %v2977
    %v3074 = vpack.c.bf16 %v2978, %v2978
    %v3075 = vpack.c.bf16 %v2979, %v2979
    %v3076 = vpack.c.bf16 %v2980, %v2980
    %v3077 = vpack.c.bf16 %v2981, %v2981
    %v3078 = vpack.c.bf16 %v2982, %v2982
    %v3079 = vpack.c.bf16 %v2983, %v2983
    %v3080 = vpack.c.bf16 %v2984, %v2984
    %v3081 = vpack.c.bf16 %v2985, %v2985
    %v3082 = vpack.c.bf16 %v2986, %v2986
    %v3083 = vpack.c.bf16 %v2987, %v2987
    %v3084 = vpack.c.bf16 %v2988, %v2988
    %v3085 = vpack.c.bf16 %v2989, %v2989
    %v3086 = vpack.c.bf16 %v2990, %v2990
    %v3087 = vpack.c.bf16 %v2991, %v2991
    %v3088 = vpack.c.bf16 %v2992, %v2992
    %v3089 = vpack.c.bf16 %v2993, %v2993
    %v3090 = vpack.c.bf16 %v2994, %v2994
    %v3091 = vpack.c.bf16 %v2995, %v2995
    %v3092 = vpack.c.bf16 %v2996, %v2996
    %v3093 = vpack.c.bf16 %v2997, %v2997
    %v3094 = vpack.c.bf16 %v2998, %v2998
    %v3095 = vpack.c.bf16 %v2999, %v2999
    %v3096 = vpack.c.bf16 %v3000, %v3000
    %v3097 = vpack.c.bf16 %v3001, %v3001
    %v3098 = vpack.c.bf16 %v3002, %v3002
    %v3099 = vpack.c.bf16 %v3003, %v3003
    %v3100 = vpack.c.bf16 %v3004, %v3004
    %v3101 = vpack.c.bf16 %v3005, %v3005
    %v3102 = vpack.c.bf16 %v3006, %v3006
    %v3103 = vpack.c.bf16 %v3007, %v3007
    %v3104 = vpack.c.bf16 %v3008, %v3008
    %v3105 = vpack.c.bf16 %v3009, %v3009
    %v3106 = vpack.c.bf16 %v3010, %v3010
    %v3107 = vpack.c.bf16 %v3011, %v3011
    %v3108 = vpack.c.bf16 %v3012, %v3012
    %v3109 = vpack.c.bf16 %v3013, %v3013
    %v3110 = vpack.c.bf16 %v3014, %v3014
    %v3111 = vpack.c.bf16 %v3015, %v3015
    %v3112 = vpack.c.bf16 %v3016, %v3016
    %v3113 = vpack.c.bf16 %v3017, %v3017
    %v3114 = vpack.c.bf16 %v3018, %v3018
    %v3115 = vpack.c.bf16 %v3019, %v3019
    %v3116 = vpack.c.bf16 %v3020, %v3020
    %v3117 = vpack.c.bf16 %v3021, %v3021
    %v3118 = vpack.c.bf16 %v3022, %v3022
    %v3119 = vpack.c.bf16 %v3023, %v3023
    %v3120 = vpack.c.bf16 %v3024, %v3024
    %v3121 = vpack.c.bf16 %v3025, %v3025
    %v3122 = vpack.c.bf16 %v3026, %v3026
    %v3123 = vpack.c.bf16 %v3027, %v3027
    %v3124 = vld [vmem:[#allocation5] sm:$0xf]
    %v3125 = vld [vmem:[#allocation5 + $0x4] sm:$0xf]
    %v3126 = vld [vmem:[#allocation5 + $0x8] sm:$0xf]
    %v3127 = vld [vmem:[#allocation5 + $0xc] sm:$0xf]
    %v3128 = vld [vmem:[#allocation5 + $0x10] sm:$0xf]
    %v3129 = vld [vmem:[#allocation5 + $0x14] sm:$0xf]
    %v3130 = vld [vmem:[#allocation5 + $0x18] sm:$0xf]
    %v3131 = vld [vmem:[#allocation5 + $0x1c] sm:$0xf]
    %v3132 = vld [vmem:[#allocation5 + $0x20] sm:$0xf]
    %v3133 = vld [vmem:[#allocation5 + $0x24] sm:$0xf]
    %v3134 = vld [vmem:[#allocation5 + $0x28] sm:$0xf]
    %v3135 = vld [vmem:[#allocation5 + $0x2c] sm:$0xf]
    %v3136 = vld [vmem:[#allocation5 + $0x30] sm:$0xf]
    %v3137 = vld [vmem:[#allocation5 + $0x34] sm:$0xf]
    %v3138 = vld [vmem:[#allocation5 + $0x38] sm:$0xf]
    %v3139 = vld [vmem:[#allocation5 + $0x3c] sm:$0xf]
    %v3140 = vld [vmem:[#allocation5 + $0x40] sm:$0xf]
    %v3141 = vld [vmem:[#allocation5 + $0x44] sm:$0xf]
    %v3142 = vld [vmem:[#allocation5 + $0x48] sm:$0xf]
    %v3143 = vld [vmem:[#allocation5 + $0x4c] sm:$0xf]
    %v3144 = vld [vmem:[#allocation5 + $0x50] sm:$0xf]
    %v3145 = vld [vmem:[#allocation5 + $0x54] sm:$0xf]
    %v3146 = vld [vmem:[#allocation5 + $0x58] sm:$0xf]
    %v3147 = vld [vmem:[#allocation5 + $0x5c] sm:$0xf]
    %v3148 = vld [vmem:[#allocation5 + $0x60] sm:$0xf]
    %v3149 = vld [vmem:[#allocation5 + $0x64] sm:$0xf]
    %v3150 = vld [vmem:[#allocation5 + $0x68] sm:$0xf]
    %v3151 = vld [vmem:[#allocation5 + $0x6c] sm:$0xf]
    %v3152 = vld [vmem:[#allocation5 + $0x70] sm:$0xf]
    %v3153 = vld [vmem:[#allocation5 + $0x74] sm:$0xf]
    %v3154 = vld [vmem:[#allocation5 + $0x78] sm:$0xf]
    %v3155 = vld [vmem:[#allocation5 + $0x7c] sm:$0xf]
    %v3156 = vld [vmem:[#allocation5 + $0x80] sm:$0xf]
    %v3157 = vld [vmem:[#allocation5 + $0x84] sm:$0xf]
    %v3158 = vld [vmem:[#allocation5 + $0x88] sm:$0xf]
    %v3159 = vld [vmem:[#allocation5 + $0x8c] sm:$0xf]
    %v3160 = vld [vmem:[#allocation5 + $0x90] sm:$0xf]
    %v3161 = vld [vmem:[#allocation5 + $0x94] sm:$0xf]
    %v3162 = vld [vmem:[#allocation5 + $0x98] sm:$0xf]
    %v3163 = vld [vmem:[#allocation5 + $0x9c] sm:$0xf]
    %v3164 = vld [vmem:[#allocation5 + $0xa0] sm:$0xf]
    %v3165 = vld [vmem:[#allocation5 + $0xa4] sm:$0xf]
    %v3166 = vld [vmem:[#allocation5 + $0xa8] sm:$0xf]
    %v3167 = vld [vmem:[#allocation5 + $0xac] sm:$0xf]
    %v3168 = vld [vmem:[#allocation5 + $0xb0] sm:$0xf]
    %v3169 = vld [vmem:[#allocation5 + $0xb4] sm:$0xf]
    %v3170 = vld [vmem:[#allocation5 + $0xb8] sm:$0xf]
    %v3171 = vld [vmem:[#allocation5 + $0xbc] sm:$0xf]
    %v3172 = vld [vmem:[#allocation5 + $0xc0] sm:$0xf]
    %v3173 = vld [vmem:[#allocation5 + $0xc4] sm:$0xf]
    %v3174 = vld [vmem:[#allocation5 + $0xc8] sm:$0xf]
    %v3175 = vld [vmem:[#allocation5 + $0xcc] sm:$0xf]
    %v3176 = vld [vmem:[#allocation5 + $0xd0] sm:$0xf]
    %v3177 = vld [vmem:[#allocation5 + $0xd4] sm:$0xf]
    %v3178 = vld [vmem:[#allocation5 + $0xd8] sm:$0xf]
    %v3179 = vld [vmem:[#allocation5 + $0xdc] sm:$0xf]
    %v3180 = vld [vmem:[#allocation5 + $0xe0] sm:$0xf]
    %v3181 = vld [vmem:[#allocation5 + $0xe4] sm:$0xf]
    %v3182 = vld [vmem:[#allocation5 + $0xe8] sm:$0xf]
    %v3183 = vld [vmem:[#allocation5 + $0xec] sm:$0xf]
    %v3184 = vld [vmem:[#allocation5 + $0xf0] sm:$0xf]
    %v3185 = vld [vmem:[#allocation5 + $0xf4] sm:$0xf]
    %v3186 = vld [vmem:[#allocation5 + $0xf8] sm:$0xf]
    %v3187 = vld [vmem:[#allocation5 + $0xfc] sm:$0xf]
    %v3188 = vld [vmem:[#allocation5 + $0x100] sm:$0xf]
    %v3189 = vld [vmem:[#allocation5 + $0x104] sm:$0xf]
    %v3190 = vld [vmem:[#allocation5 + $0x108] sm:$0xf]
    %v3191 = vld [vmem:[#allocation5 + $0x10c] sm:$0xf]
    %v3192 = vld [vmem:[#allocation5 + $0x110] sm:$0xf]
    %v3193 = vld [vmem:[#allocation5 + $0x114] sm:$0xf]
    %v3194 = vld [vmem:[#allocation5 + $0x118] sm:$0xf]
    %v3195 = vld [vmem:[#allocation5 + $0x11c] sm:$0xf]
    %v3196 = vld [vmem:[#allocation5 + $0x120] sm:$0xf]
    %v3197 = vld [vmem:[#allocation5 + $0x124] sm:$0xf]
    %v3198 = vld [vmem:[#allocation5 + $0x128] sm:$0xf]
    %v3199 = vld [vmem:[#allocation5 + $0x12c] sm:$0xf]
    %v3200 = vld [vmem:[#allocation5 + $0x130] sm:$0xf]
    %v3201 = vld [vmem:[#allocation5 + $0x134] sm:$0xf]
    %v3202 = vld [vmem:[#allocation5 + $0x138] sm:$0xf]
    %v3203 = vld [vmem:[#allocation5 + $0x13c] sm:$0xf]
    %v3204 = vld [vmem:[#allocation5 + $0x140] sm:$0xf]
    %v3205 = vld [vmem:[#allocation5 + $0x144] sm:$0xf]
    %v3206 = vld [vmem:[#allocation5 + $0x148] sm:$0xf]
    %v3207 = vld [vmem:[#allocation5 + $0x14c] sm:$0xf]
    %v3208 = vld [vmem:[#allocation5 + $0x150] sm:$0xf]
    %v3209 = vld [vmem:[#allocation5 + $0x154] sm:$0xf]
    %v3210 = vld [vmem:[#allocation5 + $0x158] sm:$0xf]
    %v3211 = vld [vmem:[#allocation5 + $0x15c] sm:$0xf]
    %v3212 = vld [vmem:[#allocation5 + $0x160] sm:$0xf]
    %v3213 = vld [vmem:[#allocation5 + $0x164] sm:$0xf]
    %v3214 = vld [vmem:[#allocation5 + $0x168] sm:$0xf]
    %v3215 = vld [vmem:[#allocation5 + $0x16c] sm:$0xf]
    %v3216 = vld [vmem:[#allocation5 + $0x170] sm:$0xf]
    %v3217 = vld [vmem:[#allocation5 + $0x174] sm:$0xf]
    %v3218 = vld [vmem:[#allocation5 + $0x178] sm:$0xf]
    %v3219 = vld [vmem:[#allocation5 + $0x17c] sm:$0xf]
    %v3220 = vld [vmem:[#allocation5 + $0x180] sm:$0xf]
    %v3221 = vld [vmem:[#allocation5 + $0x184] sm:$0xf]
    %v3222 = vld [vmem:[#allocation5 + $0x188] sm:$0xf]
    %v3223 = vld [vmem:[#allocation5 + $0x18c] sm:$0xf]
    %v3224 = vld [vmem:[#allocation5 + $0x190] sm:$0xf]
    %v3225 = vld [vmem:[#allocation5 + $0x194] sm:$0xf]
    %v3226 = vld [vmem:[#allocation5 + $0x198] sm:$0xf]
    %v3227 = vld [vmem:[#allocation5 + $0x19c] sm:$0xf]
    %v3228 = vld [vmem:[#allocation5 + $0x1a0] sm:$0xf]
    %v3229 = vld [vmem:[#allocation5 + $0x1a4] sm:$0xf]
    %v3230 = vld [vmem:[#allocation5 + $0x1a8] sm:$0xf]
    %v3231 = vld [vmem:[#allocation5 + $0x1ac] sm:$0xf]
    %v3232 = vld [vmem:[#allocation5 + $0x1b0] sm:$0xf]
    %v3233 = vld [vmem:[#allocation5 + $0x1b4] sm:$0xf]
    %v3234 = vld [vmem:[#allocation5 + $0x1b8] sm:$0xf]
    %v3235 = vld [vmem:[#allocation5 + $0x1bc] sm:$0xf]
    %v3236 = vld [vmem:[#allocation5 + $0x1c0] sm:$0xf]
    %v3237 = vld [vmem:[#allocation5 + $0x1c4] sm:$0xf]
    %v3238 = vld [vmem:[#allocation5 + $0x1c8] sm:$0xf]
    %v3239 = vld [vmem:[#allocation5 + $0x1cc] sm:$0xf]
    %v3240 = vld [vmem:[#allocation5 + $0x1d0] sm:$0xf]
    %v3241 = vld [vmem:[#allocation5 + $0x1d4] sm:$0xf]
    %v3242 = vld [vmem:[#allocation5 + $0x1d8] sm:$0xf]
    %v3243 = vld [vmem:[#allocation5 + $0x1dc] sm:$0xf]
    %v3244 = vld [vmem:[#allocation5 + $0x1e0] sm:$0xf]
    %v3245 = vld [vmem:[#allocation5 + $0x1e4] sm:$0xf]
    %v3246 = vld [vmem:[#allocation5 + $0x1e8] sm:$0xf]
    %v3247 = vld [vmem:[#allocation5 + $0x1ec] sm:$0xf]
    %v3248 = vld [vmem:[#allocation5 + $0x1f0] sm:$0xf]
    %v3249 = vld [vmem:[#allocation5 + $0x1f4] sm:$0xf]
    %v3250 = vld [vmem:[#allocation5 + $0x1f8] sm:$0xf]
    %v3251 = vld [vmem:[#allocation5 + $0x1fc] sm:$0xf]
    %v3252 = vld [vmem:[#allocation5 + $0x200] sm:$0xf]
    %v3253 = vld [vmem:[#allocation5 + $0x204] sm:$0xf]
    %v3254 = vld [vmem:[#allocation5 + $0x208] sm:$0xf]
    %v3255 = vld [vmem:[#allocation5 + $0x20c] sm:$0xf]
    %v3256 = vld [vmem:[#allocation5 + $0x210] sm:$0xf]
    %v3257 = vld [vmem:[#allocation5 + $0x214] sm:$0xf]
    %v3258 = vld [vmem:[#allocation5 + $0x218] sm:$0xf]
    %v3259 = vld [vmem:[#allocation5 + $0x21c] sm:$0xf]
    %v3260 = vld [vmem:[#allocation5 + $0x220] sm:$0xf]
    %v3261 = vld [vmem:[#allocation5 + $0x224] sm:$0xf]
    %v3262 = vld [vmem:[#allocation5 + $0x228] sm:$0xf]
    %v3263 = vld [vmem:[#allocation5 + $0x22c] sm:$0xf]
    %v3264 = vld [vmem:[#allocation5 + $0x230] sm:$0xf]
    %v3265 = vld [vmem:[#allocation5 + $0x234] sm:$0xf]
    %v3266 = vld [vmem:[#allocation5 + $0x238] sm:$0xf]
    %v3267 = vld [vmem:[#allocation5 + $0x23c] sm:$0xf]
    %v3268 = vld [vmem:[#allocation5 + $0x240] sm:$0xf]
    %v3269 = vld [vmem:[#allocation5 + $0x244] sm:$0xf]
    %v3270 = vld [vmem:[#allocation5 + $0x248] sm:$0xf]
    %v3271 = vld [vmem:[#allocation5 + $0x24c] sm:$0xf]
    %v3272 = vld [vmem:[#allocation5 + $0x250] sm:$0xf]
    %v3273 = vld [vmem:[#allocation5 + $0x254] sm:$0xf]
    %v3274 = vld [vmem:[#allocation5 + $0x258] sm:$0xf]
    %v3275 = vld [vmem:[#allocation5 + $0x25c] sm:$0xf]
    %v3276 = vld [vmem:[#allocation5 + $0x260] sm:$0xf]
    %v3277 = vld [vmem:[#allocation5 + $0x264] sm:$0xf]
    %v3278 = vld [vmem:[#allocation5 + $0x268] sm:$0xf]
    %v3279 = vld [vmem:[#allocation5 + $0x26c] sm:$0xf]
    %v3280 = vld [vmem:[#allocation5 + $0x270] sm:$0xf]
    %v3281 = vld [vmem:[#allocation5 + $0x274] sm:$0xf]
    %v3282 = vld [vmem:[#allocation5 + $0x278] sm:$0xf]
    %v3283 = vld [vmem:[#allocation5 + $0x27c] sm:$0xf]
    %v3284 = vld [vmem:[#allocation5 + $0x280] sm:$0xf]
    %v3285 = vld [vmem:[#allocation5 + $0x284] sm:$0xf]
    %v3286 = vld [vmem:[#allocation5 + $0x288] sm:$0xf]
    %v3287 = vld [vmem:[#allocation5 + $0x28c] sm:$0xf]
    %v3288 = vld [vmem:[#allocation5 + $0x290] sm:$0xf]
    %v3289 = vld [vmem:[#allocation5 + $0x294] sm:$0xf]
    %v3290 = vld [vmem:[#allocation5 + $0x298] sm:$0xf]
    %v3291 = vld [vmem:[#allocation5 + $0x29c] sm:$0xf]
    %v3292 = vld [vmem:[#allocation5 + $0x2a0] sm:$0xf]
    %v3293 = vld [vmem:[#allocation5 + $0x2a4] sm:$0xf]
    %v3294 = vld [vmem:[#allocation5 + $0x2a8] sm:$0xf]
    %v3295 = vld [vmem:[#allocation5 + $0x2ac] sm:$0xf]
    %v3296 = vld [vmem:[#allocation5 + $0x2b0] sm:$0xf]
    %v3297 = vld [vmem:[#allocation5 + $0x2b4] sm:$0xf]
    %v3298 = vld [vmem:[#allocation5 + $0x2b8] sm:$0xf]
    %v3299 = vld [vmem:[#allocation5 + $0x2bc] sm:$0xf]
    %v3300 = vld [vmem:[#allocation5 + $0x2c0] sm:$0xf]
    %v3301 = vld [vmem:[#allocation5 + $0x2c4] sm:$0xf]
    %v3302 = vld [vmem:[#allocation5 + $0x2c8] sm:$0xf]
    %v3303 = vld [vmem:[#allocation5 + $0x2cc] sm:$0xf]
    %v3304 = vld [vmem:[#allocation5 + $0x2d0] sm:$0xf]
    %v3305 = vld [vmem:[#allocation5 + $0x2d4] sm:$0xf]
    %v3306 = vld [vmem:[#allocation5 + $0x2d8] sm:$0xf]
    %v3307 = vld [vmem:[#allocation5 + $0x2dc] sm:$0xf]
    %v3308 = vld [vmem:[#allocation5 + $0x2e0] sm:$0xf]
    %v3309 = vld [vmem:[#allocation5 + $0x2e4] sm:$0xf]
    %v3310 = vld [vmem:[#allocation5 + $0x2e8] sm:$0xf]
    %v3311 = vld [vmem:[#allocation5 + $0x2ec] sm:$0xf]
    %v3312 = vld [vmem:[#allocation5 + $0x2f0] sm:$0xf]
    %v3313 = vld [vmem:[#allocation5 + $0x2f4] sm:$0xf]
    %v3314 = vld [vmem:[#allocation5 + $0x2f8] sm:$0xf]
    %v3315 = vld [vmem:[#allocation5 + $0x2fc] sm:$0xf]
    %v3316 = vld [vmem:[%s5] sm:$0x1]
    %v3318 = vlaneseq
    %v3319 = vshrl.u32 %v3318, 7
    %v3320 = vsub.s32 0, %v3319
    %v3321 = vrot.slane %v3316, %v3320
    %v3419 = vunpack.c.l.b16 %v3028
    %v3420 = vunpack.c.l.b16 %v3029
    %v3421 = vunpack.c.l.b16 %v3030
    %v3422 = vunpack.c.l.b16 %v3031
    %v3423 = vunpack.c.l.b16 %v3032
    %v3424 = vunpack.c.l.b16 %v3033
    %v3425 = vunpack.c.l.b16 %v3034
    %v3426 = vunpack.c.l.b16 %v3035
    %v3427 = vunpack.c.l.b16 %v3036
    %v3428 = vunpack.c.l.b16 %v3037
    %v3429 = vunpack.c.l.b16 %v3038
    %v3430 = vunpack.c.l.b16 %v3039
    %v3431 = vunpack.c.l.b16 %v3040
    %v3432 = vunpack.c.l.b16 %v3041
    %v3433 = vunpack.c.l.b16 %v3042
    %v3434 = vunpack.c.l.b16 %v3043
    %v3435 = vunpack.c.l.b16 %v3044
    %v3436 = vunpack.c.l.b16 %v3045
    %v3437 = vunpack.c.l.b16 %v3046
    %v3438 = vunpack.c.l.b16 %v3047
    %v3439 = vunpack.c.l.b16 %v3048
    %v3440 = vunpack.c.l.b16 %v3049
    %v3441 = vunpack.c.l.b16 %v3050
    %v3442 = vunpack.c.l.b16 %v3051
    %v3443 = vunpack.c.l.b16 %v3052
    %v3444 = vunpack.c.l.b16 %v3053
    %v3445 = vunpack.c.l.b16 %v3054
    %v3446 = vunpack.c.l.b16 %v3055
    %v3447 = vunpack.c.l.b16 %v3056
    %v3448 = vunpack.c.l.b16 %v3057
    %v3449 = vunpack.c.l.b16 %v3058
    %v3450 = vunpack.c.l.b16 %v3059
    %v3451 = vunpack.c.l.b16 %v3060
    %v3452 = vunpack.c.l.b16 %v3061
    %v3453 = vunpack.c.l.b16 %v3062
    %v3454 = vunpack.c.l.b16 %v3063
    %v3455 = vunpack.c.l.b16 %v3064
    %v3456 = vunpack.c.l.b16 %v3065
    %v3457 = vunpack.c.l.b16 %v3066
    %v3458 = vunpack.c.l.b16 %v3067
    %v3459 = vunpack.c.l.b16 %v3068
    %v3460 = vunpack.c.l.b16 %v3069
    %v3461 = vunpack.c.l.b16 %v3070
    %v3462 = vunpack.c.l.b16 %v3071
    %v3463 = vunpack.c.l.b16 %v3072
    %v3464 = vunpack.c.l.b16 %v3073
    %v3465 = vunpack.c.l.b16 %v3074
    %v3466 = vunpack.c.l.b16 %v3075
    %v3467 = vunpack.c.l.b16 %v3076
    %v3468 = vunpack.c.l.b16 %v3077
    %v3469 = vunpack.c.l.b16 %v3078
    %v3470 = vunpack.c.l.b16 %v3079
    %v3471 = vunpack.c.l.b16 %v3080
    %v3472 = vunpack.c.l.b16 %v3081
    %v3473 = vunpack.c.l.b16 %v3082
    %v3474 = vunpack.c.l.b16 %v3083
    %v3475 = vunpack.c.l.b16 %v3084
    %v3476 = vunpack.c.l.b16 %v3085
    %v3477 = vunpack.c.l.b16 %v3086
    %v3478 = vunpack.c.l.b16 %v3087
    %v3479 = vunpack.c.l.b16 %v3088
    %v3480 = vunpack.c.l.b16 %v3089
    %v3481 = vunpack.c.l.b16 %v3090
    %v3482 = vunpack.c.l.b16 %v3091
    %v3483 = vunpack.c.l.b16 %v3092
    %v3484 = vunpack.c.l.b16 %v3093
    %v3485 = vunpack.c.l.b16 %v3094
    %v3486 = vunpack.c.l.b16 %v3095
    %v3487 = vunpack.c.l.b16 %v3096
    %v3488 = vunpack.c.l.b16 %v3097
    %v3489 = vunpack.c.l.b16 %v3098
    %v3490 = vunpack.c.l.b16 %v3099
    %v3491 = vunpack.c.l.b16 %v3100
    %v3492 = vunpack.c.l.b16 %v3101
    %v3493 = vunpack.c.l.b16 %v3102
    %v3494 = vunpack.c.l.b16 %v3103
    %v3495 = vunpack.c.l.b16 %v3104
    %v3496 = vunpack.c.l.b16 %v3105
    %v3497 = vunpack.c.l.b16 %v3106
    %v3498 = vunpack.c.l.b16 %v3107
    %v3499 = vunpack.c.l.b16 %v3108
    %v3500 = vunpack.c.l.b16 %v3109
    %v3501 = vunpack.c.l.b16 %v3110
    %v3502 = vunpack.c.l.b16 %v3111
    %v3503 = vunpack.c.l.b16 %v3112
    %v3504 = vunpack.c.l.b16 %v3113
    %v3505 = vunpack.c.l.b16 %v3114
    %v3506 = vunpack.c.l.b16 %v3115
    %v3507 = vunpack.c.l.b16 %v3116
    %v3508 = vunpack.c.l.b16 %v3117
    %v3509 = vunpack.c.l.b16 %v3118
    %v3510 = vunpack.c.l.b16 %v3119
    %v3511 = vunpack.c.l.b16 %v3120
    %v3512 = vunpack.c.l.b16 %v3121
    %v3513 = vunpack.c.l.b16 %v3122
    %v3514 = vunpack.c.l.b16 %v3123
    %v3515 = vrot.slane %v3431, 7
    %vm3516 = vcmask 1041409
    %v3517 = vsel %vm3516, %v3515, %v3419
    %v3518 = vrot.slane %v3443, 6
    %vm3519 = vcmask 1042434
    %v3520 = vsel %vm3519, %v3518, %v3517
    %v3521 = vrot.slane %v3455, 5
    %vm3522 = vcmask 1043459
    %v3523 = vsel %vm3522, %v3521, %v3520
    %v3524 = vrot.slane %v3467, 4
    %vm3525 = vcmask 1044484
    %v3526 = vsel %vm3525, %v3524, %v3523
    %v3527 = vrot.slane %v3479, 3
    %vm3528 = vcmask 1045509
    %v3529 = vsel %vm3528, %v3527, %v3526
    %v3530 = vrot.slane %v3491, 2
    %vm3531 = vcmask 1046534
    %v3532 = vsel %vm3531, %v3530, %v3529
    %v3533 = vrot.slane %v3503, 1
    %vm3534 = vcmask 1047559
    %v3535 = vsel %vm3534, %v3533, %v3532
    %v3536 = vrot.slane %v3432, 7
    %v3537 = vsel %vm3516, %v3536, %v3420
    %v3538 = vrot.slane %v3444, 6
    %v3539 = vsel %vm3519, %v3538, %v3537
    %v3540 = vrot.slane %v3456, 5
    %v3541 = vsel %vm3522, %v3540, %v3539
    %v3542 = vrot.slane %v3468, 4
    %v3543 = vsel %vm3525, %v3542, %v3541
    %v3544 = vrot.slane %v3480, 3
    %v3545 = vsel %vm3528, %v3544, %v3543
    %v3546 = vrot.slane %v3492, 2
    %v3547 = vsel %vm3531, %v3546, %v3545
    %v3548 = vrot.slane %v3504, 1
    %v3549 = vsel %vm3534, %v3548, %v3547
    %v3550 = vrot.slane %v3433, 7
    %v3551 = vsel %vm3516, %v3550, %v3421
    %v3552 = vrot.slane %v3445, 6
    %v3553 = vsel %vm3519, %v3552, %v3551
    %v3554 = vrot.slane %v3457, 5
    %v3555 = vsel %vm3522, %v3554, %v3553
    %v3556 = vrot.slane %v3469, 4
    %v3557 = vsel %vm3525, %v3556, %v3555
    %v3558 = vrot.slane %v3481, 3
    %v3559 = vsel %vm3528, %v3558, %v3557
    %v3560 = vrot.slane %v3493, 2
    %v3561 = vsel %vm3531, %v3560, %v3559
    %v3562 = vrot.slane %v3505, 1
    %v3563 = vsel %vm3534, %v3562, %v3561
    %v3564 = vrot.slane %v3434, 7
    %v3565 = vsel %vm3516, %v3564, %v3422
    %v3566 = vrot.slane %v3446, 6
    %v3567 = vsel %vm3519, %v3566, %v3565
    %v3568 = vrot.slane %v3458, 5
    %v3569 = vsel %vm3522, %v3568, %v3567
    %v3570 = vrot.slane %v3470, 4
    %v3571 = vsel %vm3525, %v3570, %v3569
    %v3572 = vrot.slane %v3482, 3
    %v3573 = vsel %vm3528, %v3572, %v3571
    %v3574 = vrot.slane %v3494, 2
    %v3575 = vsel %vm3531, %v3574, %v3573
    %v3576 = vrot.slane %v3506, 1
    %v3577 = vsel %vm3534, %v3576, %v3575
    %v3578 = vrot.slane %v3435, 7
    %v3579 = vsel %vm3516, %v3578, %v3423
    %v3580 = vrot.slane %v3447, 6
    %v3581 = vsel %vm3519, %v3580, %v3579
    %v3582 = vrot.slane %v3459, 5
    %v3583 = vsel %vm3522, %v3582, %v3581
    %v3584 = vrot.slane %v3471, 4
    %v3585 = vsel %vm3525, %v3584, %v3583
    %v3586 = vrot.slane %v3483, 3
    %v3587 = vsel %vm3528, %v3586, %v3585
    %v3588 = vrot.slane %v3495, 2
    %v3589 = vsel %vm3531, %v3588, %v3587
    %v3590 = vrot.slane %v3507, 1
    %v3591 = vsel %vm3534, %v3590, %v3589
    %v3592 = vrot.slane %v3436, 7
    %v3593 = vsel %vm3516, %v3592, %v3424
    %v3594 = vrot.slane %v3448, 6
    %v3595 = vsel %vm3519, %v3594, %v3593
    %v3596 = vrot.slane %v3460, 5
    %v3597 = vsel %vm3522, %v3596, %v3595
    %v3598 = vrot.slane %v3472, 4
    %v3599 = vsel %vm3525, %v3598, %v3597
    %v3600 = vrot.slane %v3484, 3
    %v3601 = vsel %vm3528, %v3600, %v3599
    %v3602 = vrot.slane %v3496, 2
    %v3603 = vsel %vm3531, %v3602, %v3601
    %v3604 = vrot.slane %v3508, 1
    %v3605 = vsel %vm3534, %v3604, %v3603
    %v3606 = vrot.slane %v3437, 7
    %v3607 = vsel %vm3516, %v3606, %v3425
    %v3608 = vrot.slane %v3449, 6
    %v3609 = vsel %vm3519, %v3608, %v3607
    %v3610 = vrot.slane %v3461, 5
    %v3611 = vsel %vm3522, %v3610, %v3609
    %v3612 = vrot.slane %v3473, 4
    %v3613 = vsel %vm3525, %v3612, %v3611
    %v3614 = vrot.slane %v3485, 3
    %v3615 = vsel %vm3528, %v3614, %v3613
    %v3616 = vrot.slane %v3497, 2
    %v3617 = vsel %vm3531, %v3616, %v3615
    %v3618 = vrot.slane %v3509, 1
    %v3619 = vsel %vm3534, %v3618, %v3617
    %v3620 = vrot.slane %v3438, 7
    %v3621 = vsel %vm3516, %v3620, %v3426
    %v3622 = vrot.slane %v3450, 6
    %v3623 = vsel %vm3519, %v3622, %v3621
    %v3624 = vrot.slane %v3462, 5
    %v3625 = vsel %vm3522, %v3624, %v3623
    %v3626 = vrot.slane %v3474, 4
    %v3627 = vsel %vm3525, %v3626, %v3625
    %v3628 = vrot.slane %v3486, 3
    %v3629 = vsel %vm3528, %v3628, %v3627
    %v3630 = vrot.slane %v3498, 2
    %v3631 = vsel %vm3531, %v3630, %v3629
    %v3632 = vrot.slane %v3510, 1
    %v3633 = vsel %vm3534, %v3632, %v3631
    %v3634 = vrot.slane %v3439, 7
    %v3635 = vsel %vm3516, %v3634, %v3427
    %v3636 = vrot.slane %v3451, 6
    %v3637 = vsel %vm3519, %v3636, %v3635
    %v3638 = vrot.slane %v3463, 5
    %v3639 = vsel %vm3522, %v3638, %v3637
    %v3640 = vrot.slane %v3475, 4
    %v3641 = vsel %vm3525, %v3640, %v3639
    %v3642 = vrot.slane %v3487, 3
    %v3643 = vsel %vm3528, %v3642, %v3641
    %v3644 = vrot.slane %v3499, 2
    %v3645 = vsel %vm3531, %v3644, %v3643
    %v3646 = vrot.slane %v3511, 1
    %v3647 = vsel %vm3534, %v3646, %v3645
    %v3648 = vrot.slane %v3440, 7
    %v3649 = vsel %vm3516, %v3648, %v3428
    %v3650 = vrot.slane %v3452, 6
    %v3651 = vsel %vm3519, %v3650, %v3649
    %v3652 = vrot.slane %v3464, 5
    %v3653 = vsel %vm3522, %v3652, %v3651
    %v3654 = vrot.slane %v3476, 4
    %v3655 = vsel %vm3525, %v3654, %v3653
    %v3656 = vrot.slane %v3488, 3
    %v3657 = vsel %vm3528, %v3656, %v3655
    %v3658 = vrot.slane %v3500, 2
    %v3659 = vsel %vm3531, %v3658, %v3657
    %v3660 = vrot.slane %v3512, 1
    %v3661 = vsel %vm3534, %v3660, %v3659
    %v3662 = vrot.slane %v3441, 7
    %v3663 = vsel %vm3516, %v3662, %v3429
    %v3664 = vrot.slane %v3453, 6
    %v3665 = vsel %vm3519, %v3664, %v3663
    %v3666 = vrot.slane %v3465, 5
    %v3667 = vsel %vm3522, %v3666, %v3665
    %v3668 = vrot.slane %v3477, 4
    %v3669 = vsel %vm3525, %v3668, %v3667
    %v3670 = vrot.slane %v3489, 3
    %v3671 = vsel %vm3528, %v3670, %v3669
    %v3672 = vrot.slane %v3501, 2
    %v3673 = vsel %vm3531, %v3672, %v3671
    %v3674 = vrot.slane %v3513, 1
    %v3675 = vsel %vm3534, %v3674, %v3673
    %v3676 = vrot.slane %v3442, 7
    %v3677 = vsel %vm3516, %v3676, %v3430
    %v3678 = vrot.slane %v3454, 6
    %v3679 = vsel %vm3519, %v3678, %v3677
    %v3680 = vrot.slane %v3466, 5
    %v3681 = vsel %vm3522, %v3680, %v3679
    %v3682 = vrot.slane %v3478, 4
    %v3683 = vsel %vm3525, %v3682, %v3681
    %v3684 = vrot.slane %v3490, 3
    %v3685 = vsel %vm3528, %v3684, %v3683
    %v3686 = vrot.slane %v3502, 2
    %v3687 = vsel %vm3531, %v3686, %v3685
    %v3688 = vrot.slane %v3514, 1
    %v3689 = vsel %vm3534, %v3688, %v3687
    %v3690 = vpack.c.b16 %v3535, %v3535
    %v3691 = vpack.c.b16 %v3549, %v3549
    %v3692 = vpack.c.b16 %v3563, %v3563
    %v3693 = vpack.c.b16 %v3577, %v3577
    %v3694 = vpack.c.b16 %v3591, %v3591
    %v3695 = vpack.c.b16 %v3605, %v3605
    %v3696 = vpack.c.b16 %v3619, %v3619
    %v3697 = vpack.c.b16 %v3633, %v3633
    %v3698 = vpack.c.b16 %v3647, %v3647
    %v3699 = vpack.c.b16 %v3661, %v3661
    %v3700 = vpack.c.b16 %v3675, %v3675
    %v3701 = vpack.c.b16 %v3689, %v3689
    %v3906 = vunpack.c.l.b16 %v3124
    %v3907 = vunpack.c.l.b16 %v3125
    %v3908 = vunpack.c.l.b16 %v3126
    %v3909 = vunpack.c.l.b16 %v3127
    %v3910 = vunpack.c.l.b16 %v3128
    %v3911 = vunpack.c.l.b16 %v3129
    %v3912 = vunpack.c.l.b16 %v3130
    %v3913 = vunpack.c.l.b16 %v3131
    %v3914 = vunpack.c.l.b16 %v3132
    %v3915 = vunpack.c.l.b16 %v3133
    %v3916 = vunpack.c.l.b16 %v3134
    %v3917 = vunpack.c.l.b16 %v3135
    %v3918 = vunpack.c.l.b16 %v3136
    %v3919 = vunpack.c.l.b16 %v3137
    %v3920 = vunpack.c.l.b16 %v3138
    %v3921 = vunpack.c.l.b16 %v3139
    %v3922 = vunpack.c.l.b16 %v3140
    %v3923 = vunpack.c.l.b16 %v3141
    %v3924 = vunpack.c.l.b16 %v3142
    %v3925 = vunpack.c.l.b16 %v3143
    %v3926 = vunpack.c.l.b16 %v3144
    %v3927 = vunpack.c.l.b16 %v3145
    %v3928 = vunpack.c.l.b16 %v3146
    %v3929 = vunpack.c.l.b16 %v3147
    %v3930 = vunpack.c.l.b16 %v3148
    %v3931 = vunpack.c.l.b16 %v3149
    %v3932 = vunpack.c.l.b16 %v3150
    %v3933 = vunpack.c.l.b16 %v3151
    %v3934 = vunpack.c.l.b16 %v3152
    %v3935 = vunpack.c.l.b16 %v3153
    %v3936 = vunpack.c.l.b16 %v3154
    %v3937 = vunpack.c.l.b16 %v3155
    %v3938 = vunpack.c.l.b16 %v3156
    %v3939 = vunpack.c.l.b16 %v3157
    %v3940 = vunpack.c.l.b16 %v3158
    %v3941 = vunpack.c.l.b16 %v3159
    %v3942 = vunpack.c.l.b16 %v3160
    %v3943 = vunpack.c.l.b16 %v3161
    %v3944 = vunpack.c.l.b16 %v3162
    %v3945 = vunpack.c.l.b16 %v3163
    %v3946 = vunpack.c.l.b16 %v3164
    %v3947 = vunpack.c.l.b16 %v3165
    %v3948 = vunpack.c.l.b16 %v3166
    %v3949 = vunpack.c.l.b16 %v3167
    %v3950 = vunpack.c.l.b16 %v3168
    %v3951 = vunpack.c.l.b16 %v3169
    %v3952 = vunpack.c.l.b16 %v3170
    %v3953 = vunpack.c.l.b16 %v3171
    %v3954 = vunpack.c.l.b16 %v3172
    %v3955 = vunpack.c.l.b16 %v3173
    %v3956 = vunpack.c.l.b16 %v3174
    %v3957 = vunpack.c.l.b16 %v3175
    %v3958 = vunpack.c.l.b16 %v3176
    %v3959 = vunpack.c.l.b16 %v3177
    %v3960 = vunpack.c.l.b16 %v3178
    %v3961 = vunpack.c.l.b16 %v3179
    %v3962 = vunpack.c.l.b16 %v3180
    %v3963 = vunpack.c.l.b16 %v3181
    %v3964 = vunpack.c.l.b16 %v3182
    %v3965 = vunpack.c.l.b16 %v3183
    %v3966 = vunpack.c.l.b16 %v3184
    %v3967 = vunpack.c.l.b16 %v3185
    %v3968 = vunpack.c.l.b16 %v3186
    %v3969 = vunpack.c.l.b16 %v3187
    %v3970 = vunpack.c.l.b16 %v3188
    %v3971 = vunpack.c.l.b16 %v3189
    %v3972 = vunpack.c.l.b16 %v3190
    %v3973 = vunpack.c.l.b16 %v3191
    %v3974 = vunpack.c.l.b16 %v3192
    %v3975 = vunpack.c.l.b16 %v3193
    %v3976 = vunpack.c.l.b16 %v3194
    %v3977 = vunpack.c.l.b16 %v3195
    %v3978 = vunpack.c.l.b16 %v3196
    %v3979 = vunpack.c.l.b16 %v3197
    %v3980 = vunpack.c.l.b16 %v3198
    %v3981 = vunpack.c.l.b16 %v3199
    %v3982 = vunpack.c.l.b16 %v3200
    %v3983 = vunpack.c.l.b16 %v3201
    %v3984 = vunpack.c.l.b16 %v3202
    %v3985 = vunpack.c.l.b16 %v3203
    %v3986 = vunpack.c.l.b16 %v3204
    %v3987 = vunpack.c.l.b16 %v3205
    %v3988 = vunpack.c.l.b16 %v3206
    %v3989 = vunpack.c.l.b16 %v3207
    %v3990 = vunpack.c.l.b16 %v3208
    %v3991 = vunpack.c.l.b16 %v3209
    %v3992 = vunpack.c.l.b16 %v3210
    %v3993 = vunpack.c.l.b16 %v3211
    %v3994 = vunpack.c.l.b16 %v3212
    %v3995 = vunpack.c.l.b16 %v3213
    %v3996 = vunpack.c.l.b16 %v3214
    %v3997 = vunpack.c.l.b16 %v3215
    %v3998 = vunpack.c.l.b16 %v3216
    %v3999 = vunpack.c.l.b16 %v3217
    %v4000 = vunpack.c.l.b16 %v3218
    %v4001 = vunpack.c.l.b16 %v3219
    %v4002 = vunpack.c.l.b16 %v3220
    %v4003 = vunpack.c.l.b16 %v3221
    %v4004 = vunpack.c.l.b16 %v3222
    %v4005 = vunpack.c.l.b16 %v3223
    %v4006 = vunpack.c.l.b16 %v3224
    %v4007 = vunpack.c.l.b16 %v3225
    %v4008 = vunpack.c.l.b16 %v3226
    %v4009 = vunpack.c.l.b16 %v3227
    %v4010 = vunpack.c.l.b16 %v3228
    %v4011 = vunpack.c.l.b16 %v3229
    %v4012 = vunpack.c.l.b16 %v3230
    %v4013 = vunpack.c.l.b16 %v3231
    %v4014 = vunpack.c.l.b16 %v3232
    %v4015 = vunpack.c.l.b16 %v3233
    %v4016 = vunpack.c.l.b16 %v3234
    %v4017 = vunpack.c.l.b16 %v3235
    %v4018 = vunpack.c.l.b16 %v3236
    %v4019 = vunpack.c.l.b16 %v3237
    %v4020 = vunpack.c.l.b16 %v3238
    %v4021 = vunpack.c.l.b16 %v3239
    %v4022 = vunpack.c.l.b16 %v3240
    %v4023 = vunpack.c.l.b16 %v3241
    %v4024 = vunpack.c.l.b16 %v3242
    %v4025 = vunpack.c.l.b16 %v3243
    %v4026 = vunpack.c.l.b16 %v3244
    %v4027 = vunpack.c.l.b16 %v3245
    %v4028 = vunpack.c.l.b16 %v3246
    %v4029 = vunpack.c.l.b16 %v3247
    %v4030 = vunpack.c.l.b16 %v3248
    %v4031 = vunpack.c.l.b16 %v3249
    %v4032 = vunpack.c.l.b16 %v3250
    %v4033 = vunpack.c.l.b16 %v3251
    %v4034 = vunpack.c.l.b16 %v3252
    %v4035 = vunpack.c.l.b16 %v3253
    %v4036 = vunpack.c.l.b16 %v3254
    %v4037 = vunpack.c.l.b16 %v3255
    %v4038 = vunpack.c.l.b16 %v3256
    %v4039 = vunpack.c.l.b16 %v3257
    %v4040 = vunpack.c.l.b16 %v3258
    %v4041 = vunpack.c.l.b16 %v3259
    %v4042 = vunpack.c.l.b16 %v3260
    %v4043 = vunpack.c.l.b16 %v3261
    %v4044 = vunpack.c.l.b16 %v3262
    %v4045 = vunpack.c.l.b16 %v3263
    %v4046 = vunpack.c.l.b16 %v3264
    %v4047 = vunpack.c.l.b16 %v3265
    %v4048 = vunpack.c.l.b16 %v3266
    %v4049 = vunpack.c.l.b16 %v3267
    %v4050 = vunpack.c.l.b16 %v3268
    %v4051 = vunpack.c.l.b16 %v3269
    %v4052 = vunpack.c.l.b16 %v3270
    %v4053 = vunpack.c.l.b16 %v3271
    %v4054 = vunpack.c.l.b16 %v3272
    %v4055 = vunpack.c.l.b16 %v3273
    %v4056 = vunpack.c.l.b16 %v3274
    %v4057 = vunpack.c.l.b16 %v3275
    %v4058 = vunpack.c.l.b16 %v3276
    %v4059 = vunpack.c.l.b16 %v3277
    %v4060 = vunpack.c.l.b16 %v3278
    %v4061 = vunpack.c.l.b16 %v3279
    %v4062 = vunpack.c.l.b16 %v3280
    %v4063 = vunpack.c.l.b16 %v3281
    %v4064 = vunpack.c.l.b16 %v3282
    %v4065 = vunpack.c.l.b16 %v3283
    %v4066 = vunpack.c.l.b16 %v3284
    %v4067 = vunpack.c.l.b16 %v3285
    %v4068 = vunpack.c.l.b16 %v3286
    %v4069 = vunpack.c.l.b16 %v3287
    %v4070 = vunpack.c.l.b16 %v3288
    %v4071 = vunpack.c.l.b16 %v3289
    %v4072 = vunpack.c.l.b16 %v3290
    %v4073 = vunpack.c.l.b16 %v3291
    %v4074 = vunpack.c.l.b16 %v3292
    %v4075 = vunpack.c.l.b16 %v3293
    %v4076 = vunpack.c.l.b16 %v3294
    %v4077 = vunpack.c.l.b16 %v3295
    %v4078 = vunpack.c.l.b16 %v3296
    %v4079 = vunpack.c.l.b16 %v3297
    %v4080 = vunpack.c.l.b16 %v3298
    %v4081 = vunpack.c.l.b16 %v3299
    %v4082 = vunpack.c.l.b16 %v3300
    %v4083 = vunpack.c.l.b16 %v3301
    %v4084 = vunpack.c.l.b16 %v3302
    %v4085 = vunpack.c.l.b16 %v3303
    %v4086 = vunpack.c.l.b16 %v3304
    %v4087 = vunpack.c.l.b16 %v3305
    %v4088 = vunpack.c.l.b16 %v3306
    %v4089 = vunpack.c.l.b16 %v3307
    %v4090 = vunpack.c.l.b16 %v3308
    %v4091 = vunpack.c.l.b16 %v3309
    %v4092 = vunpack.c.l.b16 %v3310
    %v4093 = vunpack.c.l.b16 %v3311
    %v4094 = vunpack.c.l.b16 %v3312
    %v4095 = vunpack.c.l.b16 %v3313
    %v4096 = vunpack.c.l.b16 %v3314
    %v4097 = vunpack.c.l.b16 %v3315
    %v4098 = vpack.c.b16 %v3907, %v3906
    %v4099 = vpack.c.b16 %v3909, %v3908
    %v4100 = vpack.c.b16 %v3911, %v3910
    %v4101 = vpack.c.b16 %v3913, %v3912
    %v4102 = vpack.c.b16 %v3915, %v3914
    %v4103 = vpack.c.b16 %v3917, %v3916
    %v4104 = vpack.c.b16 %v3919, %v3918
    %v4105 = vpack.c.b16 %v3921, %v3920
    %v4106 = vpack.c.b16 %v3923, %v3922
    %v4107 = vpack.c.b16 %v3925, %v3924
    %v4108 = vpack.c.b16 %v3927, %v3926
    %v4109 = vpack.c.b16 %v3929, %v3928
    %v4110 = vpack.c.b16 %v3931, %v3930
    %v4111 = vpack.c.b16 %v3933, %v3932
    %v4112 = vpack.c.b16 %v3935, %v3934
    %v4113 = vpack.c.b16 %v3937, %v3936
    %v4114 = vpack.c.b16 %v3939, %v3938
    %v4115 = vpack.c.b16 %v3941, %v3940
    %v4116 = vpack.c.b16 %v3943, %v3942
    %v4117 = vpack.c.b16 %v3945, %v3944
    %v4118 = vpack.c.b16 %v3947, %v3946
    %v4119 = vpack.c.b16 %v3949, %v3948
    %v4120 = vpack.c.b16 %v3951, %v3950
    %v4121 = vpack.c.b16 %v3953, %v3952
    %v4122 = vpack.c.b16 %v3955, %v3954
    %v4123 = vpack.c.b16 %v3957, %v3956
    %v4124 = vpack.c.b16 %v3959, %v3958
    %v4125 = vpack.c.b16 %v3961, %v3960
    %v4126 = vpack.c.b16 %v3963, %v3962
    %v4127 = vpack.c.b16 %v3965, %v3964
    %v4128 = vpack.c.b16 %v3967, %v3966
    %v4129 = vpack.c.b16 %v3969, %v3968
    %v4130 = vpack.c.b16 %v3971, %v3970
    %v4131 = vpack.c.b16 %v3973, %v3972
    %v4132 = vpack.c.b16 %v3975, %v3974
    %v4133 = vpack.c.b16 %v3977, %v3976
    %v4134 = vpack.c.b16 %v3979, %v3978
    %v4135 = vpack.c.b16 %v3981, %v3980
    %v4136 = vpack.c.b16 %v3983, %v3982
    %v4137 = vpack.c.b16 %v3985, %v3984
    %v4138 = vpack.c.b16 %v3987, %v3986
    %v4139 = vpack.c.b16 %v3989, %v3988
    %v4140 = vpack.c.b16 %v3991, %v3990
    %v4141 = vpack.c.b16 %v3993, %v3992
    %v4142 = vpack.c.b16 %v3995, %v3994
    %v4143 = vpack.c.b16 %v3997, %v3996
    %v4144 = vpack.c.b16 %v3999, %v3998
    %v4145 = vpack.c.b16 %v4001, %v4000
    %v4146 = vpack.c.b16 %v4003, %v4002
    %v4147 = vpack.c.b16 %v4005, %v4004
    %v4148 = vpack.c.b16 %v4007, %v4006
    %v4149 = vpack.c.b16 %v4009, %v4008
    %v4150 = vpack.c.b16 %v4011, %v4010
    %v4151 = vpack.c.b16 %v4013, %v4012
    %v4152 = vpack.c.b16 %v4015, %v4014
    %v4153 = vpack.c.b16 %v4017, %v4016
    %v4154 = vpack.c.b16 %v4019, %v4018
    %v4155 = vpack.c.b16 %v4021, %v4020
    %v4156 = vpack.c.b16 %v4023, %v4022
    %v4157 = vpack.c.b16 %v4025, %v4024
    %v4158 = vpack.c.b16 %v4027, %v4026
    %v4159 = vpack.c.b16 %v4029, %v4028
    %v4160 = vpack.c.b16 %v4031, %v4030
    %v4161 = vpack.c.b16 %v4033, %v4032
    %v4162 = vpack.c.b16 %v4035, %v4034
    %v4163 = vpack.c.b16 %v4037, %v4036
    %v4164 = vpack.c.b16 %v4039, %v4038
    %v4165 = vpack.c.b16 %v4041, %v4040
    %v4166 = vpack.c.b16 %v4043, %v4042
    %v4167 = vpack.c.b16 %v4045, %v4044
    %v4168 = vpack.c.b16 %v4047, %v4046
    %v4169 = vpack.c.b16 %v4049, %v4048
    %v4170 = vpack.c.b16 %v4051, %v4050
    %v4171 = vpack.c.b16 %v4053, %v4052
    %v4172 = vpack.c.b16 %v4055, %v4054
    %v4173 = vpack.c.b16 %v4057, %v4056
    %v4174 = vpack.c.b16 %v4059, %v4058
    %v4175 = vpack.c.b16 %v4061, %v4060
    %v4176 = vpack.c.b16 %v4063, %v4062
    %v4177 = vpack.c.b16 %v4065, %v4064
    %v4178 = vpack.c.b16 %v4067, %v4066
    %v4179 = vpack.c.b16 %v4069, %v4068
    %v4180 = vpack.c.b16 %v4071, %v4070
    %v4181 = vpack.c.b16 %v4073, %v4072
    %v4182 = vpack.c.b16 %v4075, %v4074
    %v4183 = vpack.c.b16 %v4077, %v4076
    %v4184 = vpack.c.b16 %v4079, %v4078
    %v4185 = vpack.c.b16 %v4081, %v4080
    %v4186 = vpack.c.b16 %v4083, %v4082
    %v4187 = vpack.c.b16 %v4085, %v4084
    %v4188 = vpack.c.b16 %v4087, %v4086
    %v4189 = vpack.c.b16 %v4089, %v4088
    %v4190 = vpack.c.b16 %v4091, %v4090
    %v4191 = vpack.c.b16 %v4093, %v4092
    %v4192 = vpack.c.b16 %v4095, %v4094
    %v4193 = vpack.c.b16 %v4097, %v4096
    %4290 = vmatprep.subr.bf16.mxu0 0
    %4291 = vmatpush1.bf16.msra.mxu0 %v4105
    %4292 = vmatprep.subr.bf16.mxu0 0
    %4293 = vmatpush1.bf16.msra.mxu0 %v4104
    %4294 = vmatprep.subr.bf16.mxu0 0
    %4295 = vmatpush1.bf16.msra.mxu0 %v4103
    %4296 = vmatprep.subr.bf16.mxu0 0
    %4297 = vmatpush1.bf16.msra.mxu0 %v4102
    %4298 = vmatprep.subr.bf16.mxu0 0
    %4299 = vmatpush1.bf16.msra.mxu0 %v4101
    %4300 = vmatprep.subr.bf16.mxu0 0
    %4301 = vmatpush1.bf16.msra.mxu0 %v4100
    %4302 = vmatprep.subr.bf16.mxu0 0
    %4303 = vmatpush1.bf16.msra.mxu0 %v4099
    %4304 = vmatprep.subr.bf16.mxu0 0
    %4305 = vmatpush1.bf16.msra.mxu0 %v4098
    %4306 = vmatprep.subr.bf16.mxu0 0
    %4307 = vmatpush2.bf16.msra.mxu0 %v4113
    %4308 = vmatprep.subr.bf16.mxu0 0
    %4309 = vmatpush2.bf16.msra.mxu0 %v4112
    %4310 = vmatprep.subr.bf16.mxu0 0
    %4311 = vmatpush2.bf16.msra.mxu0 %v4111
    %4312 = vmatprep.subr.bf16.mxu0 0
    %4313 = vmatpush2.bf16.msra.mxu0 %v4110
    %4314 = vmatprep.subr.bf16.mxu0 0
    %4315 = vmatpush2.bf16.msra.mxu0 %v4109
    %4316 = vmatprep.subr.bf16.mxu0 0
    %4317 = vmatpush2.bf16.msra.mxu0 %v4108
    %4318 = vmatprep.subr.bf16.mxu0 0
    %4319 = vmatpush2.bf16.msra.mxu0 %v4107
    %4320 = vmatprep.subr.bf16.mxu0 0
    %4321 = vmatpush2.bf16.msra.mxu0 %v4106
    %4322 = vmatprep.mubr.bf16.mxu0 %v3691
    %4323 = vmatmul.mubr.bf16.gmra.mxu0 %v3690
    %v4324 = vpop.f32.mrf.mxu0
    %v4325 = vadd.f32 %v3321, %v4324
    %v4326 = vpop.f32.mrf.mxu0
    %v4327 = vpop.f32.mrf.mxu0
    %v4328 = vpop.f32.mrf.mxu0
    %4329 = vdwg.mxu0
    %4330 = vmatprep.subr.bf16.mxu0 0
    %4331 = vmatpush1.bf16.msra.mxu0 %v4121
    %4332 = vmatprep.subr.bf16.mxu0 0
    %4333 = vmatpush1.bf16.msra.mxu0 %v4120
    %4334 = vmatprep.subr.bf16.mxu0 0
    %4335 = vmatpush1.bf16.msra.mxu0 %v4119
    %4336 = vmatprep.subr.bf16.mxu0 0
    %4337 = vmatpush1.bf16.msra.mxu0 %v4118
    %4338 = vmatprep.subr.bf16.mxu0 0
    %4339 = vmatpush1.bf16.msra.mxu0 %v4117
    %4340 = vmatprep.subr.bf16.mxu0 0
    %4341 = vmatpush1.bf16.msra.mxu0 %v4116
    %4342 = vmatprep.subr.bf16.mxu0 0
    %4343 = vmatpush1.bf16.msra.mxu0 %v4115
    %4344 = vmatprep.subr.bf16.mxu0 0
    %4345 = vmatpush1.bf16.msra.mxu0 %v4114
    %4346 = vmatprep.subr.bf16.mxu0 0
    %4347 = vmatpush2.bf16.msra.mxu0 %v4129
    %4348 = vmatprep.subr.bf16.mxu0 0
    %4349 = vmatpush2.bf16.msra.mxu0 %v4128
    %4350 = vmatprep.subr.bf16.mxu0 0
    %4351 = vmatpush2.bf16.msra.mxu0 %v4127
    %4352 = vmatprep.subr.bf16.mxu0 0
    %4353 = vmatpush2.bf16.msra.mxu0 %v4126
    %4354 = vmatprep.subr.bf16.mxu0 0
    %4355 = vmatpush2.bf16.msra.mxu0 %v4125
    %4356 = vmatprep.subr.bf16.mxu0 0
    %4357 = vmatpush2.bf16.msra.mxu0 %v4124
    %4358 = vmatprep.subr.bf16.mxu0 0
    %4359 = vmatpush2.bf16.msra.mxu0 %v4123
    %4360 = vmatprep.subr.bf16.mxu0 0
    %4361 = vmatpush2.bf16.msra.mxu0 %v4122
    %4362 = vmatprep.mubr.bf16.mxu0 %v3693
    %4363 = vmatmul.mubr.bf16.gmra.mxu0 %v3692
    %v4364 = vpop.f32.mrf.mxu0
    %v4365 = vadd.f32 %v4325, %v4364
    %v4366 = vpop.f32.mrf.mxu0
    %v4367 = vpop.f32.mrf.mxu0
    %v4368 = vpop.f32.mrf.mxu0
    %4369 = vdwg.mxu0
    %4370 = vmatprep.subr.bf16.mxu0 0
    %4371 = vmatpush1.bf16.msra.mxu0 %v4137
    %4372 = vmatprep.subr.bf16.mxu0 0
    %4373 = vmatpush1.bf16.msra.mxu0 %v4136
    %4374 = vmatprep.subr.bf16.mxu0 0
    %4375 = vmatpush1.bf16.msra.mxu0 %v4135
    %4376 = vmatprep.subr.bf16.mxu0 0
    %4377 = vmatpush1.bf16.msra.mxu0 %v4134
    %4378 = vmatprep.subr.bf16.mxu0 0
    %4379 = vmatpush1.bf16.msra.mxu0 %v4133
    %4380 = vmatprep.subr.bf16.mxu0 0
    %4381 = vmatpush1.bf16.msra.mxu0 %v4132
    %4382 = vmatprep.subr.bf16.mxu0 0
    %4383 = vmatpush1.bf16.msra.mxu0 %v4131
    %4384 = vmatprep.subr.bf16.mxu0 0
    %4385 = vmatpush1.bf16.msra.mxu0 %v4130
    %4386 = vmatprep.subr.bf16.mxu0 0
    %4387 = vmatpush2.bf16.msra.mxu0 %v4145
    %4388 = vmatprep.subr.bf16.mxu0 0
    %4389 = vmatpush2.bf16.msra.mxu0 %v4144
    %4390 = vmatprep.subr.bf16.mxu0 0
    %4391 = vmatpush2.bf16.msra.mxu0 %v4143
    %4392 = vmatprep.subr.bf16.mxu0 0
    %4393 = vmatpush2.bf16.msra.mxu0 %v4142
    %4394 = vmatprep.subr.bf16.mxu0 0
    %4395 = vmatpush2.bf16.msra.mxu0 %v4141
    %4396 = vmatprep.subr.bf16.mxu0 0
    %4397 = vmatpush2.bf16.msra.mxu0 %v4140
    %4398 = vmatprep.subr.bf16.mxu0 0
    %4399 = vmatpush2.bf16.msra.mxu0 %v4139
    %4400 = vmatprep.subr.bf16.mxu0 0
    %4401 = vmatpush2.bf16.msra.mxu0 %v4138
    %4402 = vmatprep.mubr.bf16.mxu0 %v3695
    %4403 = vmatmul.mubr.bf16.gmra.mxu0 %v3694
    %v4404 = vpop.f32.mrf.mxu0
    %v4405 = vadd.f32 %v4365, %v4404
    %v4406 = vpop.f32.mrf.mxu0
    %v4407 = vpop.f32.mrf.mxu0
    %v4408 = vpop.f32.mrf.mxu0
    %4409 = vdwg.mxu0
    %4410 = vmatprep.subr.bf16.mxu0 0
    %4411 = vmatpush1.bf16.msra.mxu0 %v4153
    %4412 = vmatprep.subr.bf16.mxu0 0
    %4413 = vmatpush1.bf16.msra.mxu0 %v4152
    %4414 = vmatprep.subr.bf16.mxu0 0
    %4415 = vmatpush1.bf16.msra.mxu0 %v4151
    %4416 = vmatprep.subr.bf16.mxu0 0
    %4417 = vmatpush1.bf16.msra.mxu0 %v4150
    %4418 = vmatprep.subr.bf16.mxu0 0
    %4419 = vmatpush1.bf16.msra.mxu0 %v4149
    %4420 = vmatprep.subr.bf16.mxu0 0
    %4421 = vmatpush1.bf16.msra.mxu0 %v4148
    %4422 = vmatprep.subr.bf16.mxu0 0
    %4423 = vmatpush1.bf16.msra.mxu0 %v4147
    %4424 = vmatprep.subr.bf16.mxu0 0
    %4425 = vmatpush1.bf16.msra.mxu0 %v4146
    %4426 = vmatprep.subr.bf16.mxu0 0
    %4427 = vmatpush2.bf16.msra.mxu0 %v4161
    %4428 = vmatprep.subr.bf16.mxu0 0
    %4429 = vmatpush2.bf16.msra.mxu0 %v4160
    %4430 = vmatprep.subr.bf16.mxu0 0
    %4431 = vmatpush2.bf16.msra.mxu0 %v4159
    %4432 = vmatprep.subr.bf16.mxu0 0
    %4433 = vmatpush2.bf16.msra.mxu0 %v4158
    %4434 = vmatprep.subr.bf16.mxu0 0
    %4435 = vmatpush2.bf16.msra.mxu0 %v4157
    %4436 = vmatprep.subr.bf16.mxu0 0
    %4437 = vmatpush2.bf16.msra.mxu0 %v4156
    %4438 = vmatprep.subr.bf16.mxu0 0
    %4439 = vmatpush2.bf16.msra.mxu0 %v4155
    %4440 = vmatprep.subr.bf16.mxu0 0
    %4441 = vmatpush2.bf16.msra.mxu0 %v4154
    %4442 = vmatprep.mubr.bf16.mxu0 %v3697
    %4443 = vmatmul.mubr.bf16.gmra.mxu0 %v3696
    %v4444 = vpop.f32.mrf.mxu0
    %v4445 = vadd.f32 %v4405, %v4444
    %v4446 = vpop.f32.mrf.mxu0
    %v4447 = vpop.f32.mrf.mxu0
    %v4448 = vpop.f32.mrf.mxu0
    %4449 = vdwg.mxu0
    %4450 = vmatprep.subr.bf16.mxu0 0
    %4451 = vmatpush1.bf16.msra.mxu0 %v4169
    %4452 = vmatprep.subr.bf16.mxu0 0
    %4453 = vmatpush1.bf16.msra.mxu0 %v4168
    %4454 = vmatprep.subr.bf16.mxu0 0
    %4455 = vmatpush1.bf16.msra.mxu0 %v4167
    %4456 = vmatprep.subr.bf16.mxu0 0
    %4457 = vmatpush1.bf16.msra.mxu0 %v4166
    %4458 = vmatprep.subr.bf16.mxu0 0
    %4459 = vmatpush1.bf16.msra.mxu0 %v4165
    %4460 = vmatprep.subr.bf16.mxu0 0
    %4461 = vmatpush1.bf16.msra.mxu0 %v4164
    %4462 = vmatprep.subr.bf16.mxu0 0
    %4463 = vmatpush1.bf16.msra.mxu0 %v4163
    %4464 = vmatprep.subr.bf16.mxu0 0
    %4465 = vmatpush1.bf16.msra.mxu0 %v4162
    %4466 = vmatprep.subr.bf16.mxu0 0
    %4467 = vmatpush2.bf16.msra.mxu0 %v4177
    %4468 = vmatprep.subr.bf16.mxu0 0
    %4469 = vmatpush2.bf16.msra.mxu0 %v4176
    %4470 = vmatprep.subr.bf16.mxu0 0
    %4471 = vmatpush2.bf16.msra.mxu0 %v4175
    %4472 = vmatprep.subr.bf16.mxu0 0
    %4473 = vmatpush2.bf16.msra.mxu0 %v4174
    %4474 = vmatprep.subr.bf16.mxu0 0
    %4475 = vmatpush2.bf16.msra.mxu0 %v4173
    %4476 = vmatprep.subr.bf16.mxu0 0
    %4477 = vmatpush2.bf16.msra.mxu0 %v4172
    %4478 = vmatprep.subr.bf16.mxu0 0
    %4479 = vmatpush2.bf16.msra.mxu0 %v4171
    %4480 = vmatprep.subr.bf16.mxu0 0
    %4481 = vmatpush2.bf16.msra.mxu0 %v4170
    %4482 = vmatprep.mubr.bf16.mxu0 %v3699
    %4483 = vmatmul.mubr.bf16.gmra.mxu0 %v3698
    %v4484 = vpop.f32.mrf.mxu0
    %v4485 = vadd.f32 %v4445, %v4484
    %v4486 = vpop.f32.mrf.mxu0
    %v4487 = vpop.f32.mrf.mxu0
    %v4488 = vpop.f32.mrf.mxu0
    %4489 = vdwg.mxu0
    %4490 = vmatprep.subr.bf16.mxu0 0
    %4491 = vmatpush1.bf16.msra.mxu0 %v4185
    %4492 = vmatprep.subr.bf16.mxu0 0
    %4493 = vmatpush1.bf16.msra.mxu0 %v4184
    %4494 = vmatprep.subr.bf16.mxu0 0
    %4495 = vmatpush1.bf16.msra.mxu0 %v4183
    %4496 = vmatprep.subr.bf16.mxu0 0
    %4497 = vmatpush1.bf16.msra.mxu0 %v4182
    %4498 = vmatprep.subr.bf16.mxu0 0
    %4499 = vmatpush1.bf16.msra.mxu0 %v4181
    %4500 = vmatprep.subr.bf16.mxu0 0
    %4501 = vmatpush1.bf16.msra.mxu0 %v4180
    %4502 = vmatprep.subr.bf16.mxu0 0
    %4503 = vmatpush1.bf16.msra.mxu0 %v4179
    %4504 = vmatprep.subr.bf16.mxu0 0
    %4505 = vmatpush1.bf16.msra.mxu0 %v4178
    %4506 = vmatprep.subr.bf16.mxu0 0
    %4507 = vmatpush2.bf16.msra.mxu0 %v4193
    %4508 = vmatprep.subr.bf16.mxu0 0
    %4509 = vmatpush2.bf16.msra.mxu0 %v4192
    %4510 = vmatprep.subr.bf16.mxu0 0
    %4511 = vmatpush2.bf16.msra.mxu0 %v4191
    %4512 = vmatprep.subr.bf16.mxu0 0
    %4513 = vmatpush2.bf16.msra.mxu0 %v4190
    %4514 = vmatprep.subr.bf16.mxu0 0
    %4515 = vmatpush2.bf16.msra.mxu0 %v4189
    %4516 = vmatprep.subr.bf16.mxu0 0
    %4517 = vmatpush2.bf16.msra.mxu0 %v4188
    %4518 = vmatprep.subr.bf16.mxu0 0
    %4519 = vmatpush2.bf16.msra.mxu0 %v4187
    %4520 = vmatprep.subr.bf16.mxu0 0
    %4521 = vmatpush2.bf16.msra.mxu0 %v4186
    %4522 = vmatprep.mubr.bf16.mxu0 %v3701
    %4523 = vmatmul.mubr.bf16.gmra.mxu0 %v3700
    %v4524 = vpop.f32.mrf.mxu0
    %v4525 = vadd.f32 %v4485, %v4524
    %v4526 = vpop.f32.mrf.mxu0
    %v4527 = vpop.f32.mrf.mxu0
    %v4528 = vpop.f32.mrf.mxu0
    %4529 = vdwg.mxu0
    %4530 = vst [vmem:[#allocation7] sm:$0xff] %v4525
    // Predicated region
    $region34: #{tpu_custom_call.1} parent=1 // pred_check
      _
    $region35: #{tpu_custom_call.1} parent=1 // pred_check_branch
      %4532 = sbr.rel (0) target = $region37
    $region36: #{tpu_custom_call.1} parent=1 // pred_region
      %s4534 = ssub.s32 128, 128
      %4535 = vsyncadd [#allocation4], %s4534
      %s4537 = sshll.u32 [#allocation7], 4
      %s4538 = int_to_ptr.vmem [resolvable:$true] %s4537
      %4540 = dma.vmem_to_hbm [thread:$0]  %s4538, 128, %s6, [#allocation4]
    $region37: #{tpu_custom_call.1} parent=1 // pred_fallthru
      _
    // Predicated region
    $region38: #{tpu_custom_call.1} parent=1 // pred_check
      _
    $region39: #{tpu_custom_call.1} parent=1 // pred_check_branch
      %4542 = sbr.rel (0) target = $region41
    $region40: #{tpu_custom_call.1} parent=1 // pred_region
      %4543 = dma.done [#allocation4], 128
    $region41: #{tpu_custom_call.1} parent=1 // pred_fallthru
      _
    %4544 = vsyncpa [#allocation3], 1
    %4545 = vsyncpa [#allocation6], 1
    %4546 = vsyncpa [#allocation4], 1

</llo_original>
